<compile_context>
chip_gen: v7x
topology: tpu7x:2x2x1
jax: 0.10.0
libtpu: 0.0.40
codegen_flags: <defaults>
</compile_context>

<pallas_src>
import functools

import jax
import jax.numpy as jnp
from jax.experimental import pallas as pl
from jax.experimental.pallas import tpu as pltpu

MXU_DTYPE = jnp.bfloat16   # matmul operand dtype (accumulation is always f32)


# ------------------------- fused block kernel -------------------------

def _make_block_kernel(H, W, Cin, Cm, stride, pad, K, Ho, Wo,
                       Wpc, Wp2, L1, L2, has_sc, phase_cols):
    """Build the fused pre-act-block kernel (one grid step == one image)."""
    n_phase = stride                 # number of column phases of the padded input
    row_pitch1 = stride * Wpc        # flat-row distance between consecutive conv1 output rows
    f32 = jnp.float32

    def kernel(*refs):
        i = 0
        x_refs = refs[i:i + n_phase]; i += n_phase
        s1_ref, h1_ref, w1_ref = refs[i:i + 3]; i += 3
        if has_sc:
            wsc_ref = refs[i]; i += 1
        s2_ref, h2_ref, w2_ref = refs[i:i + 3]; i += 3
        out_ref = refs[i]; i += 1
        xf1_refs = refs[i:i + n_phase]; i += n_phase
        xf2_ref, acc1_ref, acc2_ref = refs[i:i + 3]; i += 3
        scacc_ref = refs[i] if has_sc else None

        scale1, shift1 = s1_ref[...], h1_ref[...]      # [1, Cin] f32
        scale2, shift2 = s2_ref[...], h2_ref[...]      # [1, Cm]  f32

        # -- stage 1: BN1 + ReLU written into zero-padded flat scratch (one per stride phase)
        for c in range(n_phase):
            xf1_refs[c][...] = jnp.zeros_like(xf1_refs[c])
        for c in range(n_phase):
            Wc, j0 = phase_cols[c]
            for h in range(H):
                row = x_refs[c][0, h].astype(f32)                       # [Wc, Cin]
                act = jnp.maximum(row * scale1 + shift1, 0.0)
                base = (h + pad) * Wpc + j0
                xf1_refs[c][base:base + Wc, :] = act

        # -- conv1 (KxK, stride s): implicit im2col, one contiguous-slice matmul per tap
        acc1_ref[...] = jnp.zeros_like(acc1_ref)
        for kh in range(K):
            for kw in range(K):
                c, q = kw % n_phase, kw // n_phase
                base = kh * Wpc + q
                patch = xf1_refs[c][base:base + L1, :].astype(MXU_DTYPE)
                acc1_ref[...] += jnp.dot(patch, w1_ref[kh * K + kw],
                                         preferred_element_type=f32)

        # -- optional 1x1 shortcut conv (stride s) on the same activated input
        if has_sc:
            c, q = pad % n_phase, pad // n_phase
            base = pad * Wpc + q
            centre = xf1_refs[c][base:base + L1, :].astype(MXU_DTYPE)
            scacc_ref[...] = jnp.dot(centre, wsc_ref[...], preferred_element_type=f32)

        # -- stage 2: BN2 + ReLU of the conv1 output into a second zero-padded flat scratch
        xf2_ref[...] = jnp.zeros_like(xf2_ref)
        for ho in range(Ho):
            row = acc1_ref[ho * row_pitch1: ho * row_pitch1 + Wo, :]     # valid conv1 rows
            act = jnp.maximum(row * scale2 + shift2, 0.0)
            base = (ho + pad) * Wp2 + pad
            xf2_ref[base:base + Wo, :] = act

        # -- conv2 (KxK, stride 1)
        acc2_ref[...] = jnp.zeros_like(acc2_ref)
        for kh in range(K):
            for kw in range(K):
                base = kh * Wp2 + kw
                patch = xf2_ref[base:base + L2, :].astype(MXU_DTYPE)
                acc2_ref[...] += jnp.dot(patch, w2_ref[kh * K + kw],
                                         preferred_element_type=f32)

        # -- epilogue: fused residual add + write-out of the valid rows
        for ho in range(Ho):
            conv_row = acc2_ref[ho * Wp2: ho * Wp2 + Wo, :]
            if has_sc:
                res_row = scacc_ref[ho * row_pitch1: ho * row_pitch1 + Wo, :]
            else:
                res_row = x_refs[0][0, ho].astype(f32)   # identity shortcut (stride 1, Cin == Cm)
            out_ref[0, ho] = (conv_row + res_row).astype(out_ref.dtype)

    return kernel


# ------------------------- one-time parameter preparation -------------------------

def prepare_block_params(params, eps=1e-5):
    """Fold BN to scale/shift and put conv weights in MXU-ready [K*K, Cin, Cout] layout."""
    def bn_fold(bn):
        sc = bn['gamma'] / jnp.sqrt(bn['var'] + eps)
        sh = bn['beta'] - bn['mean'] * sc
        return sc.reshape(1, -1).astype(jnp.float32), sh.reshape(1, -1).astype(jnp.float32)

    def conv_w(w):                       # OIHW -> [KH*KW, Cin, Cout]
        co, ci, kh, kw = w.shape
        return jnp.transpose(w, (2, 3, 1, 0)).reshape(kh * kw, ci, co).astype(MXU_DTYPE)

    s1, h1 = bn_fold(params['bn1'])
    s2, h2 = bn_fold(params['bn2'])
    prep = {'scale1': s1, 'shift1': h1, 'scale2': s2, 'shift2': h2,
            'w1': conv_w(params['w1']), 'w2': conv_w(params['w2'])}
    if 'w_sc' in params:
        prep['wsc'] = jnp.transpose(params['w_sc'][:, :, 0, 0], (1, 0)).astype(MXU_DTYPE)
    return prep


# ------------------------- forward pass -------------------------

@functools.partial(jax.jit, static_argnames=("stride",))
def preact_block_forward(x_nchw, prep, *, stride):
    pad, K = 1, 3
    s = stride
    has_sc = 'wsc' in prep

    x = jnp.transpose(x_nchw, (0, 2, 3, 1)).astype(jnp.float32)   # NCHW -> NHWC (layout prep)
    N, H, W, Cin = x.shape
    Cm = prep['w1'].shape[2]

    Ho = (H + 2 * pad - K) // s + 1
    Wo = (W + 2 * pad - K) // s + 1
    Hp1 = H + 2 * pad
    Wp_pad = -(-(W + 2 * pad) // s) * s        # padded width rounded up to a multiple of s
    Wpc = Wp_pad // s                          # width of each column-phase plane
    L1 = (Ho - 1) * (s * Wpc) + Wo             # rows of the conv1 "overlapping" accumulator
    Hp2, Wp2 = Ho + 2 * pad, Wo + 2 * pad
    L2 = (Ho - 1) * Wp2 + Wo                   # rows of the conv2 accumulator

    # bytes-neutral stride-phase split of x along W (keeps every in-kernel slice contiguous)
    x_phases, phase_cols = [], []
    for c in range(s):
        first = (c - pad) % s
        xc = x[:, :, first::s, :]
        x_phases.append(xc)
        phase_cols.append((xc.shape[2], (first + pad) // s))

    kernel = _make_block_kernel(H, W, Cin, Cm, s, pad, K, Ho, Wo,
                                Wpc, Wp2, L1, L2, has_sc, tuple(phase_cols))

    inputs, in_specs = [], []
    for c in range(s):
        Wc = phase_cols[c][0]
        inputs.append(x_phases[c])
        in_specs.append(pl.BlockSpec((1, H, Wc, Cin), lambda n: (n, 0, 0, 0)))
    inputs += [prep['scale1'], prep['shift1'], prep['w1']]
    in_specs += [pl.BlockSpec((1, Cin), lambda n: (0, 0)),
                 pl.BlockSpec((1, Cin), lambda n: (0, 0)),
                 pl.BlockSpec((K * K, Cin, Cm), lambda n: (0, 0, 0))]
    if has_sc:
        inputs.append(prep['wsc'])
        in_specs.append(pl.BlockSpec((Cin, Cm), lambda n: (0, 0)))
    inputs += [prep['scale2'], prep['shift2'], prep['w2']]
    in_specs += [pl.BlockSpec((1, Cm), lambda n: (0, 0)),
                 pl.BlockSpec((1, Cm), lambda n: (0, 0)),
                 pl.BlockSpec((K * K, Cm, Cm), lambda n: (0, 0, 0))]

    scratch = [pltpu.VMEM((Hp1 * Wpc, Cin), jnp.float32) for _ in range(s)]   # padded act, per phase
    scratch += [pltpu.VMEM((Hp2 * Wp2, Cm), jnp.float32),                     # padded act for conv2
                pltpu.VMEM((L1, Cm), jnp.float32),                            # conv1 accumulator
                pltpu.VMEM((L2, Cm), jnp.float32)]                            # conv2 accumulator
    if has_sc:
        scratch.append(pltpu.VMEM((L1, Cm), jnp.float32))                     # shortcut conv result

    out_nhwc = pl.pallas_call(
        kernel,
        out_shape=jax.ShapeDtypeStruct((N, Ho, Wo, Cm), jnp.float32),
        grid_spec=pltpu.PrefetchScalarGridSpec(
            num_scalar_prefetch=0,
            grid=(N,),                                   # one image per grid step
            in_specs=in_specs,
            out_specs=pl.BlockSpec((1, Ho, Wo, Cm), lambda n: (n, 0, 0, 0)),
            scratch_shapes=scratch),
        compiler_params=pltpu.CompilerParams(
            dimension_semantics=("parallel",)),
    )(*inputs)

    return jnp.transpose(out_nhwc, (0, 3, 1, 2))         # back to NCHW (PyTorch layout)


# ------------------------- pure-XLA reference (for verification) -------------------------

def reference_forward(x, params, stride, mxu_dtype=jnp.float32):
    """Reference.  `mxu_dtype` lets us match the kernel's bf16-operand / f32-accumulate
    matmul precision for a tight comparison (use float32 for the exact-f32 reference)."""
    eps = 1e-5

    def bn_relu(t, bn):  # NCHW, same fold formula as prepare_block_params
        sc = bn['gamma'] / jnp.sqrt(bn['var'] + eps)
        sh = bn['beta'] - bn['mean'] * sc
        return jnp.maximum(t * sc.reshape(1, -1, 1, 1) + sh.reshape(1, -1, 1, 1), 0.0)

    def conv(t, w, s, p):
        return jax.lax.conv_general_dilated(
            t.astype(mxu_dtype), w.astype(mxu_dtype), (s, s), [(p, p), (p, p)],
            dimension_numbers=('NCHW', 'OIHW', 'NCHW'),
            preferred_element_type=jnp.float32)

    out = bn_relu(x, params['bn1'])
    shortcut = conv(out, params['w_sc'], stride, 0) if 'w_sc' in params else x
    out = conv(out, params['w1'], stride, 1)
    out = bn_relu(out, params['bn2'])
    out = conv(out, params['w2'], 1, 1)
    return out + shortcut


if __name__ == "__main__":
    in_planes, planes, stride = 4, 8, 2
    N, H, W = 2, 16, 16

    key = jax.random.PRNGKey(0)
    ks = jax.random.split(key, 12)

    def bn_params(k0, k1, k2, k3, c):
        return {
            'gamma': jax.random.uniform(k0, (c,), jnp.float32, 0.5, 1.5),
            'beta': 0.1 * jax.random.normal(k1, (c,), jnp.float32),
            'mean': 0.1 * jax.random.normal(k2, (c,), jnp.float32),
            'var': jax.random.uniform(k3, (c,), jnp.float32, 0.5, 1.5),
        }

    params = {
        'bn1': bn_params(ks[0], ks[1], ks[2], ks[3], in_planes),
        'bn2': bn_params(ks[4], ks[5], ks[6], ks[7], planes),
        'w1': 0.1 * jax.random.normal(ks[8], (planes, in_planes, 3, 3), jnp.float32),
        'w2': 0.1 * jax.random.normal(ks[9], (planes, planes, 3, 3), jnp.float32),
    }
    if stride != 1 or in_planes != planes:  # expansion = 1
        params['w_sc'] = 0.1 * jax.random.normal(ks[10], (planes, in_planes, 1, 1), jnp.float32)

    x = jax.random.normal(ks[11], (N, in_planes, H, W), jnp.float32)  # NCHW, like PyTorch

    prep = prepare_block_params(params)          # one-time BN fold + weight relayout/cast
    y = jax.block_until_ready(preact_block_forward(x, prep, stride=stride))

    # tight check vs a reference using the same bf16-operand / f32-accumulate precision
    y_ref_q = reference_forward(x, params, stride, mxu_dtype=MXU_DTYPE)
    # sanity check vs the pure-f32 reference (bounds the bf16 operand-quantization error)
    y_ref_f = reference_forward(x, params, stride, mxu_dtype=jnp.float32)

    assert y.shape == y_ref_f.shape, (y.shape, y_ref_f.shape)
    err_q = float(jnp.max(jnp.abs(y - y_ref_q)))
    err_f = float(jnp.max(jnp.abs(y - y_ref_f)))
    assert jnp.allclose(y, y_ref_q, rtol=5e-3, atol=5e-3), err_q
    assert jnp.allclose(y, y_ref_f, rtol=5e-2, atol=5e-2), err_f

    print("KERNEL_OK")
</pallas_src>

<mosaic_0001>
module attributes {stable_mosaic.version = 11 : i64} {
  func.func @kernel(%arg0: i32, %arg1: memref<1x16x8x4xf32, #tpu.memory_space<vmem>>, %arg2: memref<1x16x8x4xf32, #tpu.memory_space<vmem>>, %arg3: memref<1x4xf32, #tpu.memory_space<vmem>>, %arg4: memref<1x4xf32, #tpu.memory_space<vmem>>, %arg5: memref<9x4x8xbf16, #tpu.memory_space<vmem>>, %arg6: memref<4x8xbf16, #tpu.memory_space<vmem>>, %arg7: memref<1x8xf32, #tpu.memory_space<vmem>>, %arg8: memref<1x8xf32, #tpu.memory_space<vmem>>, %arg9: memref<9x8x8xbf16, #tpu.memory_space<vmem>>, %arg10: memref<1x8x8x8xf32, #tpu.memory_space<vmem>>, %arg11: memref<162x4xf32, #tpu.memory_space<vmem>>, %arg12: memref<162x4xf32, #tpu.memory_space<vmem>>, %arg13: memref<100x8xf32, #tpu.memory_space<vmem>>, %arg14: memref<134x8xf32, #tpu.memory_space<vmem>>, %arg15: memref<78x8xf32, #tpu.memory_space<vmem>>, %arg16: memref<134x8xf32, #tpu.memory_space<vmem>>) attributes {dimension_semantics = [#tpu.dimension_semantics<parallel>], iteration_bounds = array<i64: 2>, scalar_prefetch = 0 : i64, scratch_operands = 6 : i64, tpu.core_type = #tpu.core_type<tc>, window_params = [{transform_indices = @transform_0, window_bounds = array<i64: 1, 16, 8, 4>}, {transform_indices = @transform_1, window_bounds = array<i64: 1, 16, 8, 4>}, {pipeline_mode = #tpu.pipeline_mode<synchronous>, transform_indices = @transform_2, window_bounds = array<i64: 1, 4>}, {pipeline_mode = #tpu.pipeline_mode<synchronous>, transform_indices = @transform_3, window_bounds = array<i64: 1, 4>}, {pipeline_mode = #tpu.pipeline_mode<synchronous>, transform_indices = @transform_4, window_bounds = array<i64: 9, 4, 8>}, {pipeline_mode = #tpu.pipeline_mode<synchronous>, transform_indices = @transform_5, window_bounds = array<i64: 4, 8>}, {pipeline_mode = #tpu.pipeline_mode<synchronous>, transform_indices = @transform_6, window_bounds = array<i64: 1, 8>}, {pipeline_mode = #tpu.pipeline_mode<synchronous>, transform_indices = @transform_7, window_bounds = array<i64: 1, 8>}, {pipeline_mode = #tpu.pipeline_mode<synchronous>, transform_indices = @transform_8, window_bounds = array<i64: 9, 8, 8>}, {transform_indices = @transform_9, window_bounds = array<i64: 1, 8, 8, 8>}]} {
    %c0 = arith.constant 0 : index
    %c0_0 = arith.constant 0 : index
    %0 = vector.load %arg3[%c0, %c0_0] : memref<1x4xf32, #tpu.memory_space<vmem>>, vector<1x4xf32>
    %c0_1 = arith.constant 0 : index
    %c0_2 = arith.constant 0 : index
    %1 = vector.load %arg4[%c0_1, %c0_2] : memref<1x4xf32, #tpu.memory_space<vmem>>, vector<1x4xf32>
    %c0_3 = arith.constant 0 : index
    %c0_4 = arith.constant 0 : index
    %2 = vector.load %arg7[%c0_3, %c0_4] : memref<1x8xf32, #tpu.memory_space<vmem>>, vector<1x8xf32>
    %c0_5 = arith.constant 0 : index
    %c0_6 = arith.constant 0 : index
    %3 = vector.load %arg8[%c0_5, %c0_6] : memref<1x8xf32, #tpu.memory_space<vmem>>, vector<1x8xf32>
    %cst = arith.constant 0.000000e+00 : f32
    %4 = vector.broadcast %cst : f32 to vector<162x4xf32>
    %c0_7 = arith.constant 0 : index
    %c0_8 = arith.constant 0 : index
    %5 = vector.load %arg11[%c0_7, %c0_8] : memref<162x4xf32, #tpu.memory_space<vmem>>, vector<162x4xf32>
    tpu.vector_store %arg11[%c0_7, %c0_8], %4 {strides = array<i32>} : memref<162x4xf32, #tpu.memory_space<vmem>>, vector<162x4xf32>,
    %cst_9 = arith.constant 0.000000e+00 : f32
    %6 = vector.broadcast %cst_9 : f32 to vector<162x4xf32>
    %c0_10 = arith.constant 0 : index
    %c0_11 = arith.constant 0 : index
    %7 = vector.load %arg12[%c0_10, %c0_11] : memref<162x4xf32, #tpu.memory_space<vmem>>, vector<162x4xf32>
    tpu.vector_store %arg12[%c0_10, %c0_11], %6 {strides = array<i32>} : memref<162x4xf32, #tpu.memory_space<vmem>>, vector<162x4xf32>,
    %c0_12 = arith.constant 0 : index
    %c0_13 = arith.constant 0 : index
    %c0_14 = arith.constant 0 : index
    %c0_15 = arith.constant 0 : index
    %8 = vector.load %arg1[%c0_12, %c0_13, %c0_14, %c0_15] : memref<1x16x8x4xf32, #tpu.memory_space<vmem>>, vector<1x1x8x4xf32>
    %9 = vector.shape_cast %8 : vector<1x1x8x4xf32> to vector<8x4xf32>
    %10 = vector.broadcast %0 : vector<1x4xf32> to vector<8x4xf32>
    %11 = arith.mulf %9, %10 : vector<8x4xf32>
    %12 = vector.broadcast %1 : vector<1x4xf32> to vector<8x4xf32>
    %13 = arith.addf %11, %12 : vector<8x4xf32>
    %cst_16 = arith.constant 0.000000e+00 : f32
    %14 = vector.broadcast %cst_16 : f32 to vector<8x4xf32>
    %15 = arith.maximumf %13, %14 : vector<8x4xf32>
    %c10 = arith.constant 10 : index
    %c0_17 = arith.constant 0 : index
    %16 = vector.load %arg11[%c10, %c0_17] : memref<162x4xf32, #tpu.memory_space<vmem>>, vector<8x4xf32>
    tpu.vector_store %arg11[%c10, %c0_17], %15 {strides = array<i32>} : memref<162x4xf32, #tpu.memory_space<vmem>>, vector<8x4xf32>,
    %c0_18 = arith.constant 0 : index
    %c1 = arith.constant 1 : index
    %c0_19 = arith.constant 0 : index
    %c0_20 = arith.constant 0 : index
    %17 = vector.load %arg1[%c0_18, %c1, %c0_19, %c0_20] : memref<1x16x8x4xf32, #tpu.memory_space<vmem>>, vector<1x1x8x4xf32>
    %18 = vector.shape_cast %17 : vector<1x1x8x4xf32> to vector<8x4xf32>
    %19 = vector.broadcast %0 : vector<1x4xf32> to vector<8x4xf32>
    %20 = arith.mulf %18, %19 : vector<8x4xf32>
    %21 = vector.broadcast %1 : vector<1x4xf32> to vector<8x4xf32>
    %22 = arith.addf %20, %21 : vector<8x4xf32>
    %cst_21 = arith.constant 0.000000e+00 : f32
    %23 = vector.broadcast %cst_21 : f32 to vector<8x4xf32>
    %24 = arith.maximumf %22, %23 : vector<8x4xf32>
    %c19 = arith.constant 19 : index
    %c0_22 = arith.constant 0 : index
    %25 = vector.load %arg11[%c19, %c0_22] : memref<162x4xf32, #tpu.memory_space<vmem>>, vector<8x4xf32>
    tpu.vector_store %arg11[%c19, %c0_22], %24 {strides = array<i32>} : memref<162x4xf32, #tpu.memory_space<vmem>>, vector<8x4xf32>,
    %c0_23 = arith.constant 0 : index
    %c2 = arith.constant 2 : index
    %c0_24 = arith.constant 0 : index
    %c0_25 = arith.constant 0 : index
    %26 = vector.load %arg1[%c0_23, %c2, %c0_24, %c0_25] : memref<1x16x8x4xf32, #tpu.memory_space<vmem>>, vector<1x1x8x4xf32>
    %27 = vector.shape_cast %26 : vector<1x1x8x4xf32> to vector<8x4xf32>
    %28 = vector.broadcast %0 : vector<1x4xf32> to vector<8x4xf32>
    %29 = arith.mulf %27, %28 : vector<8x4xf32>
    %30 = vector.broadcast %1 : vector<1x4xf32> to vector<8x4xf32>
    %31 = arith.addf %29, %30 : vector<8x4xf32>
    %cst_26 = arith.constant 0.000000e+00 : f32
    %32 = vector.broadcast %cst_26 : f32 to vector<8x4xf32>
    %33 = arith.maximumf %31, %32 : vector<8x4xf32>
    %c28 = arith.constant 28 : index
    %c0_27 = arith.constant 0 : index
    %34 = vector.load %arg11[%c28, %c0_27] : memref<162x4xf32, #tpu.memory_space<vmem>>, vector<8x4xf32>
    tpu.vector_store %arg11[%c28, %c0_27], %33 {strides = array<i32>} : memref<162x4xf32, #tpu.memory_space<vmem>>, vector<8x4xf32>,
    %c0_28 = arith.constant 0 : index
    %c3 = arith.constant 3 : index
    %c0_29 = arith.constant 0 : index
    %c0_30 = arith.constant 0 : index
    %35 = vector.load %arg1[%c0_28, %c3, %c0_29, %c0_30] : memref<1x16x8x4xf32, #tpu.memory_space<vmem>>, vector<1x1x8x4xf32>
    %36 = vector.shape_cast %35 : vector<1x1x8x4xf32> to vector<8x4xf32>
    %37 = vector.broadcast %0 : vector<1x4xf32> to vector<8x4xf32>
    %38 = arith.mulf %36, %37 : vector<8x4xf32>
    %39 = vector.broadcast %1 : vector<1x4xf32> to vector<8x4xf32>
    %40 = arith.addf %38, %39 : vector<8x4xf32>
    %cst_31 = arith.constant 0.000000e+00 : f32
    %41 = vector.broadcast %cst_31 : f32 to vector<8x4xf32>
    %42 = arith.maximumf %40, %41 : vector<8x4xf32>
    %c37 = arith.constant 37 : index
    %c0_32 = arith.constant 0 : index
    %43 = vector.load %arg11[%c37, %c0_32] : memref<162x4xf32, #tpu.memory_space<vmem>>, vector<8x4xf32>
    tpu.vector_store %arg11[%c37, %c0_32], %42 {strides = array<i32>} : memref<162x4xf32, #tpu.memory_space<vmem>>, vector<8x4xf32>,
    %c0_33 = arith.constant 0 : index
    %c4 = arith.constant 4 : index
    %c0_34 = arith.constant 0 : index
    %c0_35 = arith.constant 0 : index
    %44 = vector.load %arg1[%c0_33, %c4, %c0_34, %c0_35] : memref<1x16x8x4xf32, #tpu.memory_space<vmem>>, vector<1x1x8x4xf32>
    %45 = vector.shape_cast %44 : vector<1x1x8x4xf32> to vector<8x4xf32>
    %46 = vector.broadcast %0 : vector<1x4xf32> to vector<8x4xf32>
    %47 = arith.mulf %45, %46 : vector<8x4xf32>
    %48 = vector.broadcast %1 : vector<1x4xf32> to vector<8x4xf32>
    %49 = arith.addf %47, %48 : vector<8x4xf32>
    %cst_36 = arith.constant 0.000000e+00 : f32
    %50 = vector.broadcast %cst_36 : f32 to vector<8x4xf32>
    %51 = arith.maximumf %49, %50 : vector<8x4xf32>
    %c46 = arith.constant 46 : index
    %c0_37 = arith.constant 0 : index
    %52 = vector.load %arg11[%c46, %c0_37] : memref<162x4xf32, #tpu.memory_space<vmem>>, vector<8x4xf32>
    tpu.vector_store %arg11[%c46, %c0_37], %51 {strides = array<i32>} : memref<162x4xf32, #tpu.memory_space<vmem>>, vector<8x4xf32>,
    %c0_38 = arith.constant 0 : index
    %c5 = arith.constant 5 : index
    %c0_39 = arith.constant 0 : index
    %c0_40 = arith.constant 0 : index
    %53 = vector.load %arg1[%c0_38, %c5, %c0_39, %c0_40] : memref<1x16x8x4xf32, #tpu.memory_space<vmem>>, vector<1x1x8x4xf32>
    %54 = vector.shape_cast %53 : vector<1x1x8x4xf32> to vector<8x4xf32>
    %55 = vector.broadcast %0 : vector<1x4xf32> to vector<8x4xf32>
    %56 = arith.mulf %54, %55 : vector<8x4xf32>
    %57 = vector.broadcast %1 : vector<1x4xf32> to vector<8x4xf32>
    %58 = arith.addf %56, %57 : vector<8x4xf32>
    %cst_41 = arith.constant 0.000000e+00 : f32
    %59 = vector.broadcast %cst_41 : f32 to vector<8x4xf32>
    %60 = arith.maximumf %58, %59 : vector<8x4xf32>
    %c55 = arith.constant 55 : index
    %c0_42 = arith.constant 0 : index
    %61 = vector.load %arg11[%c55, %c0_42] : memref<162x4xf32, #tpu.memory_space<vmem>>, vector<8x4xf32>
    tpu.vector_store %arg11[%c55, %c0_42], %60 {strides = array<i32>} : memref<162x4xf32, #tpu.memory_space<vmem>>, vector<8x4xf32>,
    %c0_43 = arith.constant 0 : index
    %c6 = arith.constant 6 : index
    %c0_44 = arith.constant 0 : index
    %c0_45 = arith.constant 0 : index
    %62 = vector.load %arg1[%c0_43, %c6, %c0_44, %c0_45] : memref<1x16x8x4xf32, #tpu.memory_space<vmem>>, vector<1x1x8x4xf32>
    %63 = vector.shape_cast %62 : vector<1x1x8x4xf32> to vector<8x4xf32>
    %64 = vector.broadcast %0 : vector<1x4xf32> to vector<8x4xf32>
    %65 = arith.mulf %63, %64 : vector<8x4xf32>
    %66 = vector.broadcast %1 : vector<1x4xf32> to vector<8x4xf32>
    %67 = arith.addf %65, %66 : vector<8x4xf32>
    %cst_46 = arith.constant 0.000000e+00 : f32
    %68 = vector.broadcast %cst_46 : f32 to vector<8x4xf32>
    %69 = arith.maximumf %67, %68 : vector<8x4xf32>
    %c64 = arith.constant 64 : index
    %c0_47 = arith.constant 0 : index
    %70 = vector.load %arg11[%c64, %c0_47] : memref<162x4xf32, #tpu.memory_space<vmem>>, vector<8x4xf32>
    tpu.vector_store %arg11[%c64, %c0_47], %69 {strides = array<i32>} : memref<162x4xf32, #tpu.memory_space<vmem>>, vector<8x4xf32>,
    %c0_48 = arith.constant 0 : index
    %c7 = arith.constant 7 : index
    %c0_49 = arith.constant 0 : index
    %c0_50 = arith.constant 0 : index
    %71 = vector.load %arg1[%c0_48, %c7, %c0_49, %c0_50] : memref<1x16x8x4xf32, #tpu.memory_space<vmem>>, vector<1x1x8x4xf32>
    %72 = vector.shape_cast %71 : vector<1x1x8x4xf32> to vector<8x4xf32>
    %73 = vector.broadcast %0 : vector<1x4xf32> to vector<8x4xf32>
    %74 = arith.mulf %72, %73 : vector<8x4xf32>
    %75 = vector.broadcast %1 : vector<1x4xf32> to vector<8x4xf32>
    %76 = arith.addf %74, %75 : vector<8x4xf32>
    %cst_51 = arith.constant 0.000000e+00 : f32
    %77 = vector.broadcast %cst_51 : f32 to vector<8x4xf32>
    %78 = arith.maximumf %76, %77 : vector<8x4xf32>
    %c73 = arith.constant 73 : index
    %c0_52 = arith.constant 0 : index
    %79 = vector.load %arg11[%c73, %c0_52] : memref<162x4xf32, #tpu.memory_space<vmem>>, vector<8x4xf32>
    tpu.vector_store %arg11[%c73, %c0_52], %78 {strides = array<i32>} : memref<162x4xf32, #tpu.memory_space<vmem>>, vector<8x4xf32>,
    %c0_53 = arith.constant 0 : index
    %c8 = arith.constant 8 : index
    %c0_54 = arith.constant 0 : index
    %c0_55 = arith.constant 0 : index
    %80 = vector.load %arg1[%c0_53, %c8, %c0_54, %c0_55] : memref<1x16x8x4xf32, #tpu.memory_space<vmem>>, vector<1x1x8x4xf32>
    %81 = vector.shape_cast %80 : vector<1x1x8x4xf32> to vector<8x4xf32>
    %82 = vector.broadcast %0 : vector<1x4xf32> to vector<8x4xf32>
    %83 = arith.mulf %81, %82 : vector<8x4xf32>
    %84 = vector.broadcast %1 : vector<1x4xf32> to vector<8x4xf32>
    %85 = arith.addf %83, %84 : vector<8x4xf32>
    %cst_56 = arith.constant 0.000000e+00 : f32
    %86 = vector.broadcast %cst_56 : f32 to vector<8x4xf32>
    %87 = arith.maximumf %85, %86 : vector<8x4xf32>
    %c82 = arith.constant 82 : index
    %c0_57 = arith.constant 0 : index
    %88 = vector.load %arg11[%c82, %c0_57] : memref<162x4xf32, #tpu.memory_space<vmem>>, vector<8x4xf32>
    tpu.vector_store %arg11[%c82, %c0_57], %87 {strides = array<i32>} : memref<162x4xf32, #tpu.memory_space<vmem>>, vector<8x4xf32>,
    %c0_58 = arith.constant 0 : index
    %c9 = arith.constant 9 : index
    %c0_59 = arith.constant 0 : index
    %c0_60 = arith.constant 0 : index
    %89 = vector.load %arg1[%c0_58, %c9, %c0_59, %c0_60] : memref<1x16x8x4xf32, #tpu.memory_space<vmem>>, vector<1x1x8x4xf32>
    %90 = vector.shape_cast %89 : vector<1x1x8x4xf32> to vector<8x4xf32>
    %91 = vector.broadcast %0 : vector<1x4xf32> to vector<8x4xf32>
    %92 = arith.mulf %90, %91 : vector<8x4xf32>
    %93 = vector.broadcast %1 : vector<1x4xf32> to vector<8x4xf32>
    %94 = arith.addf %92, %93 : vector<8x4xf32>
    %cst_61 = arith.constant 0.000000e+00 : f32
    %95 = vector.broadcast %cst_61 : f32 to vector<8x4xf32>
    %96 = arith.maximumf %94, %95 : vector<8x4xf32>
    %c91 = arith.constant 91 : index
    %c0_62 = arith.constant 0 : index
    %97 = vector.load %arg11[%c91, %c0_62] : memref<162x4xf32, #tpu.memory_space<vmem>>, vector<8x4xf32>
    tpu.vector_store %arg11[%c91, %c0_62], %96 {strides = array<i32>} : memref<162x4xf32, #tpu.memory_space<vmem>>, vector<8x4xf32>,
    %c0_63 = arith.constant 0 : index
    %c10_64 = arith.constant 10 : index
    %c0_65 = arith.constant 0 : index
    %c0_66 = arith.constant 0 : index
    %98 = vector.load %arg1[%c0_63, %c10_64, %c0_65, %c0_66] : memref<1x16x8x4xf32, #tpu.memory_space<vmem>>, vector<1x1x8x4xf32>
    %99 = vector.shape_cast %98 : vector<1x1x8x4xf32> to vector<8x4xf32>
    %100 = vector.broadcast %0 : vector<1x4xf32> to vector<8x4xf32>
    %101 = arith.mulf %99, %100 : vector<8x4xf32>
    %102 = vector.broadcast %1 : vector<1x4xf32> to vector<8x4xf32>
    %103 = arith.addf %101, %102 : vector<8x4xf32>
    %cst_67 = arith.constant 0.000000e+00 : f32
    %104 = vector.broadcast %cst_67 : f32 to vector<8x4xf32>
    %105 = arith.maximumf %103, %104 : vector<8x4xf32>
    %c100 = arith.constant 100 : index
    %c0_68 = arith.constant 0 : index
    %106 = vector.load %arg11[%c100, %c0_68] : memref<162x4xf32, #tpu.memory_space<vmem>>, vector<8x4xf32>
    tpu.vector_store %arg11[%c100, %c0_68], %105 {strides = array<i32>} : memref<162x4xf32, #tpu.memory_space<vmem>>, vector<8x4xf32>,
    %c0_69 = arith.constant 0 : index
    %c11 = arith.constant 11 : index
    %c0_70 = arith.constant 0 : index
    %c0_71 = arith.constant 0 : index
    %107 = vector.load %arg1[%c0_69, %c11, %c0_70, %c0_71] : memref<1x16x8x4xf32, #tpu.memory_space<vmem>>, vector<1x1x8x4xf32>
    %108 = vector.shape_cast %107 : vector<1x1x8x4xf32> to vector<8x4xf32>
    %109 = vector.broadcast %0 : vector<1x4xf32> to vector<8x4xf32>
    %110 = arith.mulf %108, %109 : vector<8x4xf32>
    %111 = vector.broadcast %1 : vector<1x4xf32> to vector<8x4xf32>
    %112 = arith.addf %110, %111 : vector<8x4xf32>
    %cst_72 = arith.constant 0.000000e+00 : f32
    %113 = vector.broadcast %cst_72 : f32 to vector<8x4xf32>
    %114 = arith.maximumf %112, %113 : vector<8x4xf32>
    %c109 = arith.constant 109 : index
    %c0_73 = arith.constant 0 : index
    %115 = vector.load %arg11[%c109, %c0_73] : memref<162x4xf32, #tpu.memory_space<vmem>>, vector<8x4xf32>
    tpu.vector_store %arg11[%c109, %c0_73], %114 {strides = array<i32>} : memref<162x4xf32, #tpu.memory_space<vmem>>, vector<8x4xf32>,
    %c0_74 = arith.constant 0 : index
    %c12 = arith.constant 12 : index
    %c0_75 = arith.constant 0 : index
    %c0_76 = arith.constant 0 : index
    %116 = vector.load %arg1[%c0_74, %c12, %c0_75, %c0_76] : memref<1x16x8x4xf32, #tpu.memory_space<vmem>>, vector<1x1x8x4xf32>
    %117 = vector.shape_cast %116 : vector<1x1x8x4xf32> to vector<8x4xf32>
    %118 = vector.broadcast %0 : vector<1x4xf32> to vector<8x4xf32>
    %119 = arith.mulf %117, %118 : vector<8x4xf32>
    %120 = vector.broadcast %1 : vector<1x4xf32> to vector<8x4xf32>
    %121 = arith.addf %119, %120 : vector<8x4xf32>
    %cst_77 = arith.constant 0.000000e+00 : f32
    %122 = vector.broadcast %cst_77 : f32 to vector<8x4xf32>
    %123 = arith.maximumf %121, %122 : vector<8x4xf32>
    %c118 = arith.constant 118 : index
    %c0_78 = arith.constant 0 : index
    %124 = vector.load %arg11[%c118, %c0_78] : memref<162x4xf32, #tpu.memory_space<vmem>>, vector<8x4xf32>
    tpu.vector_store %arg11[%c118, %c0_78], %123 {strides = array<i32>} : memref<162x4xf32, #tpu.memory_space<vmem>>, vector<8x4xf32>,
    %c0_79 = arith.constant 0 : index
    %c13 = arith.constant 13 : index
    %c0_80 = arith.constant 0 : index
    %c0_81 = arith.constant 0 : index
    %125 = vector.load %arg1[%c0_79, %c13, %c0_80, %c0_81] : memref<1x16x8x4xf32, #tpu.memory_space<vmem>>, vector<1x1x8x4xf32>
    %126 = vector.shape_cast %125 : vector<1x1x8x4xf32> to vector<8x4xf32>
    %127 = vector.broadcast %0 : vector<1x4xf32> to vector<8x4xf32>
    %128 = arith.mulf %126, %127 : vector<8x4xf32>
    %129 = vector.broadcast %1 : vector<1x4xf32> to vector<8x4xf32>
    %130 = arith.addf %128, %129 : vector<8x4xf32>
    %cst_82 = arith.constant 0.000000e+00 : f32
    %131 = vector.broadcast %cst_82 : f32 to vector<8x4xf32>
    %132 = arith.maximumf %130, %131 : vector<8x4xf32>
    %c127 = arith.constant 127 : index
    %c0_83 = arith.constant 0 : index
    %133 = vector.load %arg11[%c127, %c0_83] : memref<162x4xf32, #tpu.memory_space<vmem>>, vector<8x4xf32>
    tpu.vector_store %arg11[%c127, %c0_83], %132 {strides = array<i32>} : memref<162x4xf32, #tpu.memory_space<vmem>>, vector<8x4xf32>,
    %c0_84 = arith.constant 0 : index
    %c14 = arith.constant 14 : index
    %c0_85 = arith.constant 0 : index
    %c0_86 = arith.constant 0 : index
    %134 = vector.load %arg1[%c0_84, %c14, %c0_85, %c0_86] : memref<1x16x8x4xf32, #tpu.memory_space<vmem>>, vector<1x1x8x4xf32>
    %135 = vector.shape_cast %134 : vector<1x1x8x4xf32> to vector<8x4xf32>
    %136 = vector.broadcast %0 : vector<1x4xf32> to vector<8x4xf32>
    %137 = arith.mulf %135, %136 : vector<8x4xf32>
    %138 = vector.broadcast %1 : vector<1x4xf32> to vector<8x4xf32>
    %139 = arith.addf %137, %138 : vector<8x4xf32>
    %cst_87 = arith.constant 0.000000e+00 : f32
    %140 = vector.broadcast %cst_87 : f32 to vector<8x4xf32>
    %141 = arith.maximumf %139, %140 : vector<8x4xf32>
    %c136 = arith.constant 136 : index
    %c0_88 = arith.constant 0 : index
    %142 = vector.load %arg11[%c136, %c0_88] : memref<162x4xf32, #tpu.memory_space<vmem>>, vector<8x4xf32>
    tpu.vector_store %arg11[%c136, %c0_88], %141 {strides = array<i32>} : memref<162x4xf32, #tpu.memory_space<vmem>>, vector<8x4xf32>,
    %c0_89 = arith.constant 0 : index
    %c15 = arith.constant 15 : index
    %c0_90 = arith.constant 0 : index
    %c0_91 = arith.constant 0 : index
    %143 = vector.load %arg1[%c0_89, %c15, %c0_90, %c0_91] : memref<1x16x8x4xf32, #tpu.memory_space<vmem>>, vector<1x1x8x4xf32>
    %144 = vector.shape_cast %143 : vector<1x1x8x4xf32> to vector<8x4xf32>
    %145 = vector.broadcast %0 : vector<1x4xf32> to vector<8x4xf32>
    %146 = arith.mulf %144, %145 : vector<8x4xf32>
    %147 = vector.broadcast %1 : vector<1x4xf32> to vector<8x4xf32>
    %148 = arith.addf %146, %147 : vector<8x4xf32>
    %cst_92 = arith.constant 0.000000e+00 : f32
    %149 = vector.broadcast %cst_92 : f32 to vector<8x4xf32>
    %150 = arith.maximumf %148, %149 : vector<8x4xf32>
    %c145 = arith.constant 145 : index
    %c0_93 = arith.constant 0 : index
    %151 = vector.load %arg11[%c145, %c0_93] : memref<162x4xf32, #tpu.memory_space<vmem>>, vector<8x4xf32>
    tpu.vector_store %arg11[%c145, %c0_93], %150 {strides = array<i32>} : memref<162x4xf32, #tpu.memory_space<vmem>>, vector<8x4xf32>,
    %c0_94 = arith.constant 0 : index
    %c0_95 = arith.constant 0 : index
    %c0_96 = arith.constant 0 : index
    %c0_97 = arith.constant 0 : index
    %152 = vector.load %arg2[%c0_94, %c0_95, %c0_96, %c0_97] : memref<1x16x8x4xf32, #tpu.memory_space<vmem>>, vector<1x1x8x4xf32>
    %153 = vector.shape_cast %152 : vector<1x1x8x4xf32> to vector<8x4xf32>
    %154 = vector.broadcast %0 : vector<1x4xf32> to vector<8x4xf32>
    %155 = arith.mulf %153, %154 : vector<8x4xf32>
    %156 = vector.broadcast %1 : vector<1x4xf32> to vector<8x4xf32>
    %157 = arith.addf %155, %156 : vector<8x4xf32>
    %cst_98 = arith.constant 0.000000e+00 : f32
    %158 = vector.broadcast %cst_98 : f32 to vector<8x4xf32>
    %159 = arith.maximumf %157, %158 : vector<8x4xf32>
    %c9_99 = arith.constant 9 : index
    %c0_100 = arith.constant 0 : index
    %160 = vector.load %arg12[%c9_99, %c0_100] : memref<162x4xf32, #tpu.memory_space<vmem>>, vector<8x4xf32>
    tpu.vector_store %arg12[%c9_99, %c0_100], %159 {strides = array<i32>} : memref<162x4xf32, #tpu.memory_space<vmem>>, vector<8x4xf32>,
    %c0_101 = arith.constant 0 : index
    %c1_102 = arith.constant 1 : index
    %c0_103 = arith.constant 0 : index
    %c0_104 = arith.constant 0 : index
    %161 = vector.load %arg2[%c0_101, %c1_102, %c0_103, %c0_104] : memref<1x16x8x4xf32, #tpu.memory_space<vmem>>, vector<1x1x8x4xf32>
    %162 = vector.shape_cast %161 : vector<1x1x8x4xf32> to vector<8x4xf32>
    %163 = vector.broadcast %0 : vector<1x4xf32> to vector<8x4xf32>
    %164 = arith.mulf %162, %163 : vector<8x4xf32>
    %165 = vector.broadcast %1 : vector<1x4xf32> to vector<8x4xf32>
    %166 = arith.addf %164, %165 : vector<8x4xf32>
    %cst_105 = arith.constant 0.000000e+00 : f32
    %167 = vector.broadcast %cst_105 : f32 to vector<8x4xf32>
    %168 = arith.maximumf %166, %167 : vector<8x4xf32>
    %c18 = arith.constant 18 : index
    %c0_106 = arith.constant 0 : index
    %169 = vector.load %arg12[%c18, %c0_106] : memref<162x4xf32, #tpu.memory_space<vmem>>, vector<8x4xf32>
    tpu.vector_store %arg12[%c18, %c0_106], %168 {strides = array<i32>} : memref<162x4xf32, #tpu.memory_space<vmem>>, vector<8x4xf32>,
    %c0_107 = arith.constant 0 : index
    %c2_108 = arith.constant 2 : index
    %c0_109 = arith.constant 0 : index
    %c0_110 = arith.constant 0 : index
    %170 = vector.load %arg2[%c0_107, %c2_108, %c0_109, %c0_110] : memref<1x16x8x4xf32, #tpu.memory_space<vmem>>, vector<1x1x8x4xf32>
    %171 = vector.shape_cast %170 : vector<1x1x8x4xf32> to vector<8x4xf32>
    %172 = vector.broadcast %0 : vector<1x4xf32> to vector<8x4xf32>
    %173 = arith.mulf %171, %172 : vector<8x4xf32>
    %174 = vector.broadcast %1 : vector<1x4xf32> to vector<8x4xf32>
    %175 = arith.addf %173, %174 : vector<8x4xf32>
    %cst_111 = arith.constant 0.000000e+00 : f32
    %176 = vector.broadcast %cst_111 : f32 to vector<8x4xf32>
    %177 = arith.maximumf %175, %176 : vector<8x4xf32>
    %c27 = arith.constant 27 : index
    %c0_112 = arith.constant 0 : index
    %178 = vector.load %arg12[%c27, %c0_112] : memref<162x4xf32, #tpu.memory_space<vmem>>, vector<8x4xf32>
    tpu.vector_store %arg12[%c27, %c0_112], %177 {strides = array<i32>} : memref<162x4xf32, #tpu.memory_space<vmem>>, vector<8x4xf32>,
    %c0_113 = arith.constant 0 : index
    %c3_114 = arith.constant 3 : index
    %c0_115 = arith.constant 0 : index
    %c0_116 = arith.constant 0 : index
    %179 = vector.load %arg2[%c0_113, %c3_114, %c0_115, %c0_116] : memref<1x16x8x4xf32, #tpu.memory_space<vmem>>, vector<1x1x8x4xf32>
    %180 = vector.shape_cast %179 : vector<1x1x8x4xf32> to vector<8x4xf32>
    %181 = vector.broadcast %0 : vector<1x4xf32> to vector<8x4xf32>
    %182 = arith.mulf %180, %181 : vector<8x4xf32>
    %183 = vector.broadcast %1 : vector<1x4xf32> to vector<8x4xf32>
    %184 = arith.addf %182, %183 : vector<8x4xf32>
    %cst_117 = arith.constant 0.000000e+00 : f32
    %185 = vector.broadcast %cst_117 : f32 to vector<8x4xf32>
    %186 = arith.maximumf %184, %185 : vector<8x4xf32>
    %c36 = arith.constant 36 : index
    %c0_118 = arith.constant 0 : index
    %187 = vector.load %arg12[%c36, %c0_118] : memref<162x4xf32, #tpu.memory_space<vmem>>, vector<8x4xf32>
    tpu.vector_store %arg12[%c36, %c0_118], %186 {strides = array<i32>} : memref<162x4xf32, #tpu.memory_space<vmem>>, vector<8x4xf32>,
    %c0_119 = arith.constant 0 : index
    %c4_120 = arith.constant 4 : index
    %c0_121 = arith.constant 0 : index
    %c0_122 = arith.constant 0 : index
    %188 = vector.load %arg2[%c0_119, %c4_120, %c0_121, %c0_122] : memref<1x16x8x4xf32, #tpu.memory_space<vmem>>, vector<1x1x8x4xf32>
    %189 = vector.shape_cast %188 : vector<1x1x8x4xf32> to vector<8x4xf32>
    %190 = vector.broadcast %0 : vector<1x4xf32> to vector<8x4xf32>
    %191 = arith.mulf %189, %190 : vector<8x4xf32>
    %192 = vector.broadcast %1 : vector<1x4xf32> to vector<8x4xf32>
    %193 = arith.addf %191, %192 : vector<8x4xf32>
    %cst_123 = arith.constant 0.000000e+00 : f32
    %194 = vector.broadcast %cst_123 : f32 to vector<8x4xf32>
    %195 = arith.maximumf %193, %194 : vector<8x4xf32>
    %c45 = arith.constant 45 : index
    %c0_124 = arith.constant 0 : index
    %196 = vector.load %arg12[%c45, %c0_124] : memref<162x4xf32, #tpu.memory_space<vmem>>, vector<8x4xf32>
    tpu.vector_store %arg12[%c45, %c0_124], %195 {strides = array<i32>} : memref<162x4xf32, #tpu.memory_space<vmem>>, vector<8x4xf32>,
    %c0_125 = arith.constant 0 : index
    %c5_126 = arith.constant 5 : index
    %c0_127 = arith.constant 0 : index
    %c0_128 = arith.constant 0 : index
    %197 = vector.load %arg2[%c0_125, %c5_126, %c0_127, %c0_128] : memref<1x16x8x4xf32, #tpu.memory_space<vmem>>, vector<1x1x8x4xf32>
    %198 = vector.shape_cast %197 : vector<1x1x8x4xf32> to vector<8x4xf32>
    %199 = vector.broadcast %0 : vector<1x4xf32> to vector<8x4xf32>
    %200 = arith.mulf %198, %199 : vector<8x4xf32>
    %201 = vector.broadcast %1 : vector<1x4xf32> to vector<8x4xf32>
    %202 = arith.addf %200, %201 : vector<8x4xf32>
    %cst_129 = arith.constant 0.000000e+00 : f32
    %203 = vector.broadcast %cst_129 : f32 to vector<8x4xf32>
    %204 = arith.maximumf %202, %203 : vector<8x4xf32>
    %c54 = arith.constant 54 : index
    %c0_130 = arith.constant 0 : index
    %205 = vector.load %arg12[%c54, %c0_130] : memref<162x4xf32, #tpu.memory_space<vmem>>, vector<8x4xf32>
    tpu.vector_store %arg12[%c54, %c0_130], %204 {strides = array<i32>} : memref<162x4xf32, #tpu.memory_space<vmem>>, vector<8x4xf32>,
    %c0_131 = arith.constant 0 : index
    %c6_132 = arith.constant 6 : index
    %c0_133 = arith.constant 0 : index
    %c0_134 = arith.constant 0 : index
    %206 = vector.load %arg2[%c0_131, %c6_132, %c0_133, %c0_134] : memref<1x16x8x4xf32, #tpu.memory_space<vmem>>, vector<1x1x8x4xf32>
    %207 = vector.shape_cast %206 : vector<1x1x8x4xf32> to vector<8x4xf32>
    %208 = vector.broadcast %0 : vector<1x4xf32> to vector<8x4xf32>
    %209 = arith.mulf %207, %208 : vector<8x4xf32>
    %210 = vector.broadcast %1 : vector<1x4xf32> to vector<8x4xf32>
    %211 = arith.addf %209, %210 : vector<8x4xf32>
    %cst_135 = arith.constant 0.000000e+00 : f32
    %212 = vector.broadcast %cst_135 : f32 to vector<8x4xf32>
    %213 = arith.maximumf %211, %212 : vector<8x4xf32>
    %c63 = arith.constant 63 : index
    %c0_136 = arith.constant 0 : index
    %214 = vector.load %arg12[%c63, %c0_136] : memref<162x4xf32, #tpu.memory_space<vmem>>, vector<8x4xf32>
    tpu.vector_store %arg12[%c63, %c0_136], %213 {strides = array<i32>} : memref<162x4xf32, #tpu.memory_space<vmem>>, vector<8x4xf32>,
    %c0_137 = arith.constant 0 : index
    %c7_138 = arith.constant 7 : index
    %c0_139 = arith.constant 0 : index
    %c0_140 = arith.constant 0 : index
    %215 = vector.load %arg2[%c0_137, %c7_138, %c0_139, %c0_140] : memref<1x16x8x4xf32, #tpu.memory_space<vmem>>, vector<1x1x8x4xf32>
    %216 = vector.shape_cast %215 : vector<1x1x8x4xf32> to vector<8x4xf32>
    %217 = vector.broadcast %0 : vector<1x4xf32> to vector<8x4xf32>
    %218 = arith.mulf %216, %217 : vector<8x4xf32>
    %219 = vector.broadcast %1 : vector<1x4xf32> to vector<8x4xf32>
    %220 = arith.addf %218, %219 : vector<8x4xf32>
    %cst_141 = arith.constant 0.000000e+00 : f32
    %221 = vector.broadcast %cst_141 : f32 to vector<8x4xf32>
    %222 = arith.maximumf %220, %221 : vector<8x4xf32>
    %c72 = arith.constant 72 : index
    %c0_142 = arith.constant 0 : index
    %223 = vector.load %arg12[%c72, %c0_142] : memref<162x4xf32, #tpu.memory_space<vmem>>, vector<8x4xf32>
    tpu.vector_store %arg12[%c72, %c0_142], %222 {strides = array<i32>} : memref<162x4xf32, #tpu.memory_space<vmem>>, vector<8x4xf32>,
    %c0_143 = arith.constant 0 : index
    %c8_144 = arith.constant 8 : index
    %c0_145 = arith.constant 0 : index
    %c0_146 = arith.constant 0 : index
    %224 = vector.load %arg2[%c0_143, %c8_144, %c0_145, %c0_146] : memref<1x16x8x4xf32, #tpu.memory_space<vmem>>, vector<1x1x8x4xf32>
    %225 = vector.shape_cast %224 : vector<1x1x8x4xf32> to vector<8x4xf32>
    %226 = vector.broadcast %0 : vector<1x4xf32> to vector<8x4xf32>
    %227 = arith.mulf %225, %226 : vector<8x4xf32>
    %228 = vector.broadcast %1 : vector<1x4xf32> to vector<8x4xf32>
    %229 = arith.addf %227, %228 : vector<8x4xf32>
    %cst_147 = arith.constant 0.000000e+00 : f32
    %230 = vector.broadcast %cst_147 : f32 to vector<8x4xf32>
    %231 = arith.maximumf %229, %230 : vector<8x4xf32>
    %c81 = arith.constant 81 : index
    %c0_148 = arith.constant 0 : index
    %232 = vector.load %arg12[%c81, %c0_148] : memref<162x4xf32, #tpu.memory_space<vmem>>, vector<8x4xf32>
    tpu.vector_store %arg12[%c81, %c0_148], %231 {strides = array<i32>} : memref<162x4xf32, #tpu.memory_space<vmem>>, vector<8x4xf32>,
    %c0_149 = arith.constant 0 : index
    %c9_150 = arith.constant 9 : index
    %c0_151 = arith.constant 0 : index
    %c0_152 = arith.constant 0 : index
    %233 = vector.load %arg2[%c0_149, %c9_150, %c0_151, %c0_152] : memref<1x16x8x4xf32, #tpu.memory_space<vmem>>, vector<1x1x8x4xf32>
    %234 = vector.shape_cast %233 : vector<1x1x8x4xf32> to vector<8x4xf32>
    %235 = vector.broadcast %0 : vector<1x4xf32> to vector<8x4xf32>
    %236 = arith.mulf %234, %235 : vector<8x4xf32>
    %237 = vector.broadcast %1 : vector<1x4xf32> to vector<8x4xf32>
    %238 = arith.addf %236, %237 : vector<8x4xf32>
    %cst_153 = arith.constant 0.000000e+00 : f32
    %239 = vector.broadcast %cst_153 : f32 to vector<8x4xf32>
    %240 = arith.maximumf %238, %239 : vector<8x4xf32>
    %c90 = arith.constant 90 : index
    %c0_154 = arith.constant 0 : index
    %241 = vector.load %arg12[%c90, %c0_154] : memref<162x4xf32, #tpu.memory_space<vmem>>, vector<8x4xf32>
    tpu.vector_store %arg12[%c90, %c0_154], %240 {strides = array<i32>} : memref<162x4xf32, #tpu.memory_space<vmem>>, vector<8x4xf32>,
    %c0_155 = arith.constant 0 : index
    %c10_156 = arith.constant 10 : index
    %c0_157 = arith.constant 0 : index
    %c0_158 = arith.constant 0 : index
    %242 = vector.load %arg2[%c0_155, %c10_156, %c0_157, %c0_158] : memref<1x16x8x4xf32, #tpu.memory_space<vmem>>, vector<1x1x8x4xf32>
    %243 = vector.shape_cast %242 : vector<1x1x8x4xf32> to vector<8x4xf32>
    %244 = vector.broadcast %0 : vector<1x4xf32> to vector<8x4xf32>
    %245 = arith.mulf %243, %244 : vector<8x4xf32>
    %246 = vector.broadcast %1 : vector<1x4xf32> to vector<8x4xf32>
    %247 = arith.addf %245, %246 : vector<8x4xf32>
    %cst_159 = arith.constant 0.000000e+00 : f32
    %248 = vector.broadcast %cst_159 : f32 to vector<8x4xf32>
    %249 = arith.maximumf %247, %248 : vector<8x4xf32>
    %c99 = arith.constant 99 : index
    %c0_160 = arith.constant 0 : index
    %250 = vector.load %arg12[%c99, %c0_160] : memref<162x4xf32, #tpu.memory_space<vmem>>, vector<8x4xf32>
    tpu.vector_store %arg12[%c99, %c0_160], %249 {strides = array<i32>} : memref<162x4xf32, #tpu.memory_space<vmem>>, vector<8x4xf32>,
    %c0_161 = arith.constant 0 : index
    %c11_162 = arith.constant 11 : index
    %c0_163 = arith.constant 0 : index
    %c0_164 = arith.constant 0 : index
    %251 = vector.load %arg2[%c0_161, %c11_162, %c0_163, %c0_164] : memref<1x16x8x4xf32, #tpu.memory_space<vmem>>, vector<1x1x8x4xf32>
    %252 = vector.shape_cast %251 : vector<1x1x8x4xf32> to vector<8x4xf32>
    %253 = vector.broadcast %0 : vector<1x4xf32> to vector<8x4xf32>
    %254 = arith.mulf %252, %253 : vector<8x4xf32>
    %255 = vector.broadcast %1 : vector<1x4xf32> to vector<8x4xf32>
    %256 = arith.addf %254, %255 : vector<8x4xf32>
    %cst_165 = arith.constant 0.000000e+00 : f32
    %257 = vector.broadcast %cst_165 : f32 to vector<8x4xf32>
    %258 = arith.maximumf %256, %257 : vector<8x4xf32>
    %c108 = arith.constant 108 : index
    %c0_166 = arith.constant 0 : index
    %259 = vector.load %arg12[%c108, %c0_166] : memref<162x4xf32, #tpu.memory_space<vmem>>, vector<8x4xf32>
    tpu.vector_store %arg12[%c108, %c0_166], %258 {strides = array<i32>} : memref<162x4xf32, #tpu.memory_space<vmem>>, vector<8x4xf32>,
    %c0_167 = arith.constant 0 : index
    %c12_168 = arith.constant 12 : index
    %c0_169 = arith.constant 0 : index
    %c0_170 = arith.constant 0 : index
    %260 = vector.load %arg2[%c0_167, %c12_168, %c0_169, %c0_170] : memref<1x16x8x4xf32, #tpu.memory_space<vmem>>, vector<1x1x8x4xf32>
    %261 = vector.shape_cast %260 : vector<1x1x8x4xf32> to vector<8x4xf32>
    %262 = vector.broadcast %0 : vector<1x4xf32> to vector<8x4xf32>
    %263 = arith.mulf %261, %262 : vector<8x4xf32>
    %264 = vector.broadcast %1 : vector<1x4xf32> to vector<8x4xf32>
    %265 = arith.addf %263, %264 : vector<8x4xf32>
    %cst_171 = arith.constant 0.000000e+00 : f32
    %266 = vector.broadcast %cst_171 : f32 to vector<8x4xf32>
    %267 = arith.maximumf %265, %266 : vector<8x4xf32>
    %c117 = arith.constant 117 : index
    %c0_172 = arith.constant 0 : index
    %268 = vector.load %arg12[%c117, %c0_172] : memref<162x4xf32, #tpu.memory_space<vmem>>, vector<8x4xf32>
    tpu.vector_store %arg12[%c117, %c0_172], %267 {strides = array<i32>} : memref<162x4xf32, #tpu.memory_space<vmem>>, vector<8x4xf32>,
    %c0_173 = arith.constant 0 : index
    %c13_174 = arith.constant 13 : index
    %c0_175 = arith.constant 0 : index
    %c0_176 = arith.constant 0 : index
    %269 = vector.load %arg2[%c0_173, %c13_174, %c0_175, %c0_176] : memref<1x16x8x4xf32, #tpu.memory_space<vmem>>, vector<1x1x8x4xf32>
    %270 = vector.shape_cast %269 : vector<1x1x8x4xf32> to vector<8x4xf32>
    %271 = vector.broadcast %0 : vector<1x4xf32> to vector<8x4xf32>
    %272 = arith.mulf %270, %271 : vector<8x4xf32>
    %273 = vector.broadcast %1 : vector<1x4xf32> to vector<8x4xf32>
    %274 = arith.addf %272, %273 : vector<8x4xf32>
    %cst_177 = arith.constant 0.000000e+00 : f32
    %275 = vector.broadcast %cst_177 : f32 to vector<8x4xf32>
    %276 = arith.maximumf %274, %275 : vector<8x4xf32>
    %c126 = arith.constant 126 : index
    %c0_178 = arith.constant 0 : index
    %277 = vector.load %arg12[%c126, %c0_178] : memref<162x4xf32, #tpu.memory_space<vmem>>, vector<8x4xf32>
    tpu.vector_store %arg12[%c126, %c0_178], %276 {strides = array<i32>} : memref<162x4xf32, #tpu.memory_space<vmem>>, vector<8x4xf32>,
    %c0_179 = arith.constant 0 : index
    %c14_180 = arith.constant 14 : index
    %c0_181 = arith.constant 0 : index
    %c0_182 = arith.constant 0 : index
    %278 = vector.load %arg2[%c0_179, %c14_180, %c0_181, %c0_182] : memref<1x16x8x4xf32, #tpu.memory_space<vmem>>, vector<1x1x8x4xf32>
    %279 = vector.shape_cast %278 : vector<1x1x8x4xf32> to vector<8x4xf32>
    %280 = vector.broadcast %0 : vector<1x4xf32> to vector<8x4xf32>
    %281 = arith.mulf %279, %280 : vector<8x4xf32>
    %282 = vector.broadcast %1 : vector<1x4xf32> to vector<8x4xf32>
    %283 = arith.addf %281, %282 : vector<8x4xf32>
    %cst_183 = arith.constant 0.000000e+00 : f32
    %284 = vector.broadcast %cst_183 : f32 to vector<8x4xf32>
    %285 = arith.maximumf %283, %284 : vector<8x4xf32>
    %c135 = arith.constant 135 : index
    %c0_184 = arith.constant 0 : index
    %286 = vector.load %arg12[%c135, %c0_184] : memref<162x4xf32, #tpu.memory_space<vmem>>, vector<8x4xf32>
    tpu.vector_store %arg12[%c135, %c0_184], %285 {strides = array<i32>} : memref<162x4xf32, #tpu.memory_space<vmem>>, vector<8x4xf32>,
    %c0_185 = arith.constant 0 : index
    %c15_186 = arith.constant 15 : index
    %c0_187 = arith.constant 0 : index
    %c0_188 = arith.constant 0 : index
    %287 = vector.load %arg2[%c0_185, %c15_186, %c0_187, %c0_188] : memref<1x16x8x4xf32, #tpu.memory_space<vmem>>, vector<1x1x8x4xf32>
    %288 = vector.shape_cast %287 : vector<1x1x8x4xf32> to vector<8x4xf32>
    %289 = vector.broadcast %0 : vector<1x4xf32> to vector<8x4xf32>
    %290 = arith.mulf %288, %289 : vector<8x4xf32>
    %291 = vector.broadcast %1 : vector<1x4xf32> to vector<8x4xf32>
    %292 = arith.addf %290, %291 : vector<8x4xf32>
    %cst_189 = arith.constant 0.000000e+00 : f32
    %293 = vector.broadcast %cst_189 : f32 to vector<8x4xf32>
    %294 = arith.maximumf %292, %293 : vector<8x4xf32>
    %c144 = arith.constant 144 : index
    %c0_190 = arith.constant 0 : index
    %295 = vector.load %arg12[%c144, %c0_190] : memref<162x4xf32, #tpu.memory_space<vmem>>, vector<8x4xf32>
    tpu.vector_store %arg12[%c144, %c0_190], %294 {strides = array<i32>} : memref<162x4xf32, #tpu.memory_space<vmem>>, vector<8x4xf32>,
    %cst_191 = arith.constant 0.000000e+00 : f32
    %296 = vector.broadcast %cst_191 : f32 to vector<134x8xf32>
    %c0_192 = arith.constant 0 : index
    %c0_193 = arith.constant 0 : index
    %297 = vector.load %arg14[%c0_192, %c0_193] : memref<134x8xf32, #tpu.memory_space<vmem>>, vector<134x8xf32>
    tpu.vector_store %arg14[%c0_192, %c0_193], %296 {strides = array<i32>} : memref<134x8xf32, #tpu.memory_space<vmem>>, vector<134x8xf32>,
    %c0_194 = arith.constant 0 : index
    %c0_195 = arith.constant 0 : index
    %298 = vector.load %arg11[%c0_194, %c0_195] : memref<162x4xf32, #tpu.memory_space<vmem>>, vector<134x4xf32>
    %299 = arith.truncf %298 : vector<134x4xf32> to vector<134x4xbf16>
    %c0_196 = arith.constant 0 : index
    %c0_197 = arith.constant 0 : index
    %300 = vector.load %arg14[%c0_196, %c0_197] : memref<134x8xf32, #tpu.memory_space<vmem>>, vector<134x8xf32>
    %c0_198 = arith.constant 0 : index
    %c0_199 = arith.constant 0 : index
    %c0_200 = arith.constant 0 : index
    %301 = vector.load %arg5[%c0_198, %c0_199, %c0_200] : memref<9x4x8xbf16, #tpu.memory_space<vmem>>, vector<1x4x8xbf16>
    %302 = vector.shape_cast %301 : vector<1x4x8xbf16> to vector<4x8xbf16>
    %cst_201 = arith.constant dense<0.000000e+00> : vector<134x8xf32>
    %303 = tpu.matmul %299, %302, %cst_201 {dimension_numbers = #tpu.dot_dimension_numbers<[1], [0], [0], [1], [0, 0, 1, 1], [], []>} : vector<134x4xbf16>, vector<4x8xbf16>, vector<134x8xf32> -> vector<134x8xf32>
    %304 = arith.addf %300, %303 : vector<134x8xf32>
    %c0_202 = arith.constant 0 : index
    %c0_203 = arith.constant 0 : index
    %305 = vector.load %arg14[%c0_202, %c0_203] : memref<134x8xf32, #tpu.memory_space<vmem>>, vector<134x8xf32>
    tpu.vector_store %arg14[%c0_202, %c0_203], %304 {strides = array<i32>} : memref<134x8xf32, #tpu.memory_space<vmem>>, vector<134x8xf32>,
    %c0_204 = arith.constant 0 : index
    %c0_205 = arith.constant 0 : index
    %306 = vector.load %arg12[%c0_204, %c0_205] : memref<162x4xf32, #tpu.memory_space<vmem>>, vector<134x4xf32>
    %307 = arith.truncf %306 : vector<134x4xf32> to vector<134x4xbf16>
    %c0_206 = arith.constant 0 : index
    %c0_207 = arith.constant 0 : index
    %308 = vector.load %arg14[%c0_206, %c0_207] : memref<134x8xf32, #tpu.memory_space<vmem>>, vector<134x8xf32>
    %c1_208 = arith.constant 1 : index
    %c0_209 = arith.constant 0 : index
    %c0_210 = arith.constant 0 : index
    %309 = vector.load %arg5[%c1_208, %c0_209, %c0_210] : memref<9x4x8xbf16, #tpu.memory_space<vmem>>, vector<1x4x8xbf16>
    %310 = vector.shape_cast %309 : vector<1x4x8xbf16> to vector<4x8xbf16>
    %cst_211 = arith.constant dense<0.000000e+00> : vector<134x8xf32>
    %311 = tpu.matmul %307, %310, %cst_211 {dimension_numbers = #tpu.dot_dimension_numbers<[1], [0], [0], [1], [0, 0, 1, 1], [], []>} : vector<134x4xbf16>, vector<4x8xbf16>, vector<134x8xf32> -> vector<134x8xf32>
    %312 = arith.addf %308, %311 : vector<134x8xf32>
    %c0_212 = arith.constant 0 : index
    %c0_213 = arith.constant 0 : index
    %313 = vector.load %arg14[%c0_212, %c0_213] : memref<134x8xf32, #tpu.memory_space<vmem>>, vector<134x8xf32>
    tpu.vector_store %arg14[%c0_212, %c0_213], %312 {strides = array<i32>} : memref<134x8xf32, #tpu.memory_space<vmem>>, vector<134x8xf32>,
    %c1_214 = arith.constant 1 : index
    %c0_215 = arith.constant 0 : index
    %314 = vector.load %arg11[%c1_214, %c0_215] : memref<162x4xf32, #tpu.memory_space<vmem>>, vector<134x4xf32>
    %315 = arith.truncf %314 : vector<134x4xf32> to vector<134x4xbf16>
    %c0_216 = arith.constant 0 : index
    %c0_217 = arith.constant 0 : index
    %316 = vector.load %arg14[%c0_216, %c0_217] : memref<134x8xf32, #tpu.memory_space<vmem>>, vector<134x8xf32>
    %c2_218 = arith.constant 2 : index
    %c0_219 = arith.constant 0 : index
    %c0_220 = arith.constant 0 : index
    %317 = vector.load %arg5[%c2_218, %c0_219, %c0_220] : memref<9x4x8xbf16, #tpu.memory_space<vmem>>, vector<1x4x8xbf16>
    %318 = vector.shape_cast %317 : vector<1x4x8xbf16> to vector<4x8xbf16>
    %cst_221 = arith.constant dense<0.000000e+00> : vector<134x8xf32>
    %319 = tpu.matmul %315, %318, %cst_221 {dimension_numbers = #tpu.dot_dimension_numbers<[1], [0], [0], [1], [0, 0, 1, 1], [], []>} : vector<134x4xbf16>, vector<4x8xbf16>, vector<134x8xf32> -> vector<134x8xf32>
    %320 = arith.addf %316, %319 : vector<134x8xf32>
    %c0_222 = arith.constant 0 : index
    %c0_223 = arith.constant 0 : index
    %321 = vector.load %arg14[%c0_222, %c0_223] : memref<134x8xf32, #tpu.memory_space<vmem>>, vector<134x8xf32>
    tpu.vector_store %arg14[%c0_222, %c0_223], %320 {strides = array<i32>} : memref<134x8xf32, #tpu.memory_space<vmem>>, vector<134x8xf32>,
    %c9_224 = arith.constant 9 : index
    %c0_225 = arith.constant 0 : index
    %322 = vector.load %arg11[%c9_224, %c0_225] : memref<162x4xf32, #tpu.memory_space<vmem>>, vector<134x4xf32>
    %323 = arith.truncf %322 : vector<134x4xf32> to vector<134x4xbf16>
    %c0_226 = arith.constant 0 : index
    %c0_227 = arith.constant 0 : index
    %324 = vector.load %arg14[%c0_226, %c0_227] : memref<134x8xf32, #tpu.memory_space<vmem>>, vector<134x8xf32>
    %c3_228 = arith.constant 3 : index
    %c0_229 = arith.constant 0 : index
    %c0_230 = arith.constant 0 : index
    %325 = vector.load %arg5[%c3_228, %c0_229, %c0_230] : memref<9x4x8xbf16, #tpu.memory_space<vmem>>, vector<1x4x8xbf16>
    %326 = vector.shape_cast %325 : vector<1x4x8xbf16> to vector<4x8xbf16>
    %cst_231 = arith.constant dense<0.000000e+00> : vector<134x8xf32>
    %327 = tpu.matmul %323, %326, %cst_231 {dimension_numbers = #tpu.dot_dimension_numbers<[1], [0], [0], [1], [0, 0, 1, 1], [], []>} : vector<134x4xbf16>, vector<4x8xbf16>, vector<134x8xf32> -> vector<134x8xf32>
    %328 = arith.addf %324, %327 : vector<134x8xf32>
    %c0_232 = arith.constant 0 : index
    %c0_233 = arith.constant 0 : index
    %329 = vector.load %arg14[%c0_232, %c0_233] : memref<134x8xf32, #tpu.memory_space<vmem>>, vector<134x8xf32>
    tpu.vector_store %arg14[%c0_232, %c0_233], %328 {strides = array<i32>} : memref<134x8xf32, #tpu.memory_space<vmem>>, vector<134x8xf32>,
    %c9_234 = arith.constant 9 : index
    %c0_235 = arith.constant 0 : index
    %330 = vector.load %arg12[%c9_234, %c0_235] : memref<162x4xf32, #tpu.memory_space<vmem>>, vector<134x4xf32>
    %331 = arith.truncf %330 : vector<134x4xf32> to vector<134x4xbf16>
    %c0_236 = arith.constant 0 : index
    %c0_237 = arith.constant 0 : index
    %332 = vector.load %arg14[%c0_236, %c0_237] : memref<134x8xf32, #tpu.memory_space<vmem>>, vector<134x8xf32>
    %c4_238 = arith.constant 4 : index
    %c0_239 = arith.constant 0 : index
    %c0_240 = arith.constant 0 : index
    %333 = vector.load %arg5[%c4_238, %c0_239, %c0_240] : memref<9x4x8xbf16, #tpu.memory_space<vmem>>, vector<1x4x8xbf16>
    %334 = vector.shape_cast %333 : vector<1x4x8xbf16> to vector<4x8xbf16>
    %cst_241 = arith.constant dense<0.000000e+00> : vector<134x8xf32>
    %335 = tpu.matmul %331, %334, %cst_241 {dimension_numbers = #tpu.dot_dimension_numbers<[1], [0], [0], [1], [0, 0, 1, 1], [], []>} : vector<134x4xbf16>, vector<4x8xbf16>, vector<134x8xf32> -> vector<134x8xf32>
    %336 = arith.addf %332, %335 : vector<134x8xf32>
    %c0_242 = arith.constant 0 : index
    %c0_243 = arith.constant 0 : index
    %337 = vector.load %arg14[%c0_242, %c0_243] : memref<134x8xf32, #tpu.memory_space<vmem>>, vector<134x8xf32>
    tpu.vector_store %arg14[%c0_242, %c0_243], %336 {strides = array<i32>} : memref<134x8xf32, #tpu.memory_space<vmem>>, vector<134x8xf32>,
    %c10_244 = arith.constant 10 : index
    %c0_245 = arith.constant 0 : index
    %338 = vector.load %arg11[%c10_244, %c0_245] : memref<162x4xf32, #tpu.memory_space<vmem>>, vector<134x4xf32>
    %339 = arith.truncf %338 : vector<134x4xf32> to vector<134x4xbf16>
    %c0_246 = arith.constant 0 : index
    %c0_247 = arith.constant 0 : index
    %340 = vector.load %arg14[%c0_246, %c0_247] : memref<134x8xf32, #tpu.memory_space<vmem>>, vector<134x8xf32>
    %c5_248 = arith.constant 5 : index
    %c0_249 = arith.constant 0 : index
    %c0_250 = arith.constant 0 : index
    %341 = vector.load %arg5[%c5_248, %c0_249, %c0_250] : memref<9x4x8xbf16, #tpu.memory_space<vmem>>, vector<1x4x8xbf16>
    %342 = vector.shape_cast %341 : vector<1x4x8xbf16> to vector<4x8xbf16>
    %cst_251 = arith.constant dense<0.000000e+00> : vector<134x8xf32>
    %343 = tpu.matmul %339, %342, %cst_251 {dimension_numbers = #tpu.dot_dimension_numbers<[1], [0], [0], [1], [0, 0, 1, 1], [], []>} : vector<134x4xbf16>, vector<4x8xbf16>, vector<134x8xf32> -> vector<134x8xf32>
    %344 = arith.addf %340, %343 : vector<134x8xf32>
    %c0_252 = arith.constant 0 : index
    %c0_253 = arith.constant 0 : index
    %345 = vector.load %arg14[%c0_252, %c0_253] : memref<134x8xf32, #tpu.memory_space<vmem>>, vector<134x8xf32>
    tpu.vector_store %arg14[%c0_252, %c0_253], %344 {strides = array<i32>} : memref<134x8xf32, #tpu.memory_space<vmem>>, vector<134x8xf32>,
    %c18_254 = arith.constant 18 : index
    %c0_255 = arith.constant 0 : index
    %346 = vector.load %arg11[%c18_254, %c0_255] : memref<162x4xf32, #tpu.memory_space<vmem>>, vector<134x4xf32>
    %347 = arith.truncf %346 : vector<134x4xf32> to vector<134x4xbf16>
    %c0_256 = arith.constant 0 : index
    %c0_257 = arith.constant 0 : index
    %348 = vector.load %arg14[%c0_256, %c0_257] : memref<134x8xf32, #tpu.memory_space<vmem>>, vector<134x8xf32>
    %c6_258 = arith.constant 6 : index
    %c0_259 = arith.constant 0 : index
    %c0_260 = arith.constant 0 : index
    %349 = vector.load %arg5[%c6_258, %c0_259, %c0_260] : memref<9x4x8xbf16, #tpu.memory_space<vmem>>, vector<1x4x8xbf16>
    %350 = vector.shape_cast %349 : vector<1x4x8xbf16> to vector<4x8xbf16>
    %cst_261 = arith.constant dense<0.000000e+00> : vector<134x8xf32>
    %351 = tpu.matmul %347, %350, %cst_261 {dimension_numbers = #tpu.dot_dimension_numbers<[1], [0], [0], [1], [0, 0, 1, 1], [], []>} : vector<134x4xbf16>, vector<4x8xbf16>, vector<134x8xf32> -> vector<134x8xf32>
    %352 = arith.addf %348, %351 : vector<134x8xf32>
    %c0_262 = arith.constant 0 : index
    %c0_263 = arith.constant 0 : index
    %353 = vector.load %arg14[%c0_262, %c0_263] : memref<134x8xf32, #tpu.memory_space<vmem>>, vector<134x8xf32>
    tpu.vector_store %arg14[%c0_262, %c0_263], %352 {strides = array<i32>} : memref<134x8xf32, #tpu.memory_space<vmem>>, vector<134x8xf32>,
    %c18_264 = arith.constant 18 : index
    %c0_265 = arith.constant 0 : index
    %354 = vector.load %arg12[%c18_264, %c0_265] : memref<162x4xf32, #tpu.memory_space<vmem>>, vector<134x4xf32>
    %355 = arith.truncf %354 : vector<134x4xf32> to vector<134x4xbf16>
    %c0_266 = arith.constant 0 : index
    %c0_267 = arith.constant 0 : index
    %356 = vector.load %arg14[%c0_266, %c0_267] : memref<134x8xf32, #tpu.memory_space<vmem>>, vector<134x8xf32>
    %c7_268 = arith.constant 7 : index
    %c0_269 = arith.constant 0 : index
    %c0_270 = arith.constant 0 : index
    %357 = vector.load %arg5[%c7_268, %c0_269, %c0_270] : memref<9x4x8xbf16, #tpu.memory_space<vmem>>, vector<1x4x8xbf16>
    %358 = vector.shape_cast %357 : vector<1x4x8xbf16> to vector<4x8xbf16>
    %cst_271 = arith.constant dense<0.000000e+00> : vector<134x8xf32>
    %359 = tpu.matmul %355, %358, %cst_271 {dimension_numbers = #tpu.dot_dimension_numbers<[1], [0], [0], [1], [0, 0, 1, 1], [], []>} : vector<134x4xbf16>, vector<4x8xbf16>, vector<134x8xf32> -> vector<134x8xf32>
    %360 = arith.addf %356, %359 : vector<134x8xf32>
    %c0_272 = arith.constant 0 : index
    %c0_273 = arith.constant 0 : index
    %361 = vector.load %arg14[%c0_272, %c0_273] : memref<134x8xf32, #tpu.memory_space<vmem>>, vector<134x8xf32>
    tpu.vector_store %arg14[%c0_272, %c0_273], %360 {strides = array<i32>} : memref<134x8xf32, #tpu.memory_space<vmem>>, vector<134x8xf32>,
    %c19_274 = arith.constant 19 : index
    %c0_275 = arith.constant 0 : index
    %362 = vector.load %arg11[%c19_274, %c0_275] : memref<162x4xf32, #tpu.memory_space<vmem>>, vector<134x4xf32>
    %363 = arith.truncf %362 : vector<134x4xf32> to vector<134x4xbf16>
    %c0_276 = arith.constant 0 : index
    %c0_277 = arith.constant 0 : index
    %364 = vector.load %arg14[%c0_276, %c0_277] : memref<134x8xf32, #tpu.memory_space<vmem>>, vector<134x8xf32>
    %c8_278 = arith.constant 8 : index
    %c0_279 = arith.constant 0 : index
    %c0_280 = arith.constant 0 : index
    %365 = vector.load %arg5[%c8_278, %c0_279, %c0_280] : memref<9x4x8xbf16, #tpu.memory_space<vmem>>, vector<1x4x8xbf16>
    %366 = vector.shape_cast %365 : vector<1x4x8xbf16> to vector<4x8xbf16>
    %cst_281 = arith.constant dense<0.000000e+00> : vector<134x8xf32>
    %367 = tpu.matmul %363, %366, %cst_281 {dimension_numbers = #tpu.dot_dimension_numbers<[1], [0], [0], [1], [0, 0, 1, 1], [], []>} : vector<134x4xbf16>, vector<4x8xbf16>, vector<134x8xf32> -> vector<134x8xf32>
    %368 = arith.addf %364, %367 : vector<134x8xf32>
    %c0_282 = arith.constant 0 : index
    %c0_283 = arith.constant 0 : index
    %369 = vector.load %arg14[%c0_282, %c0_283] : memref<134x8xf32, #tpu.memory_space<vmem>>, vector<134x8xf32>
    tpu.vector_store %arg14[%c0_282, %c0_283], %368 {strides = array<i32>} : memref<134x8xf32, #tpu.memory_space<vmem>>, vector<134x8xf32>,
    %c9_284 = arith.constant 9 : index
    %c0_285 = arith.constant 0 : index
    %370 = vector.load %arg12[%c9_284, %c0_285] : memref<162x4xf32, #tpu.memory_space<vmem>>, vector<134x4xf32>
    %371 = arith.truncf %370 : vector<134x4xf32> to vector<134x4xbf16>
    %c0_286 = arith.constant 0 : index
    %c0_287 = arith.constant 0 : index
    %372 = vector.load %arg6[%c0_286, %c0_287] : memref<4x8xbf16, #tpu.memory_space<vmem>>, vector<4x8xbf16>
    %cst_288 = arith.constant dense<0.000000e+00> : vector<134x8xf32>
    %373 = tpu.matmul %371, %372, %cst_288 {dimension_numbers = #tpu.dot_dimension_numbers<[1], [0], [0], [1], [0, 0, 1, 1], [], []>} : vector<134x4xbf16>, vector<4x8xbf16>, vector<134x8xf32> -> vector<134x8xf32>
    %c0_289 = arith.constant 0 : index
    %c0_290 = arith.constant 0 : index
    %374 = vector.load %arg16[%c0_289, %c0_290] : memref<134x8xf32, #tpu.memory_space<vmem>>, vector<134x8xf32>
    tpu.vector_store %arg16[%c0_289, %c0_290], %373 {strides = array<i32>} : memref<134x8xf32, #tpu.memory_space<vmem>>, vector<134x8xf32>,
    %cst_291 = arith.constant 0.000000e+00 : f32
    %375 = vector.broadcast %cst_291 : f32 to vector<100x8xf32>
    %c0_292 = arith.constant 0 : index
    %c0_293 = arith.constant 0 : index
    %376 = vector.load %arg13[%c0_292, %c0_293] : memref<100x8xf32, #tpu.memory_space<vmem>>, vector<100x8xf32>
    tpu.vector_store %arg13[%c0_292, %c0_293], %375 {strides = array<i32>} : memref<100x8xf32, #tpu.memory_space<vmem>>, vector<100x8xf32>,
    %c0_294 = arith.constant 0 : index
    %c0_295 = arith.constant 0 : index
    %377 = vector.load %arg14[%c0_294, %c0_295] : memref<134x8xf32, #tpu.memory_space<vmem>>, vector<8x8xf32>
    %378 = vector.broadcast %2 : vector<1x8xf32> to vector<8x8xf32>
    %379 = arith.mulf %377, %378 : vector<8x8xf32>
    %380 = vector.broadcast %3 : vector<1x8xf32> to vector<8x8xf32>
    %381 = arith.addf %379, %380 : vector<8x8xf32>
    %cst_296 = arith.constant 0.000000e+00 : f32
    %382 = vector.broadcast %cst_296 : f32 to vector<8x8xf32>
    %383 = arith.maximumf %381, %382 : vector<8x8xf32>
    %c11_297 = arith.constant 11 : index
    %c0_298 = arith.constant 0 : index
    %384 = vector.load %arg13[%c11_297, %c0_298] : memref<100x8xf32, #tpu.memory_space<vmem>>, vector<8x8xf32>
    tpu.vector_store %arg13[%c11_297, %c0_298], %383 {strides = array<i32>} : memref<100x8xf32, #tpu.memory_space<vmem>>, vector<8x8xf32>,
    %c18_299 = arith.constant 18 : index
    %c0_300 = arith.constant 0 : index
    %385 = vector.load %arg14[%c18_299, %c0_300] : memref<134x8xf32, #tpu.memory_space<vmem>>, vector<8x8xf32>
    %386 = vector.broadcast %2 : vector<1x8xf32> to vector<8x8xf32>
    %387 = arith.mulf %385, %386 : vector<8x8xf32>
    %388 = vector.broadcast %3 : vector<1x8xf32> to vector<8x8xf32>
    %389 = arith.addf %387, %388 : vector<8x8xf32>
    %cst_301 = arith.constant 0.000000e+00 : f32
    %390 = vector.broadcast %cst_301 : f32 to vector<8x8xf32>
    %391 = arith.maximumf %389, %390 : vector<8x8xf32>
    %c21 = arith.constant 21 : index
    %c0_302 = arith.constant 0 : index
    %392 = vector.load %arg13[%c21, %c0_302] : memref<100x8xf32, #tpu.memory_space<vmem>>, vector<8x8xf32>
    tpu.vector_store %arg13[%c21, %c0_302], %391 {strides = array<i32>} : memref<100x8xf32, #tpu.memory_space<vmem>>, vector<8x8xf32>,
    %c36_303 = arith.constant 36 : index
    %c0_304 = arith.constant 0 : index
    %393 = vector.load %arg14[%c36_303, %c0_304] : memref<134x8xf32, #tpu.memory_space<vmem>>, vector<8x8xf32>
    %394 = vector.broadcast %2 : vector<1x8xf32> to vector<8x8xf32>
    %395 = arith.mulf %393, %394 : vector<8x8xf32>
    %396 = vector.broadcast %3 : vector<1x8xf32> to vector<8x8xf32>
    %397 = arith.addf %395, %396 : vector<8x8xf32>
    %cst_305 = arith.constant 0.000000e+00 : f32
    %398 = vector.broadcast %cst_305 : f32 to vector<8x8xf32>
    %399 = arith.maximumf %397, %398 : vector<8x8xf32>
    %c31 = arith.constant 31 : index
    %c0_306 = arith.constant 0 : index
    %400 = vector.load %arg13[%c31, %c0_306] : memref<100x8xf32, #tpu.memory_space<vmem>>, vector<8x8xf32>
    tpu.vector_store %arg13[%c31, %c0_306], %399 {strides = array<i32>} : memref<100x8xf32, #tpu.memory_space<vmem>>, vector<8x8xf32>,
    %c54_307 = arith.constant 54 : index
    %c0_308 = arith.constant 0 : index
    %401 = vector.load %arg14[%c54_307, %c0_308] : memref<134x8xf32, #tpu.memory_space<vmem>>, vector<8x8xf32>
    %402 = vector.broadcast %2 : vector<1x8xf32> to vector<8x8xf32>
    %403 = arith.mulf %401, %402 : vector<8x8xf32>
    %404 = vector.broadcast %3 : vector<1x8xf32> to vector<8x8xf32>
    %405 = arith.addf %403, %404 : vector<8x8xf32>
    %cst_309 = arith.constant 0.000000e+00 : f32
    %406 = vector.broadcast %cst_309 : f32 to vector<8x8xf32>
    %407 = arith.maximumf %405, %406 : vector<8x8xf32>
    %c41 = arith.constant 41 : index
    %c0_310 = arith.constant 0 : index
    %408 = vector.load %arg13[%c41, %c0_310] : memref<100x8xf32, #tpu.memory_space<vmem>>, vector<8x8xf32>
    tpu.vector_store %arg13[%c41, %c0_310], %407 {strides = array<i32>} : memref<100x8xf32, #tpu.memory_space<vmem>>, vector<8x8xf32>,
    %c72_311 = arith.constant 72 : index
    %c0_312 = arith.constant 0 : index
    %409 = vector.load %arg14[%c72_311, %c0_312] : memref<134x8xf32, #tpu.memory_space<vmem>>, vector<8x8xf32>
    %410 = vector.broadcast %2 : vector<1x8xf32> to vector<8x8xf32>
    %411 = arith.mulf %409, %410 : vector<8x8xf32>
    %412 = vector.broadcast %3 : vector<1x8xf32> to vector<8x8xf32>
    %413 = arith.addf %411, %412 : vector<8x8xf32>
    %cst_313 = arith.constant 0.000000e+00 : f32
    %414 = vector.broadcast %cst_313 : f32 to vector<8x8xf32>
    %415 = arith.maximumf %413, %414 : vector<8x8xf32>
    %c51 = arith.constant 51 : index
    %c0_314 = arith.constant 0 : index
    %416 = vector.load %arg13[%c51, %c0_314] : memref<100x8xf32, #tpu.memory_space<vmem>>, vector<8x8xf32>
    tpu.vector_store %arg13[%c51, %c0_314], %415 {strides = array<i32>} : memref<100x8xf32, #tpu.memory_space<vmem>>, vector<8x8xf32>,
    %c90_315 = arith.constant 90 : index
    %c0_316 = arith.constant 0 : index
    %417 = vector.load %arg14[%c90_315, %c0_316] : memref<134x8xf32, #tpu.memory_space<vmem>>, vector<8x8xf32>
    %418 = vector.broadcast %2 : vector<1x8xf32> to vector<8x8xf32>
    %419 = arith.mulf %417, %418 : vector<8x8xf32>
    %420 = vector.broadcast %3 : vector<1x8xf32> to vector<8x8xf32>
    %421 = arith.addf %419, %420 : vector<8x8xf32>
    %cst_317 = arith.constant 0.000000e+00 : f32
    %422 = vector.broadcast %cst_317 : f32 to vector<8x8xf32>
    %423 = arith.maximumf %421, %422 : vector<8x8xf32>
    %c61 = arith.constant 61 : index
    %c0_318 = arith.constant 0 : index
    %424 = vector.load %arg13[%c61, %c0_318] : memref<100x8xf32, #tpu.memory_space<vmem>>, vector<8x8xf32>
    tpu.vector_store %arg13[%c61, %c0_318], %423 {strides = array<i32>} : memref<100x8xf32, #tpu.memory_space<vmem>>, vector<8x8xf32>,
    %c108_319 = arith.constant 108 : index
    %c0_320 = arith.constant 0 : index
    %425 = vector.load %arg14[%c108_319, %c0_320] : memref<134x8xf32, #tpu.memory_space<vmem>>, vector<8x8xf32>
    %426 = vector.broadcast %2 : vector<1x8xf32> to vector<8x8xf32>
    %427 = arith.mulf %425, %426 : vector<8x8xf32>
    %428 = vector.broadcast %3 : vector<1x8xf32> to vector<8x8xf32>
    %429 = arith.addf %427, %428 : vector<8x8xf32>
    %cst_321 = arith.constant 0.000000e+00 : f32
    %430 = vector.broadcast %cst_321 : f32 to vector<8x8xf32>
    %431 = arith.maximumf %429, %430 : vector<8x8xf32>
    %c71 = arith.constant 71 : index
    %c0_322 = arith.constant 0 : index
    %432 = vector.load %arg13[%c71, %c0_322] : memref<100x8xf32, #tpu.memory_space<vmem>>, vector<8x8xf32>
    tpu.vector_store %arg13[%c71, %c0_322], %431 {strides = array<i32>} : memref<100x8xf32, #tpu.memory_space<vmem>>, vector<8x8xf32>,
    %c126_323 = arith.constant 126 : index
    %c0_324 = arith.constant 0 : index
    %433 = vector.load %arg14[%c126_323, %c0_324] : memref<134x8xf32, #tpu.memory_space<vmem>>, vector<8x8xf32>
    %434 = vector.broadcast %2 : vector<1x8xf32> to vector<8x8xf32>
    %435 = arith.mulf %433, %434 : vector<8x8xf32>
    %436 = vector.broadcast %3 : vector<1x8xf32> to vector<8x8xf32>
    %437 = arith.addf %435, %436 : vector<8x8xf32>
    %cst_325 = arith.constant 0.000000e+00 : f32
    %438 = vector.broadcast %cst_325 : f32 to vector<8x8xf32>
    %439 = arith.maximumf %437, %438 : vector<8x8xf32>
    %c81_326 = arith.constant 81 : index
    %c0_327 = arith.constant 0 : index
    %440 = vector.load %arg13[%c81_326, %c0_327] : memref<100x8xf32, #tpu.memory_space<vmem>>, vector<8x8xf32>
    tpu.vector_store %arg13[%c81_326, %c0_327], %439 {strides = array<i32>} : memref<100x8xf32, #tpu.memory_space<vmem>>, vector<8x8xf32>,
    %cst_328 = arith.constant 0.000000e+00 : f32
    %441 = vector.broadcast %cst_328 : f32 to vector<78x8xf32>
    %c0_329 = arith.constant 0 : index
    %c0_330 = arith.constant 0 : index
    %442 = vector.load %arg15[%c0_329, %c0_330] : memref<78x8xf32, #tpu.memory_space<vmem>>, vector<78x8xf32>
    tpu.vector_store %arg15[%c0_329, %c0_330], %441 {strides = array<i32>} : memref<78x8xf32, #tpu.memory_space<vmem>>, vector<78x8xf32>,
    %c0_331 = arith.constant 0 : index
    %c0_332 = arith.constant 0 : index
    %443 = vector.load %arg13[%c0_331, %c0_332] : memref<100x8xf32, #tpu.memory_space<vmem>>, vector<78x8xf32>
    %444 = arith.truncf %443 : vector<78x8xf32> to vector<78x8xbf16>
    %c0_333 = arith.constant 0 : index
    %c0_334 = arith.constant 0 : index
    %445 = vector.load %arg15[%c0_333, %c0_334] : memref<78x8xf32, #tpu.memory_space<vmem>>, vector<78x8xf32>
    %c0_335 = arith.constant 0 : index
    %c0_336 = arith.constant 0 : index
    %c0_337 = arith.constant 0 : index
    %446 = vector.load %arg9[%c0_335, %c0_336, %c0_337] : memref<9x8x8xbf16, #tpu.memory_space<vmem>>, vector<1x8x8xbf16>
    %447 = vector.shape_cast %446 : vector<1x8x8xbf16> to vector<8x8xbf16>
    %cst_338 = arith.constant dense<0.000000e+00> : vector<78x8xf32>
    %448 = tpu.matmul %444, %447, %cst_338 {dimension_numbers = #tpu.dot_dimension_numbers<[1], [0], [0], [1], [0, 0, 1, 1], [], []>} : vector<78x8xbf16>, vector<8x8xbf16>, vector<78x8xf32> -> vector<78x8xf32>
    %449 = arith.addf %445, %448 : vector<78x8xf32>
    %c0_339 = arith.constant 0 : index
    %c0_340 = arith.constant 0 : index
    %450 = vector.load %arg15[%c0_339, %c0_340] : memref<78x8xf32, #tpu.memory_space<vmem>>, vector<78x8xf32>
    tpu.vector_store %arg15[%c0_339, %c0_340], %449 {strides = array<i32>} : memref<78x8xf32, #tpu.memory_space<vmem>>, vector<78x8xf32>,
    %c1_341 = arith.constant 1 : index
    %c0_342 = arith.constant 0 : index
    %451 = vector.load %arg13[%c1_341, %c0_342] : memref<100x8xf32, #tpu.memory_space<vmem>>, vector<78x8xf32>
    %452 = arith.truncf %451 : vector<78x8xf32> to vector<78x8xbf16>
    %c0_343 = arith.constant 0 : index
    %c0_344 = arith.constant 0 : index
    %453 = vector.load %arg15[%c0_343, %c0_344] : memref<78x8xf32, #tpu.memory_space<vmem>>, vector<78x8xf32>
    %c1_345 = arith.constant 1 : index
    %c0_346 = arith.constant 0 : index
    %c0_347 = arith.constant 0 : index
    %454 = vector.load %arg9[%c1_345, %c0_346, %c0_347] : memref<9x8x8xbf16, #tpu.memory_space<vmem>>, vector<1x8x8xbf16>
    %455 = vector.shape_cast %454 : vector<1x8x8xbf16> to vector<8x8xbf16>
    %cst_348 = arith.constant dense<0.000000e+00> : vector<78x8xf32>
    %456 = tpu.matmul %452, %455, %cst_348 {dimension_numbers = #tpu.dot_dimension_numbers<[1], [0], [0], [1], [0, 0, 1, 1], [], []>} : vector<78x8xbf16>, vector<8x8xbf16>, vector<78x8xf32> -> vector<78x8xf32>
    %457 = arith.addf %453, %456 : vector<78x8xf32>
    %c0_349 = arith.constant 0 : index
    %c0_350 = arith.constant 0 : index
    %458 = vector.load %arg15[%c0_349, %c0_350] : memref<78x8xf32, #tpu.memory_space<vmem>>, vector<78x8xf32>
    tpu.vector_store %arg15[%c0_349, %c0_350], %457 {strides = array<i32>} : memref<78x8xf32, #tpu.memory_space<vmem>>, vector<78x8xf32>,
    %c2_351 = arith.constant 2 : index
    %c0_352 = arith.constant 0 : index
    %459 = vector.load %arg13[%c2_351, %c0_352] : memref<100x8xf32, #tpu.memory_space<vmem>>, vector<78x8xf32>
    %460 = arith.truncf %459 : vector<78x8xf32> to vector<78x8xbf16>
    %c0_353 = arith.constant 0 : index
    %c0_354 = arith.constant 0 : index
    %461 = vector.load %arg15[%c0_353, %c0_354] : memref<78x8xf32, #tpu.memory_space<vmem>>, vector<78x8xf32>
    %c2_355 = arith.constant 2 : index
    %c0_356 = arith.constant 0 : index
    %c0_357 = arith.constant 0 : index
    %462 = vector.load %arg9[%c2_355, %c0_356, %c0_357] : memref<9x8x8xbf16, #tpu.memory_space<vmem>>, vector<1x8x8xbf16>
    %463 = vector.shape_cast %462 : vector<1x8x8xbf16> to vector<8x8xbf16>
    %cst_358 = arith.constant dense<0.000000e+00> : vector<78x8xf32>
    %464 = tpu.matmul %460, %463, %cst_358 {dimension_numbers = #tpu.dot_dimension_numbers<[1], [0], [0], [1], [0, 0, 1, 1], [], []>} : vector<78x8xbf16>, vector<8x8xbf16>, vector<78x8xf32> -> vector<78x8xf32>
    %465 = arith.addf %461, %464 : vector<78x8xf32>
    %c0_359 = arith.constant 0 : index
    %c0_360 = arith.constant 0 : index
    %466 = vector.load %arg15[%c0_359, %c0_360] : memref<78x8xf32, #tpu.memory_space<vmem>>, vector<78x8xf32>
    tpu.vector_store %arg15[%c0_359, %c0_360], %465 {strides = array<i32>} : memref<78x8xf32, #tpu.memory_space<vmem>>, vector<78x8xf32>,
    %c10_361 = arith.constant 10 : index
    %c0_362 = arith.constant 0 : index
    %467 = vector.load %arg13[%c10_361, %c0_362] : memref<100x8xf32, #tpu.memory_space<vmem>>, vector<78x8xf32>
    %468 = arith.truncf %467 : vector<78x8xf32> to vector<78x8xbf16>
    %c0_363 = arith.constant 0 : index
    %c0_364 = arith.constant 0 : index
    %469 = vector.load %arg15[%c0_363, %c0_364] : memref<78x8xf32, #tpu.memory_space<vmem>>, vector<78x8xf32>
    %c3_365 = arith.constant 3 : index
    %c0_366 = arith.constant 0 : index
    %c0_367 = arith.constant 0 : index
    %470 = vector.load %arg9[%c3_365, %c0_366, %c0_367] : memref<9x8x8xbf16, #tpu.memory_space<vmem>>, vector<1x8x8xbf16>
    %471 = vector.shape_cast %470 : vector<1x8x8xbf16> to vector<8x8xbf16>
    %cst_368 = arith.constant dense<0.000000e+00> : vector<78x8xf32>
    %472 = tpu.matmul %468, %471, %cst_368 {dimension_numbers = #tpu.dot_dimension_numbers<[1], [0], [0], [1], [0, 0, 1, 1], [], []>} : vector<78x8xbf16>, vector<8x8xbf16>, vector<78x8xf32> -> vector<78x8xf32>
    %473 = arith.addf %469, %472 : vector<78x8xf32>
    %c0_369 = arith.constant 0 : index
    %c0_370 = arith.constant 0 : index
    %474 = vector.load %arg15[%c0_369, %c0_370] : memref<78x8xf32, #tpu.memory_space<vmem>>, vector<78x8xf32>
    tpu.vector_store %arg15[%c0_369, %c0_370], %473 {strides = array<i32>} : memref<78x8xf32, #tpu.memory_space<vmem>>, vector<78x8xf32>,
    %c11_371 = arith.constant 11 : index
    %c0_372 = arith.constant 0 : index
    %475 = vector.load %arg13[%c11_371, %c0_372] : memref<100x8xf32, #tpu.memory_space<vmem>>, vector<78x8xf32>
    %476 = arith.truncf %475 : vector<78x8xf32> to vector<78x8xbf16>
    %c0_373 = arith.constant 0 : index
    %c0_374 = arith.constant 0 : index
    %477 = vector.load %arg15[%c0_373, %c0_374] : memref<78x8xf32, #tpu.memory_space<vmem>>, vector<78x8xf32>
    %c4_375 = arith.constant 4 : index
    %c0_376 = arith.constant 0 : index
    %c0_377 = arith.constant 0 : index
    %478 = vector.load %arg9[%c4_375, %c0_376, %c0_377] : memref<9x8x8xbf16, #tpu.memory_space<vmem>>, vector<1x8x8xbf16>
    %479 = vector.shape_cast %478 : vector<1x8x8xbf16> to vector<8x8xbf16>
    %cst_378 = arith.constant dense<0.000000e+00> : vector<78x8xf32>
    %480 = tpu.matmul %476, %479, %cst_378 {dimension_numbers = #tpu.dot_dimension_numbers<[1], [0], [0], [1], [0, 0, 1, 1], [], []>} : vector<78x8xbf16>, vector<8x8xbf16>, vector<78x8xf32> -> vector<78x8xf32>
    %481 = arith.addf %477, %480 : vector<78x8xf32>
    %c0_379 = arith.constant 0 : index
    %c0_380 = arith.constant 0 : index
    %482 = vector.load %arg15[%c0_379, %c0_380] : memref<78x8xf32, #tpu.memory_space<vmem>>, vector<78x8xf32>
    tpu.vector_store %arg15[%c0_379, %c0_380], %481 {strides = array<i32>} : memref<78x8xf32, #tpu.memory_space<vmem>>, vector<78x8xf32>,
    %c12_381 = arith.constant 12 : index
    %c0_382 = arith.constant 0 : index
    %483 = vector.load %arg13[%c12_381, %c0_382] : memref<100x8xf32, #tpu.memory_space<vmem>>, vector<78x8xf32>
    %484 = arith.truncf %483 : vector<78x8xf32> to vector<78x8xbf16>
    %c0_383 = arith.constant 0 : index
    %c0_384 = arith.constant 0 : index
    %485 = vector.load %arg15[%c0_383, %c0_384] : memref<78x8xf32, #tpu.memory_space<vmem>>, vector<78x8xf32>
    %c5_385 = arith.constant 5 : index
    %c0_386 = arith.constant 0 : index
    %c0_387 = arith.constant 0 : index
    %486 = vector.load %arg9[%c5_385, %c0_386, %c0_387] : memref<9x8x8xbf16, #tpu.memory_space<vmem>>, vector<1x8x8xbf16>
    %487 = vector.shape_cast %486 : vector<1x8x8xbf16> to vector<8x8xbf16>
    %cst_388 = arith.constant dense<0.000000e+00> : vector<78x8xf32>
    %488 = tpu.matmul %484, %487, %cst_388 {dimension_numbers = #tpu.dot_dimension_numbers<[1], [0], [0], [1], [0, 0, 1, 1], [], []>} : vector<78x8xbf16>, vector<8x8xbf16>, vector<78x8xf32> -> vector<78x8xf32>
    %489 = arith.addf %485, %488 : vector<78x8xf32>
    %c0_389 = arith.constant 0 : index
    %c0_390 = arith.constant 0 : index
    %490 = vector.load %arg15[%c0_389, %c0_390] : memref<78x8xf32, #tpu.memory_space<vmem>>, vector<78x8xf32>
    tpu.vector_store %arg15[%c0_389, %c0_390], %489 {strides = array<i32>} : memref<78x8xf32, #tpu.memory_space<vmem>>, vector<78x8xf32>,
    %c20 = arith.constant 20 : index
    %c0_391 = arith.constant 0 : index
    %491 = vector.load %arg13[%c20, %c0_391] : memref<100x8xf32, #tpu.memory_space<vmem>>, vector<78x8xf32>
    %492 = arith.truncf %491 : vector<78x8xf32> to vector<78x8xbf16>
    %c0_392 = arith.constant 0 : index
    %c0_393 = arith.constant 0 : index
    %493 = vector.load %arg15[%c0_392, %c0_393] : memref<78x8xf32, #tpu.memory_space<vmem>>, vector<78x8xf32>
    %c6_394 = arith.constant 6 : index
    %c0_395 = arith.constant 0 : index
    %c0_396 = arith.constant 0 : index
    %494 = vector.load %arg9[%c6_394, %c0_395, %c0_396] : memref<9x8x8xbf16, #tpu.memory_space<vmem>>, vector<1x8x8xbf16>
    %495 = vector.shape_cast %494 : vector<1x8x8xbf16> to vector<8x8xbf16>
    %cst_397 = arith.constant dense<0.000000e+00> : vector<78x8xf32>
    %496 = tpu.matmul %492, %495, %cst_397 {dimension_numbers = #tpu.dot_dimension_numbers<[1], [0], [0], [1], [0, 0, 1, 1], [], []>} : vector<78x8xbf16>, vector<8x8xbf16>, vector<78x8xf32> -> vector<78x8xf32>
    %497 = arith.addf %493, %496 : vector<78x8xf32>
    %c0_398 = arith.constant 0 : index
    %c0_399 = arith.constant 0 : index
    %498 = vector.load %arg15[%c0_398, %c0_399] : memref<78x8xf32, #tpu.memory_space<vmem>>, vector<78x8xf32>
    tpu.vector_store %arg15[%c0_398, %c0_399], %497 {strides = array<i32>} : memref<78x8xf32, #tpu.memory_space<vmem>>, vector<78x8xf32>,
    %c21_400 = arith.constant 21 : index
    %c0_401 = arith.constant 0 : index
    %499 = vector.load %arg13[%c21_400, %c0_401] : memref<100x8xf32, #tpu.memory_space<vmem>>, vector<78x8xf32>
    %500 = arith.truncf %499 : vector<78x8xf32> to vector<78x8xbf16>
    %c0_402 = arith.constant 0 : index
    %c0_403 = arith.constant 0 : index
    %501 = vector.load %arg15[%c0_402, %c0_403] : memref<78x8xf32, #tpu.memory_space<vmem>>, vector<78x8xf32>
    %c7_404 = arith.constant 7 : index
    %c0_405 = arith.constant 0 : index
    %c0_406 = arith.constant 0 : index
    %502 = vector.load %arg9[%c7_404, %c0_405, %c0_406] : memref<9x8x8xbf16, #tpu.memory_space<vmem>>, vector<1x8x8xbf16>
    %503 = vector.shape_cast %502 : vector<1x8x8xbf16> to vector<8x8xbf16>
    %cst_407 = arith.constant dense<0.000000e+00> : vector<78x8xf32>
    %504 = tpu.matmul %500, %503, %cst_407 {dimension_numbers = #tpu.dot_dimension_numbers<[1], [0], [0], [1], [0, 0, 1, 1], [], []>} : vector<78x8xbf16>, vector<8x8xbf16>, vector<78x8xf32> -> vector<78x8xf32>
    %505 = arith.addf %501, %504 : vector<78x8xf32>
    %c0_408 = arith.constant 0 : index
    %c0_409 = arith.constant 0 : index
    %506 = vector.load %arg15[%c0_408, %c0_409] : memref<78x8xf32, #tpu.memory_space<vmem>>, vector<78x8xf32>
    tpu.vector_store %arg15[%c0_408, %c0_409], %505 {strides = array<i32>} : memref<78x8xf32, #tpu.memory_space<vmem>>, vector<78x8xf32>,
    %c22 = arith.constant 22 : index
    %c0_410 = arith.constant 0 : index
    %507 = vector.load %arg13[%c22, %c0_410] : memref<100x8xf32, #tpu.memory_space<vmem>>, vector<78x8xf32>
    %508 = arith.truncf %507 : vector<78x8xf32> to vector<78x8xbf16>
    %c0_411 = arith.constant 0 : index
    %c0_412 = arith.constant 0 : index
    %509 = vector.load %arg15[%c0_411, %c0_412] : memref<78x8xf32, #tpu.memory_space<vmem>>, vector<78x8xf32>
    %c8_413 = arith.constant 8 : index
    %c0_414 = arith.constant 0 : index
    %c0_415 = arith.constant 0 : index
    %510 = vector.load %arg9[%c8_413, %c0_414, %c0_415] : memref<9x8x8xbf16, #tpu.memory_space<vmem>>, vector<1x8x8xbf16>
    %511 = vector.shape_cast %510 : vector<1x8x8xbf16> to vector<8x8xbf16>
    %cst_416 = arith.constant dense<0.000000e+00> : vector<78x8xf32>
    %512 = tpu.matmul %508, %511, %cst_416 {dimension_numbers = #tpu.dot_dimension_numbers<[1], [0], [0], [1], [0, 0, 1, 1], [], []>} : vector<78x8xbf16>, vector<8x8xbf16>, vector<78x8xf32> -> vector<78x8xf32>
    %513 = arith.addf %509, %512 : vector<78x8xf32>
    %c0_417 = arith.constant 0 : index
    %c0_418 = arith.constant 0 : index
    %514 = vector.load %arg15[%c0_417, %c0_418] : memref<78x8xf32, #tpu.memory_space<vmem>>, vector<78x8xf32>
    tpu.vector_store %arg15[%c0_417, %c0_418], %513 {strides = array<i32>} : memref<78x8xf32, #tpu.memory_space<vmem>>, vector<78x8xf32>,
    %c0_419 = arith.constant 0 : index
    %c0_420 = arith.constant 0 : index
    %515 = vector.load %arg15[%c0_419, %c0_420] : memref<78x8xf32, #tpu.memory_space<vmem>>, vector<8x8xf32>
    %c0_421 = arith.constant 0 : index
    %c0_422 = arith.constant 0 : index
    %516 = vector.load %arg16[%c0_421, %c0_422] : memref<134x8xf32, #tpu.memory_space<vmem>>, vector<8x8xf32>
    %517 = arith.addf %515, %516 : vector<8x8xf32>
    %c0_423 = arith.constant 0 : index
    %c0_424 = arith.constant 0 : index
    %c0_425 = arith.constant 0 : index
    %c0_426 = arith.constant 0 : index
    %518 = vector.load %arg10[%c0_423, %c0_424, %c0_425, %c0_426] : memref<1x8x8x8xf32, #tpu.memory_space<vmem>>, vector<1x1x8x8xf32>
    %519 = vector.shape_cast %518 : vector<1x1x8x8xf32> to vector<8x8xf32>
    %520 = vector.shape_cast %517 : vector<8x8xf32> to vector<1x1x8x8xf32>
    tpu.vector_store %arg10[%c0_423, %c0_424, %c0_425, %c0_426], %520 {strides = array<i32>} : memref<1x8x8x8xf32, #tpu.memory_space<vmem>>, vector<1x1x8x8xf32>,
    %c10_427 = arith.constant 10 : index
    %c0_428 = arith.constant 0 : index
    %521 = vector.load %arg15[%c10_427, %c0_428] : memref<78x8xf32, #tpu.memory_space<vmem>>, vector<8x8xf32>
    %c18_429 = arith.constant 18 : index
    %c0_430 = arith.constant 0 : index
    %522 = vector.load %arg16[%c18_429, %c0_430] : memref<134x8xf32, #tpu.memory_space<vmem>>, vector<8x8xf32>
    %523 = arith.addf %521, %522 : vector<8x8xf32>
    %c0_431 = arith.constant 0 : index
    %c1_432 = arith.constant 1 : index
    %c0_433 = arith.constant 0 : index
    %c0_434 = arith.constant 0 : index
    %524 = vector.load %arg10[%c0_431, %c1_432, %c0_433, %c0_434] : memref<1x8x8x8xf32, #tpu.memory_space<vmem>>, vector<1x1x8x8xf32>
    %525 = vector.shape_cast %524 : vector<1x1x8x8xf32> to vector<8x8xf32>
    %526 = vector.shape_cast %523 : vector<8x8xf32> to vector<1x1x8x8xf32>
    tpu.vector_store %arg10[%c0_431, %c1_432, %c0_433, %c0_434], %526 {strides = array<i32>} : memref<1x8x8x8xf32, #tpu.memory_space<vmem>>, vector<1x1x8x8xf32>,
    %c20_435 = arith.constant 20 : index
    %c0_436 = arith.constant 0 : index
    %527 = vector.load %arg15[%c20_435, %c0_436] : memref<78x8xf32, #tpu.memory_space<vmem>>, vector<8x8xf32>
    %c36_437 = arith.constant 36 : index
    %c0_438 = arith.constant 0 : index
    %528 = vector.load %arg16[%c36_437, %c0_438] : memref<134x8xf32, #tpu.memory_space<vmem>>, vector<8x8xf32>
    %529 = arith.addf %527, %528 : vector<8x8xf32>
    %c0_439 = arith.constant 0 : index
    %c2_440 = arith.constant 2 : index
    %c0_441 = arith.constant 0 : index
    %c0_442 = arith.constant 0 : index
    %530 = vector.load %arg10[%c0_439, %c2_440, %c0_441, %c0_442] : memref<1x8x8x8xf32, #tpu.memory_space<vmem>>, vector<1x1x8x8xf32>
    %531 = vector.shape_cast %530 : vector<1x1x8x8xf32> to vector<8x8xf32>
    %532 = vector.shape_cast %529 : vector<8x8xf32> to vector<1x1x8x8xf32>
    tpu.vector_store %arg10[%c0_439, %c2_440, %c0_441, %c0_442], %532 {strides = array<i32>} : memref<1x8x8x8xf32, #tpu.memory_space<vmem>>, vector<1x1x8x8xf32>,
    %c30 = arith.constant 30 : index
    %c0_443 = arith.constant 0 : index
    %533 = vector.load %arg15[%c30, %c0_443] : memref<78x8xf32, #tpu.memory_space<vmem>>, vector<8x8xf32>
    %c54_444 = arith.constant 54 : index
    %c0_445 = arith.constant 0 : index
    %534 = vector.load %arg16[%c54_444, %c0_445] : memref<134x8xf32, #tpu.memory_space<vmem>>, vector<8x8xf32>
    %535 = arith.addf %533, %534 : vector<8x8xf32>
    %c0_446 = arith.constant 0 : index
    %c3_447 = arith.constant 3 : index
    %c0_448 = arith.constant 0 : index
    %c0_449 = arith.constant 0 : index
    %536 = vector.load %arg10[%c0_446, %c3_447, %c0_448, %c0_449] : memref<1x8x8x8xf32, #tpu.memory_space<vmem>>, vector<1x1x8x8xf32>
    %537 = vector.shape_cast %536 : vector<1x1x8x8xf32> to vector<8x8xf32>
    %538 = vector.shape_cast %535 : vector<8x8xf32> to vector<1x1x8x8xf32>
    tpu.vector_store %arg10[%c0_446, %c3_447, %c0_448, %c0_449], %538 {strides = array<i32>} : memref<1x8x8x8xf32, #tpu.memory_space<vmem>>, vector<1x1x8x8xf32>,
    %c40 = arith.constant 40 : index
    %c0_450 = arith.constant 0 : index
    %539 = vector.load %arg15[%c40, %c0_450] : memref<78x8xf32, #tpu.memory_space<vmem>>, vector<8x8xf32>
    %c72_451 = arith.constant 72 : index
    %c0_452 = arith.constant 0 : index
    %540 = vector.load %arg16[%c72_451, %c0_452] : memref<134x8xf32, #tpu.memory_space<vmem>>, vector<8x8xf32>
    %541 = arith.addf %539, %540 : vector<8x8xf32>
    %c0_453 = arith.constant 0 : index
    %c4_454 = arith.constant 4 : index
    %c0_455 = arith.constant 0 : index
    %c0_456 = arith.constant 0 : index
    %542 = vector.load %arg10[%c0_453, %c4_454, %c0_455, %c0_456] : memref<1x8x8x8xf32, #tpu.memory_space<vmem>>, vector<1x1x8x8xf32>
    %543 = vector.shape_cast %542 : vector<1x1x8x8xf32> to vector<8x8xf32>
    %544 = vector.shape_cast %541 : vector<8x8xf32> to vector<1x1x8x8xf32>
    tpu.vector_store %arg10[%c0_453, %c4_454, %c0_455, %c0_456], %544 {strides = array<i32>} : memref<1x8x8x8xf32, #tpu.memory_space<vmem>>, vector<1x1x8x8xf32>,
    %c50 = arith.constant 50 : index
    %c0_457 = arith.constant 0 : index
    %545 = vector.load %arg15[%c50, %c0_457] : memref<78x8xf32, #tpu.memory_space<vmem>>, vector<8x8xf32>
    %c90_458 = arith.constant 90 : index
    %c0_459 = arith.constant 0 : index
    %546 = vector.load %arg16[%c90_458, %c0_459] : memref<134x8xf32, #tpu.memory_space<vmem>>, vector<8x8xf32>
    %547 = arith.addf %545, %546 : vector<8x8xf32>
    %c0_460 = arith.constant 0 : index
    %c5_461 = arith.constant 5 : index
    %c0_462 = arith.constant 0 : index
    %c0_463 = arith.constant 0 : index
    %548 = vector.load %arg10[%c0_460, %c5_461, %c0_462, %c0_463] : memref<1x8x8x8xf32, #tpu.memory_space<vmem>>, vector<1x1x8x8xf32>
    %549 = vector.shape_cast %548 : vector<1x1x8x8xf32> to vector<8x8xf32>
    %550 = vector.shape_cast %547 : vector<8x8xf32> to vector<1x1x8x8xf32>
    tpu.vector_store %arg10[%c0_460, %c5_461, %c0_462, %c0_463], %550 {strides = array<i32>} : memref<1x8x8x8xf32, #tpu.memory_space<vmem>>, vector<1x1x8x8xf32>,
    %c60 = arith.constant 60 : index
    %c0_464 = arith.constant 0 : index
    %551 = vector.load %arg15[%c60, %c0_464] : memref<78x8xf32, #tpu.memory_space<vmem>>, vector<8x8xf32>
    %c108_465 = arith.constant 108 : index
    %c0_466 = arith.constant 0 : index
    %552 = vector.load %arg16[%c108_465, %c0_466] : memref<134x8xf32, #tpu.memory_space<vmem>>, vector<8x8xf32>
    %553 = arith.addf %551, %552 : vector<8x8xf32>
    %c0_467 = arith.constant 0 : index
    %c6_468 = arith.constant 6 : index
    %c0_469 = arith.constant 0 : index
    %c0_470 = arith.constant 0 : index
    %554 = vector.load %arg10[%c0_467, %c6_468, %c0_469, %c0_470] : memref<1x8x8x8xf32, #tpu.memory_space<vmem>>, vector<1x1x8x8xf32>
    %555 = vector.shape_cast %554 : vector<1x1x8x8xf32> to vector<8x8xf32>
    %556 = vector.shape_cast %553 : vector<8x8xf32> to vector<1x1x8x8xf32>
    tpu.vector_store %arg10[%c0_467, %c6_468, %c0_469, %c0_470], %556 {strides = array<i32>} : memref<1x8x8x8xf32, #tpu.memory_space<vmem>>, vector<1x1x8x8xf32>,
    %c70 = arith.constant 70 : index
    %c0_471 = arith.constant 0 : index
    %557 = vector.load %arg15[%c70, %c0_471] : memref<78x8xf32, #tpu.memory_space<vmem>>, vector<8x8xf32>
    %c126_472 = arith.constant 126 : index
    %c0_473 = arith.constant 0 : index
    %558 = vector.load %arg16[%c126_472, %c0_473] : memref<134x8xf32, #tpu.memory_space<vmem>>, vector<8x8xf32>
    %559 = arith.addf %557, %558 : vector<8x8xf32>
    %c0_474 = arith.constant 0 : index
    %c7_475 = arith.constant 7 : index
    %c0_476 = arith.constant 0 : index
    %c0_477 = arith.constant 0 : index
    %560 = vector.load %arg10[%c0_474, %c7_475, %c0_476, %c0_477] : memref<1x8x8x8xf32, #tpu.memory_space<vmem>>, vector<1x1x8x8xf32>
    %561 = vector.shape_cast %560 : vector<1x1x8x8xf32> to vector<8x8xf32>
    %562 = vector.shape_cast %559 : vector<8x8xf32> to vector<1x1x8x8xf32>
    tpu.vector_store %arg10[%c0_474, %c7_475, %c0_476, %c0_477], %562 {strides = array<i32>} : memref<1x8x8x8xf32, #tpu.memory_space<vmem>>, vector<1x1x8x8xf32>,
    return
  }
  func.func @transform_0(%arg0: i32) -> (i32, i32, i32, i32) {
    %c0_i32 = arith.constant 0 : i32
    %c0_i32_0 = arith.constant 0 : i32
    %c0_i32_1 = arith.constant 0 : i32
    %c0_i32_2 = arith.constant 0 : i32
    return %arg0, %c0_i32, %c0_i32_0, %c0_i32_1 : i32, i32, i32, i32
  }
  func.func @transform_1(%arg0: i32) -> (i32, i32, i32, i32) {
    %c0_i32 = arith.constant 0 : i32
    %c0_i32_0 = arith.constant 0 : i32
    %c0_i32_1 = arith.constant 0 : i32
    %c0_i32_2 = arith.constant 0 : i32
    return %arg0, %c0_i32, %c0_i32_0, %c0_i32_1 : i32, i32, i32, i32
  }
  func.func @transform_2(%arg0: i32) -> (i32, i32) {
    %c0_i32 = arith.constant 0 : i32
    %c0_i32_0 = arith.constant 0 : i32
    %c0_i32_1 = arith.constant 0 : i32
    return %c0_i32, %c0_i32_0 : i32, i32
  }
  func.func @transform_3(%arg0: i32) -> (i32, i32) {
    %c0_i32 = arith.constant 0 : i32
    %c0_i32_0 = arith.constant 0 : i32
    %c0_i32_1 = arith.constant 0 : i32
    return %c0_i32, %c0_i32_0 : i32, i32
  }
  func.func @transform_4(%arg0: i32) -> (i32, i32, i32) {
    %c0_i32 = arith.constant 0 : i32
    %c0_i32_0 = arith.constant 0 : i32
    %c0_i32_1 = arith.constant 0 : i32
    %c0_i32_2 = arith.constant 0 : i32
    return %c0_i32, %c0_i32_0, %c0_i32_1 : i32, i32, i32
  }
  func.func @transform_5(%arg0: i32) -> (i32, i32) {
    %c0_i32 = arith.constant 0 : i32
    %c0_i32_0 = arith.constant 0 : i32
    %c0_i32_1 = arith.constant 0 : i32
    return %c0_i32, %c0_i32_0 : i32, i32
  }
  func.func @transform_6(%arg0: i32) -> (i32, i32) {
    %c0_i32 = arith.constant 0 : i32
    %c0_i32_0 = arith.constant 0 : i32
    %c0_i32_1 = arith.constant 0 : i32
    return %c0_i32, %c0_i32_0 : i32, i32
  }
  func.func @transform_7(%arg0: i32) -> (i32, i32) {
    %c0_i32 = arith.constant 0 : i32
    %c0_i32_0 = arith.constant 0 : i32
    %c0_i32_1 = arith.constant 0 : i32
    return %c0_i32, %c0_i32_0 : i32, i32
  }
  func.func @transform_8(%arg0: i32) -> (i32, i32, i32) {
    %c0_i32 = arith.constant 0 : i32
    %c0_i32_0 = arith.constant 0 : i32
    %c0_i32_1 = arith.constant 0 : i32
    %c0_i32_2 = arith.constant 0 : i32
    return %c0_i32, %c0_i32_0, %c0_i32_1 : i32, i32, i32
  }
  func.func @transform_9(%arg0: i32) -> (i32, i32, i32, i32) {
    %c0_i32 = arith.constant 0 : i32
    %c0_i32_0 = arith.constant 0 : i32
    %c0_i32_1 = arith.constant 0 : i32
    %c0_i32_2 = arith.constant 0 : i32
    return %arg0, %c0_i32, %c0_i32_0, %c0_i32_1 : i32, i32, i32, i32
  }
}

</mosaic_0001>

<llo_original>
// kernel: preact_block_forward.1
$region0: #{preact_block_forward.1}
  #allocation0 [shape = 'u32[]', space=smem, size = 0x4, offset = 0x4, fixed_abs, tag = 'smem constant byte address 0x4 - core index']
  #allocation1 [shape = 'u32[144,128]{1,0:T(1,128)}', space=vmem, size = 0x12000, scoped, tag = 'internal scratch']
  #allocation2 [shape = 'f32[162,4]{1,0:T(8,128)}', space=vmem, size = 0x15000, scoped, tag = 'scratch operand']
  #allocation3 [shape = 'f32[162,4]{1,0:T(8,128)}', space=vmem, size = 0x15000, scoped, tag = 'scratch operand']
  #allocation4 [shape = 'f32[100,8]{1,0:T(8,128)}', space=vmem, size = 0xd000, scoped, tag = 'scratch operand']
  #allocation5 [shape = 'f32[134,8]{1,0:T(8,128)}', space=vmem, size = 0x11000, scoped, tag = 'scratch operand']
  #allocation6 [shape = 'f32[78,8]{1,0:T(8,128)}', space=vmem, size = 0xa000, scoped, tag = 'scratch operand']
  #allocation7 [shape = 'f32[134,8]{1,0:T(8,128)}', space=vmem, size = 0x11000, scoped, tag = 'scratch operand']
  %s0 = inlined_call_operand.vmem [shape: f32[2,16,8,4], index: 0, kind: input, shape index: {}]
  %s1 = inlined_call_operand.vmem [shape: f32[2,16,8,4], index: 1, kind: input, shape index: {}]
  %s2 = inlined_call_operand.vmem [shape: f32[1,4], index: 2, kind: input, shape index: {}]
  %s3 = inlined_call_operand.vmem [shape: f32[1,4], index: 3, kind: input, shape index: {}]
  %s4 = inlined_call_operand.vmem [shape: bf16[9,4,8], index: 4, kind: input, shape index: {}]
  %s5 = inlined_call_operand.vmem [shape: bf16[4,8], index: 5, kind: input, shape index: {}]
  %s6 = inlined_call_operand.vmem [shape: f32[1,8], index: 6, kind: input, shape index: {}]
  %s7 = inlined_call_operand.vmem [shape: f32[1,8], index: 7, kind: input, shape index: {}]
  %s8 = inlined_call_operand.vmem [shape: bf16[9,8,8], index: 8, kind: input, shape index: {}]
  %s9 = inlined_call_operand.vmem [shape: f32[2,8,8,8], index: 9, kind: output, shape index: {}]
  %s10 = sld [smem:[#allocation0]]
  $region69: #{preact_block_forward.1} parent=0
    _
  %s12 = ssub.s32 1, %s10
  %s13 = scalar_select 0, %s12, %s10
  loop: start=0, step=1, limit=4
  $region2: #{preact_block_forward.1} parent=0 // loop_pre_header
    _
  $region3: #{preact_block_forward.1} parent=0 // loop_header
    %s15 = sphi 0, %s19
    %p16 = scmp.ge.s32.totalorder %s15, 4
    %s25 = sphi 0, %s27
    %s28 = sphi 0, %s25
    %s29 = sphi 0, %s28
    %s45 = sphi 0, %s29
    %s51 = sphi 0, %s53
    %s54 = sphi 0, %s51
    %s55 = sphi 0, %s54
    %s71 = sphi 0, %s55
    %s75 = sphi 0, %s75
    %s77 = sphi 0, %s75
    %s78 = sphi 0, %s77
    %s92 = sphi 0, %s78
    %s96 = sphi 0, %s96
    %s98 = sphi 0, %s96
    %s99 = sphi 0, %s98
    %s113 = sphi 0, %s99
    %s117 = sphi 0, %s117
    %s119 = sphi 0, %s117
    %s120 = sphi 0, %s119
    %s134 = sphi 0, %s120
    %s138 = sphi 0, %s138
    %s140 = sphi 0, %s138
    %s141 = sphi 0, %s140
    %s155 = sphi 0, %s141
    %s159 = sphi 0, %s159
    %s161 = sphi 0, %s159
    %s162 = sphi 0, %s161
    %s176 = sphi 0, %s162
    %s180 = sphi 0, %s180
    %s182 = sphi 0, %s180
    %s183 = sphi 0, %s182
    %s197 = sphi 0, %s183
    %s201 = sphi 0, %s201
    %s203 = sphi 0, %s201
    %s204 = sphi 0, %s203
    %s218 = sphi 0, %s204
    %s224 = sphi 0, %s226
    %s227 = sphi 0, %s224
    %s228 = sphi 0, %s227
    %s244 = sphi 0, %s228
  $region4: #{preact_block_forward.1} parent=0 // loop_header_branch
    %18 = sbr.rel (%p16) target = $region8
  $region5: #{preact_block_forward.1} parent=0 // loop_body
    %s20 = ssub.s32 %s15, 1
    %s21 = ssub.s32 %s15, 2
    %s22 = sadd.s32 %s15, 1
    %s23 = ssub.s32 %s15, %s22
    %p24 = scmp.eq.s32.totalorder %s23, 0
    %s26 = sadd.s32 %s25, 1
    %s27 = scalar_select %p24, %s25, %s26
    %p30 = pneg %p24
    %p31 = scmp.eq.s32.totalorder %s15, 1
    %p32 = por %p30, %p31
    %p33 = scmp.ne.s32.totalorder %s25, %s28
    %p34 = scmp.eq.s32.totalorder %s15, 0
    %p35 = por %p33, %p34
    %p36 = scmp.ne.s32.totalorder %s25, %s28
    %p37 = scmp.eq.s32.totalorder %s20, 1
    %p38 = por %p36, %p37
    %p39 = scmp.ne.s32.totalorder %s28, %s29
    %p40 = scmp.eq.s32.totalorder %s20, 0
    %p41 = por %p39, %p40
    %p42 = scmp.ne.s32.totalorder %s28, %s29
    %p43 = scmp.eq.s32.totalorder %s21, 1
    %p44 = por %p42, %p43
    %p46 = scmp.ne.s32.totalorder %s29, %s45
    %p47 = scmp.eq.s32.totalorder %s21, 0
    %p48 = por %p46, %p47
    %s49 = ssub.s32 %s15, %s22
    %p50 = scmp.eq.s32.totalorder %s49, 0
    %s52 = sadd.s32 %s51, 1
    %s53 = scalar_select %p50, %s51, %s52
    %p56 = pneg %p50
    %p57 = scmp.eq.s32.totalorder %s15, 1
    %p58 = por %p56, %p57
    %p59 = scmp.ne.s32.totalorder %s51, %s54
    %p60 = scmp.eq.s32.totalorder %s15, 0
    %p61 = por %p59, %p60
    %p62 = scmp.ne.s32.totalorder %s51, %s54
    %p63 = scmp.eq.s32.totalorder %s20, 1
    %p64 = por %p62, %p63
    %p65 = scmp.ne.s32.totalorder %s54, %s55
    %p66 = scmp.eq.s32.totalorder %s20, 0
    %p67 = por %p65, %p66
    %p68 = scmp.ne.s32.totalorder %s54, %s55
    %p69 = scmp.eq.s32.totalorder %s21, 1
    %p70 = por %p68, %p69
    %p72 = scmp.ne.s32.totalorder %s55, %s71
    %p73 = scmp.eq.s32.totalorder %s21, 0
    %p74 = por %p72, %p73
    %s76 = sadd.s32 %s75, 1
    %p79 = scmp.eq.s32.totalorder %s15, 1
    %p80 = scmp.ne.s32.totalorder %s75, %s77
    %p81 = scmp.eq.s32.totalorder %s15, 0
    %p82 = por %p80, %p81
    %p83 = scmp.ne.s32.totalorder %s75, %s77
    %p84 = scmp.eq.s32.totalorder %s20, 1
    %p85 = por %p83, %p84
    %p86 = scmp.ne.s32.totalorder %s77, %s78
    %p87 = scmp.eq.s32.totalorder %s20, 0
    %p88 = por %p86, %p87
    %p89 = scmp.ne.s32.totalorder %s77, %s78
    %p90 = scmp.eq.s32.totalorder %s21, 1
    %p91 = por %p89, %p90
    %p93 = scmp.ne.s32.totalorder %s78, %s92
    %p94 = scmp.eq.s32.totalorder %s21, 0
    %p95 = por %p93, %p94
    %s97 = sadd.s32 %s96, 1
    %p100 = scmp.eq.s32.totalorder %s15, 1
    %p101 = scmp.ne.s32.totalorder %s96, %s98
    %p102 = scmp.eq.s32.totalorder %s15, 0
    %p103 = por %p101, %p102
    %p104 = scmp.ne.s32.totalorder %s96, %s98
    %p105 = scmp.eq.s32.totalorder %s20, 1
    %p106 = por %p104, %p105
    %p107 = scmp.ne.s32.totalorder %s98, %s99
    %p108 = scmp.eq.s32.totalorder %s20, 0
    %p109 = por %p107, %p108
    %p110 = scmp.ne.s32.totalorder %s98, %s99
    %p111 = scmp.eq.s32.totalorder %s21, 1
    %p112 = por %p110, %p111
    %p114 = scmp.ne.s32.totalorder %s99, %s113
    %p115 = scmp.eq.s32.totalorder %s21, 0
    %p116 = por %p114, %p115
    %s118 = sadd.s32 %s117, 1
    %p121 = scmp.eq.s32.totalorder %s15, 1
    %p122 = scmp.ne.s32.totalorder %s117, %s119
    %p123 = scmp.eq.s32.totalorder %s15, 0
    %p124 = por %p122, %p123
    %p125 = scmp.ne.s32.totalorder %s117, %s119
    %p126 = scmp.eq.s32.totalorder %s20, 1
    %p127 = por %p125, %p126
    %p128 = scmp.ne.s32.totalorder %s119, %s120
    %p129 = scmp.eq.s32.totalorder %s20, 0
    %p130 = por %p128, %p129
    %p131 = scmp.ne.s32.totalorder %s119, %s120
    %p132 = scmp.eq.s32.totalorder %s21, 1
    %p133 = por %p131, %p132
    %p135 = scmp.ne.s32.totalorder %s120, %s134
    %p136 = scmp.eq.s32.totalorder %s21, 0
    %p137 = por %p135, %p136
    %s139 = sadd.s32 %s138, 1
    %p142 = scmp.eq.s32.totalorder %s15, 1
    %p143 = scmp.ne.s32.totalorder %s138, %s140
    %p144 = scmp.eq.s32.totalorder %s15, 0
    %p145 = por %p143, %p144
    %p146 = scmp.ne.s32.totalorder %s138, %s140
    %p147 = scmp.eq.s32.totalorder %s20, 1
    %p148 = por %p146, %p147
    %p149 = scmp.ne.s32.totalorder %s140, %s141
    %p150 = scmp.eq.s32.totalorder %s20, 0
    %p151 = por %p149, %p150
    %p152 = scmp.ne.s32.totalorder %s140, %s141
    %p153 = scmp.eq.s32.totalorder %s21, 1
    %p154 = por %p152, %p153
    %p156 = scmp.ne.s32.totalorder %s141, %s155
    %p157 = scmp.eq.s32.totalorder %s21, 0
    %p158 = por %p156, %p157
    %s160 = sadd.s32 %s159, 1
    %p163 = scmp.eq.s32.totalorder %s15, 1
    %p164 = scmp.ne.s32.totalorder %s159, %s161
    %p165 = scmp.eq.s32.totalorder %s15, 0
    %p166 = por %p164, %p165
    %p167 = scmp.ne.s32.totalorder %s159, %s161
    %p168 = scmp.eq.s32.totalorder %s20, 1
    %p169 = por %p167, %p168
    %p170 = scmp.ne.s32.totalorder %s161, %s162
    %p171 = scmp.eq.s32.totalorder %s20, 0
    %p172 = por %p170, %p171
    %p173 = scmp.ne.s32.totalorder %s161, %s162
    %p174 = scmp.eq.s32.totalorder %s21, 1
    %p175 = por %p173, %p174
    %p177 = scmp.ne.s32.totalorder %s162, %s176
    %p178 = scmp.eq.s32.totalorder %s21, 0
    %p179 = por %p177, %p178
    %s181 = sadd.s32 %s180, 1
    %p184 = scmp.eq.s32.totalorder %s15, 1
    %p185 = scmp.ne.s32.totalorder %s180, %s182
    %p186 = scmp.eq.s32.totalorder %s15, 0
    %p187 = por %p185, %p186
    %p188 = scmp.ne.s32.totalorder %s180, %s182
    %p189 = scmp.eq.s32.totalorder %s20, 1
    %p190 = por %p188, %p189
    %p191 = scmp.ne.s32.totalorder %s182, %s183
    %p192 = scmp.eq.s32.totalorder %s20, 0
    %p193 = por %p191, %p192
    %p194 = scmp.ne.s32.totalorder %s182, %s183
    %p195 = scmp.eq.s32.totalorder %s21, 1
    %p196 = por %p194, %p195
    %p198 = scmp.ne.s32.totalorder %s183, %s197
    %p199 = scmp.eq.s32.totalorder %s21, 0
    %p200 = por %p198, %p199
    %s202 = sadd.s32 %s201, 1
    %p205 = scmp.eq.s32.totalorder %s15, 1
    %p206 = scmp.ne.s32.totalorder %s201, %s203
    %p207 = scmp.eq.s32.totalorder %s15, 0
    %p208 = por %p206, %p207
    %p209 = scmp.ne.s32.totalorder %s201, %s203
    %p210 = scmp.eq.s32.totalorder %s20, 1
    %p211 = por %p209, %p210
    %p212 = scmp.ne.s32.totalorder %s203, %s204
    %p213 = scmp.eq.s32.totalorder %s20, 0
    %p214 = por %p212, %p213
    %p215 = scmp.ne.s32.totalorder %s203, %s204
    %p216 = scmp.eq.s32.totalorder %s21, 1
    %p217 = por %p215, %p216
    %p219 = scmp.ne.s32.totalorder %s204, %s218
    %p220 = scmp.eq.s32.totalorder %s21, 0
    %p221 = por %p219, %p220
    %s222 = ssub.s32 %s15, %s22
    %p223 = scmp.eq.s32.totalorder %s222, 0
    %s225 = sadd.s32 %s224, 1
    %s226 = scalar_select %p223, %s224, %s225
    %p229 = pneg %p223
    %p230 = scmp.eq.s32.totalorder %s15, 1
    %p231 = por %p229, %p230
    %p232 = scmp.ne.s32.totalorder %s224, %s227
    %p233 = scmp.eq.s32.totalorder %s15, 0
    %p234 = por %p232, %p233
    %p235 = scmp.ne.s32.totalorder %s224, %s227
    %p236 = scmp.eq.s32.totalorder %s20, 1
    %p237 = por %p235, %p236
    %p238 = scmp.ne.s32.totalorder %s227, %s228
    %p239 = scmp.eq.s32.totalorder %s20, 0
    %p240 = por %p238, %p239
    %p241 = scmp.ne.s32.totalorder %s227, %s228
    %p242 = scmp.eq.s32.totalorder %s21, 1
    %p243 = por %p241, %p242
    %p245 = scmp.ne.s32.totalorder %s228, %s244
    %p246 = scmp.eq.s32.totalorder %s21, 0
    %p247 = por %p245, %p246
    %p248 = scmp.le.s32.totalorder 1, %s15
    %p249 = scmp.lt.s32.totalorder %s15, 3
    %p250 = pnand %p248, %p249
    %p251 = pneg %p250
    // Predicated region
    $region9: #{preact_block_forward.1} parent=5 // pred_check
      _
    $region10: #{preact_block_forward.1} parent=5 // pred_check_branch
      %253 = sbr.rel (%p250) target = $region12
    $region11: #{preact_block_forward.1} parent=5 // pred_region
      %s254 = ssub.s32 %s15, 1
      // Predicated region
      $region13: #{preact_block_forward.1} parent=11 // pred_check
        %p255 = pneg %p88
      $region14: #{preact_block_forward.1} parent=11 // pred_check_branch
        %257 = sbr.rel (%p255) target = $region16
      $region15: #{preact_block_forward.1} parent=11 // pred_region
        _
      $region16: #{preact_block_forward.1} parent=11 // pred_fallthru
        _
      // Predicated region
      $region17: #{preact_block_forward.1} parent=11 // pred_check
        %p258 = pneg %p109
      $region18: #{preact_block_forward.1} parent=11 // pred_check_branch
        %260 = sbr.rel (%p258) target = $region20
      $region19: #{preact_block_forward.1} parent=11 // pred_region
        _
      $region20: #{preact_block_forward.1} parent=11 // pred_fallthru
        _
      // Predicated region
      $region21: #{preact_block_forward.1} parent=11 // pred_check
        %p261 = pneg %p130
      $region22: #{preact_block_forward.1} parent=11 // pred_check_branch
        %263 = sbr.rel (%p261) target = $region24
      $region23: #{preact_block_forward.1} parent=11 // pred_region
        _
      $region24: #{preact_block_forward.1} parent=11 // pred_fallthru
        _
      // Predicated region
      $region25: #{preact_block_forward.1} parent=11 // pred_check
        %p264 = pneg %p151
      $region26: #{preact_block_forward.1} parent=11 // pred_check_branch
        %266 = sbr.rel (%p264) target = $region28
      $region27: #{preact_block_forward.1} parent=11 // pred_region
        _
      $region28: #{preact_block_forward.1} parent=11 // pred_fallthru
        _
      // Predicated region
      $region29: #{preact_block_forward.1} parent=11 // pred_check
        %p267 = pneg %p172
      $region30: #{preact_block_forward.1} parent=11 // pred_check_branch
        %269 = sbr.rel (%p267) target = $region32
      $region31: #{preact_block_forward.1} parent=11 // pred_region
        _
      $region32: #{preact_block_forward.1} parent=11 // pred_fallthru
        _
      // Predicated region
      $region33: #{preact_block_forward.1} parent=11 // pred_check
        %p270 = pneg %p193
      $region34: #{preact_block_forward.1} parent=11 // pred_check_branch
        %272 = sbr.rel (%p270) target = $region36
      $region35: #{preact_block_forward.1} parent=11 // pred_region
        _
      $region36: #{preact_block_forward.1} parent=11 // pred_fallthru
        _
      // Predicated region
      $region37: #{preact_block_forward.1} parent=11 // pred_check
        %p273 = pneg %p214
      $region38: #{preact_block_forward.1} parent=11 // pred_check_branch
        %275 = sbr.rel (%p273) target = $region40
      $region39: #{preact_block_forward.1} parent=11 // pred_region
        _
      $region40: #{preact_block_forward.1} parent=11 // pred_fallthru
        _
    $region12: #{preact_block_forward.1} parent=5 // pred_fallthru
      _
    %p276 = scmp.lt.s32.totalorder %s15, 2
    // Predicated region
    $region41: #{preact_block_forward.1} parent=5 // pred_check
      %p277 = pneg %p276
    $region42: #{preact_block_forward.1} parent=5 // pred_check_branch
      %279 = sbr.rel (%p277) target = $region44
    $region43: #{preact_block_forward.1} parent=5 // pred_region
      // Predicated region
      $region45: #{preact_block_forward.1} parent=43 // pred_check
        %p280 = pneg %p35
      $region46: #{preact_block_forward.1} parent=43 // pred_check_branch
        %282 = sbr.rel (%p280) target = $region48
      $region47: #{preact_block_forward.1} parent=43 // pred_region
        %p283 = scmp.lt.s32.totalorder %s15, 1
        %s284 = scalar_select %p283, %s15, 1
        %s285 = smul.addr %s284, 16
        %s286 = smul.addr %s285, 8
        %s287 = scalar_lea.vmem %s0, %s286
      $region48: #{preact_block_forward.1} parent=43 // pred_fallthru
        _
      // Predicated region
      $region49: #{preact_block_forward.1} parent=43 // pred_check
        %p288 = pneg %p61
      $region50: #{preact_block_forward.1} parent=43 // pred_check_branch
        %290 = sbr.rel (%p288) target = $region52
      $region51: #{preact_block_forward.1} parent=43 // pred_region
        %p291 = scmp.lt.s32.totalorder %s15, 1
        %s292 = scalar_select %p291, %s15, 1
        %s293 = smul.addr %s292, 16
        %s294 = smul.addr %s293, 8
        %s295 = scalar_lea.vmem %s1, %s294
      $region52: #{preact_block_forward.1} parent=43 // pred_fallthru
        _
    $region44: #{preact_block_forward.1} parent=5 // pred_fallthru
      _
    %p296 = scmp.le.s32.totalorder 1, %s15
    %p297 = scmp.lt.s32.totalorder %s15, 3
    %p298 = pnand %p296, %p297
    %p299 = pneg %p298
    // Predicated region
    $region53: #{preact_block_forward.1} parent=5 // pred_check
      _
    $region54: #{preact_block_forward.1} parent=5 // pred_check_branch
      %301 = sbr.rel (%p298) target = $region56
    $region55: #{preact_block_forward.1} parent=5 // pred_region
      %s302 = ssub.s32 %s15, 1
      %p303 = scmp.lt.s32.totalorder %s20, 1
      %s304 = scalar_select %p303, %s20, 1
      %s305 = smul.addr %s304, 16
      %s306 = smul.addr %s305, 8
      %s307 = scalar_lea.vmem %s0, %s306
      %p308 = pneg %p41
      %p309 = pneg %p38
      %p310 = scmp.lt.s32.totalorder %s20, 1
      %s311 = scalar_select %p310, %s20, 1
      %s312 = smul.addr %s311, 16
      %s313 = smul.addr %s312, 8
      %s314 = scalar_lea.vmem %s1, %s313
      %p315 = pneg %p67
      %p316 = pneg %p64
      %p317 = pneg %p88
      %p318 = pneg %p85
      %p319 = pneg %p109
      %p320 = pneg %p106
      %p321 = pneg %p130
      %p322 = pneg %p127
      %p323 = pneg %p151
      %p324 = pneg %p148
      %p325 = pneg %p172
      %p326 = pneg %p169
      %p327 = pneg %p193
      %p328 = pneg %p190
      %p329 = pneg %p214
      %p330 = pneg %p211
      %p331 = pneg %p240
      %p332 = pneg %p237
      %p333 = scmp.lt.s32.totalorder %s20, 1
      %s334 = scalar_select %p333, %s20, 1
      %s335 = smul.addr %s334, 8
      %s336 = smul.addr %s335, 8
      %s337 = scalar_lea.vmem %s9, %s336
      %p338 = scmp.lt.s32.totalorder %s20, 1
      %s339 = scalar_select %p338, %s20, 1
      %s340 = smul.addr %s339, 16
      %s341 = smul.addr %s340, 8
      %s342 = scalar_lea.vmem %s0, %s341
      %p343 = scmp.lt.s32.totalorder %s20, 1
      %s344 = scalar_select %p343, %s20, 1
      %s345 = smul.addr %s344, 16
      %s346 = smul.addr %s345, 8
      %s347 = scalar_lea.vmem %s1, %s346
      %p348 = scmp.lt.s32.totalorder %s20, 1
      %s349 = scalar_select %p348, %s20, 1
      %s350 = smul.addr %s349, 8
      %s351 = smul.addr %s350, 8
      %s352 = scalar_lea.vmem %s9, %s351
      %v354 = vld [vmem:[%s2] sm:$0x1]
      %v355 = vld [vmem:[%s3] sm:$0x1]
      %v356 = vld [vmem:[%s6] sm:$0x1]
      %v357 = vld [vmem:[%s7] sm:$0x1]
      %vm358 = vcmask 31744
      %359 = vst.msk [vmem:[#allocation2] sm:$0xff] %vm358, 0.0
      %360 = vst.msk [vmem:[#allocation2 + $0x8] sm:$0xff] %vm358, 0.0
      %361 = vst.msk [vmem:[#allocation2 + $0x10] sm:$0xff] %vm358, 0.0
      %362 = vst.msk [vmem:[#allocation2 + $0x18] sm:$0xff] %vm358, 0.0
      %363 = vst.msk [vmem:[#allocation2 + $0x20] sm:$0xff] %vm358, 0.0
      %364 = vst.msk [vmem:[#allocation2 + $0x28] sm:$0xff] %vm358, 0.0
      %365 = vst.msk [vmem:[#allocation2 + $0x30] sm:$0xff] %vm358, 0.0
      %366 = vst.msk [vmem:[#allocation2 + $0x38] sm:$0xff] %vm358, 0.0
      %367 = vst.msk [vmem:[#allocation2 + $0x40] sm:$0xff] %vm358, 0.0
      %368 = vst.msk [vmem:[#allocation2 + $0x48] sm:$0xff] %vm358, 0.0
      %369 = vst.msk [vmem:[#allocation2 + $0x50] sm:$0xff] %vm358, 0.0
      %370 = vst.msk [vmem:[#allocation2 + $0x58] sm:$0xff] %vm358, 0.0
      %371 = vst.msk [vmem:[#allocation2 + $0x60] sm:$0xff] %vm358, 0.0
      %372 = vst.msk [vmem:[#allocation2 + $0x68] sm:$0xff] %vm358, 0.0
      %373 = vst.msk [vmem:[#allocation2 + $0x70] sm:$0xff] %vm358, 0.0
      %374 = vst.msk [vmem:[#allocation2 + $0x78] sm:$0xff] %vm358, 0.0
      %375 = vst.msk [vmem:[#allocation2 + $0x80] sm:$0xff] %vm358, 0.0
      %376 = vst.msk [vmem:[#allocation2 + $0x88] sm:$0xff] %vm358, 0.0
      %377 = vst.msk [vmem:[#allocation2 + $0x90] sm:$0xff] %vm358, 0.0
      %378 = vst.msk [vmem:[#allocation2 + $0x98] sm:$0xff] %vm358, 0.0
      %vm379 = vcmask 25600
      %380 = vst.msk [vmem:[#allocation2 + $0xa0] sm:$0x3] %vm379, 0.0
      %381 = vst.msk [vmem:[#allocation3] sm:$0xff] %vm358, 0.0
      %382 = vst.msk [vmem:[#allocation3 + $0x8] sm:$0xff] %vm358, 0.0
      %383 = vst.msk [vmem:[#allocation3 + $0x10] sm:$0xff] %vm358, 0.0
      %384 = vst.msk [vmem:[#allocation3 + $0x18] sm:$0xff] %vm358, 0.0
      %385 = vst.msk [vmem:[#allocation3 + $0x20] sm:$0xff] %vm358, 0.0
      %386 = vst.msk [vmem:[#allocation3 + $0x28] sm:$0xff] %vm358, 0.0
      %387 = vst.msk [vmem:[#allocation3 + $0x30] sm:$0xff] %vm358, 0.0
      %388 = vst.msk [vmem:[#allocation3 + $0x38] sm:$0xff] %vm358, 0.0
      %389 = vst.msk [vmem:[#allocation3 + $0x40] sm:$0xff] %vm358, 0.0
      %390 = vst.msk [vmem:[#allocation3 + $0x48] sm:$0xff] %vm358, 0.0
      %391 = vst.msk [vmem:[#allocation3 + $0x50] sm:$0xff] %vm358, 0.0
      %392 = vst.msk [vmem:[#allocation3 + $0x58] sm:$0xff] %vm358, 0.0
      %393 = vst.msk [vmem:[#allocation3 + $0x60] sm:$0xff] %vm358, 0.0
      %394 = vst.msk [vmem:[#allocation3 + $0x68] sm:$0xff] %vm358, 0.0
      %395 = vst.msk [vmem:[#allocation3 + $0x70] sm:$0xff] %vm358, 0.0
      %396 = vst.msk [vmem:[#allocation3 + $0x78] sm:$0xff] %vm358, 0.0
      %397 = vst.msk [vmem:[#allocation3 + $0x80] sm:$0xff] %vm358, 0.0
      %398 = vst.msk [vmem:[#allocation3 + $0x88] sm:$0xff] %vm358, 0.0
      %399 = vst.msk [vmem:[#allocation3 + $0x90] sm:$0xff] %vm358, 0.0
      %400 = vst.msk [vmem:[#allocation3 + $0x98] sm:$0xff] %vm358, 0.0
      %401 = vst.msk [vmem:[#allocation3 + $0xa0] sm:$0x3] %vm379, 0.0
      %v402 = vld [vmem:[%s342] sm:$0xff]
      %v404 = vlaneseq
      %v405 = vshrl.u32 %v404, 7
      %v406 = vsub.s32 0, %v405
      %v407 = vrot.slane %v354, %v406
      %v409 = vmul.f32 %v402, %v407
      %v411 = vlaneseq
      %v412 = vshrl.u32 %v411, 7
      %v413 = vsub.s32 0, %v412
      %v414 = vrot.slane %v355, %v413
      %v416 = vadd.f32 %v409, %v414
      %v417 = vmax.f32 %v416, 0.0
      %418 = vst.msk [vmem:[#allocation2 + $0xa] sm:$0xff] %vm358, %v417
      %s419 = scalar_lea.vmem %s342, 8
      %v420 = vld [vmem:[%s419] sm:$0xff]
      %v421 = vmul.f32 %v420, %v407
      %v422 = vadd.f32 %v421, %v414
      %v423 = vmax.f32 %v422, 0.0
      %424 = vst.msk [vmem:[#allocation2 + $0x13] sm:$0xff] %vm358, %v423
      %s425 = scalar_lea.vmem %s342, 16
      %v426 = vld [vmem:[%s425] sm:$0xff]
      %v427 = vmul.f32 %v426, %v407
      %v428 = vadd.f32 %v427, %v414
      %v429 = vmax.f32 %v428, 0.0
      %430 = vst.msk [vmem:[#allocation2 + $0x1c] sm:$0xff] %vm358, %v429
      %s431 = scalar_lea.vmem %s342, 24
      %v432 = vld [vmem:[%s431] sm:$0xff]
      %v433 = vmul.f32 %v432, %v407
      %v434 = vadd.f32 %v433, %v414
      %v435 = vmax.f32 %v434, 0.0
      %436 = vst.msk [vmem:[#allocation2 + $0x25] sm:$0xff] %vm358, %v435
      %s437 = scalar_lea.vmem %s342, 32
      %v438 = vld [vmem:[%s437] sm:$0xff]
      %v439 = vmul.f32 %v438, %v407
      %v440 = vadd.f32 %v439, %v414
      %v441 = vmax.f32 %v440, 0.0
      %442 = vst.msk [vmem:[#allocation2 + $0x2e] sm:$0xff] %vm358, %v441
      %s443 = scalar_lea.vmem %s342, 40
      %v444 = vld [vmem:[%s443] sm:$0xff]
      %v445 = vmul.f32 %v444, %v407
      %v446 = vadd.f32 %v445, %v414
      %v447 = vmax.f32 %v446, 0.0
      %448 = vst.msk [vmem:[#allocation2 + $0x37] sm:$0xff] %vm358, %v447
      %s449 = scalar_lea.vmem %s342, 48
      %v450 = vld [vmem:[%s449] sm:$0xff]
      %v451 = vmul.f32 %v450, %v407
      %v452 = vadd.f32 %v451, %v414
      %v453 = vmax.f32 %v452, 0.0
      %454 = vst.msk [vmem:[#allocation2 + $0x40] sm:$0xff] %vm358, %v453
      %s455 = scalar_lea.vmem %s342, 56
      %v456 = vld [vmem:[%s455] sm:$0xff]
      %v457 = vmul.f32 %v456, %v407
      %v458 = vadd.f32 %v457, %v414
      %v459 = vmax.f32 %v458, 0.0
      %460 = vst.msk [vmem:[#allocation2 + $0x49] sm:$0xff] %vm358, %v459
      %s461 = scalar_lea.vmem %s342, 64
      %v462 = vld [vmem:[%s461] sm:$0xff]
      %v463 = vmul.f32 %v462, %v407
      %v464 = vadd.f32 %v463, %v414
      %v465 = vmax.f32 %v464, 0.0
      %466 = vst.msk [vmem:[#allocation2 + $0x52] sm:$0xff] %vm358, %v465
      %s467 = scalar_lea.vmem %s342, 72
      %v468 = vld [vmem:[%s467] sm:$0xff]
      %v469 = vmul.f32 %v468, %v407
      %v470 = vadd.f32 %v469, %v414
      %v471 = vmax.f32 %v470, 0.0
      %472 = vst.msk [vmem:[#allocation2 + $0x5b] sm:$0xff] %vm358, %v471
      %s473 = scalar_lea.vmem %s342, 80
      %v474 = vld [vmem:[%s473] sm:$0xff]
      %v475 = vmul.f32 %v474, %v407
      %v476 = vadd.f32 %v475, %v414
      %v477 = vmax.f32 %v476, 0.0
      %478 = vst.msk [vmem:[#allocation2 + $0x64] sm:$0xff] %vm358, %v477
      %s479 = scalar_lea.vmem %s342, 88
      %v480 = vld [vmem:[%s479] sm:$0xff]
      %v481 = vmul.f32 %v480, %v407
      %v482 = vadd.f32 %v481, %v414
      %v483 = vmax.f32 %v482, 0.0
      %484 = vst.msk [vmem:[#allocation2 + $0x6d] sm:$0xff] %vm358, %v483
      %s485 = scalar_lea.vmem %s342, 96
      %v486 = vld [vmem:[%s485] sm:$0xff]
      %v487 = vmul.f32 %v486, %v407
      %v488 = vadd.f32 %v487, %v414
      %v489 = vmax.f32 %v488, 0.0
      %490 = vst.msk [vmem:[#allocation2 + $0x76] sm:$0xff] %vm358, %v489
      %s491 = scalar_lea.vmem %s342, 104
      %v492 = vld [vmem:[%s491] sm:$0xff]
      %v493 = vmul.f32 %v492, %v407
      %v494 = vadd.f32 %v493, %v414
      %v495 = vmax.f32 %v494, 0.0
      %496 = vst.msk [vmem:[#allocation2 + $0x7f] sm:$0xff] %vm358, %v495
      %s497 = scalar_lea.vmem %s342, 112
      %v498 = vld [vmem:[%s497] sm:$0xff]
      %v499 = vmul.f32 %v498, %v407
      %v500 = vadd.f32 %v499, %v414
      %v501 = vmax.f32 %v500, 0.0
      %502 = vst.msk [vmem:[#allocation2 + $0x88] sm:$0xff] %vm358, %v501
      %s503 = scalar_lea.vmem %s342, 120
      %v504 = vld [vmem:[%s503] sm:$0xff]
      %v505 = vmul.f32 %v504, %v407
      %v506 = vadd.f32 %v505, %v414
      %v507 = vmax.f32 %v506, 0.0
      %508 = vst.msk [vmem:[#allocation2 + $0x91] sm:$0xff] %vm358, %v507
      %v509 = vld [vmem:[%s347] sm:$0xff]
      %v510 = vmul.f32 %v509, %v407
      %v511 = vadd.f32 %v510, %v414
      %v512 = vmax.f32 %v511, 0.0
      %513 = vst.msk [vmem:[#allocation3 + $0x9] sm:$0xff] %vm358, %v512
      %s514 = scalar_lea.vmem %s347, 8
      %v515 = vld [vmem:[%s514] sm:$0xff]
      %v516 = vmul.f32 %v515, %v407
      %v517 = vadd.f32 %v516, %v414
      %v518 = vmax.f32 %v517, 0.0
      %519 = vst.msk [vmem:[#allocation3 + $0x12] sm:$0xff] %vm358, %v518
      %s520 = scalar_lea.vmem %s347, 16
      %v521 = vld [vmem:[%s520] sm:$0xff]
      %v522 = vmul.f32 %v521, %v407
      %v523 = vadd.f32 %v522, %v414
      %v524 = vmax.f32 %v523, 0.0
      %525 = vst.msk [vmem:[#allocation3 + $0x1b] sm:$0xff] %vm358, %v524
      %s526 = scalar_lea.vmem %s347, 24
      %v527 = vld [vmem:[%s526] sm:$0xff]
      %v528 = vmul.f32 %v527, %v407
      %v529 = vadd.f32 %v528, %v414
      %v530 = vmax.f32 %v529, 0.0
      %531 = vst.msk [vmem:[#allocation3 + $0x24] sm:$0xff] %vm358, %v530
      %s532 = scalar_lea.vmem %s347, 32
      %v533 = vld [vmem:[%s532] sm:$0xff]
      %v534 = vmul.f32 %v533, %v407
      %v535 = vadd.f32 %v534, %v414
      %v536 = vmax.f32 %v535, 0.0
      %537 = vst.msk [vmem:[#allocation3 + $0x2d] sm:$0xff] %vm358, %v536
      %s538 = scalar_lea.vmem %s347, 40
      %v539 = vld [vmem:[%s538] sm:$0xff]
      %v540 = vmul.f32 %v539, %v407
      %v541 = vadd.f32 %v540, %v414
      %v542 = vmax.f32 %v541, 0.0
      %543 = vst.msk [vmem:[#allocation3 + $0x36] sm:$0xff] %vm358, %v542
      %s544 = scalar_lea.vmem %s347, 48
      %v545 = vld [vmem:[%s544] sm:$0xff]
      %v546 = vmul.f32 %v545, %v407
      %v547 = vadd.f32 %v546, %v414
      %v548 = vmax.f32 %v547, 0.0
      %549 = vst.msk [vmem:[#allocation3 + $0x3f] sm:$0xff] %vm358, %v548
      %s550 = scalar_lea.vmem %s347, 56
      %v551 = vld [vmem:[%s550] sm:$0xff]
      %v552 = vmul.f32 %v551, %v407
      %v553 = vadd.f32 %v552, %v414
      %v554 = vmax.f32 %v553, 0.0
      %555 = vst.msk [vmem:[#allocation3 + $0x48] sm:$0xff] %vm358, %v554
      %s556 = scalar_lea.vmem %s347, 64
      %v557 = vld [vmem:[%s556] sm:$0xff]
      %v558 = vmul.f32 %v557, %v407
      %v559 = vadd.f32 %v558, %v414
      %v560 = vmax.f32 %v559, 0.0
      %561 = vst.msk [vmem:[#allocation3 + $0x51] sm:$0xff] %vm358, %v560
      %s562 = scalar_lea.vmem %s347, 72
      %v563 = vld [vmem:[%s562] sm:$0xff]
      %v564 = vmul.f32 %v563, %v407
      %v565 = vadd.f32 %v564, %v414
      %v566 = vmax.f32 %v565, 0.0
      %567 = vst.msk [vmem:[#allocation3 + $0x5a] sm:$0xff] %vm358, %v566
      %s568 = scalar_lea.vmem %s347, 80
      %v569 = vld [vmem:[%s568] sm:$0xff]
      %v570 = vmul.f32 %v569, %v407
      %v571 = vadd.f32 %v570, %v414
      %v572 = vmax.f32 %v571, 0.0
      %573 = vst.msk [vmem:[#allocation3 + $0x63] sm:$0xff] %vm358, %v572
      %s574 = scalar_lea.vmem %s347, 88
      %v575 = vld [vmem:[%s574] sm:$0xff]
      %v576 = vmul.f32 %v575, %v407
      %v577 = vadd.f32 %v576, %v414
      %v578 = vmax.f32 %v577, 0.0
      %579 = vst.msk [vmem:[#allocation3 + $0x6c] sm:$0xff] %vm358, %v578
      %s580 = scalar_lea.vmem %s347, 96
      %v581 = vld [vmem:[%s580] sm:$0xff]
      %v582 = vmul.f32 %v581, %v407
      %v583 = vadd.f32 %v582, %v414
      %v584 = vmax.f32 %v583, 0.0
      %585 = vst.msk [vmem:[#allocation3 + $0x75] sm:$0xff] %vm358, %v584
      %s586 = scalar_lea.vmem %s347, 104
      %v587 = vld [vmem:[%s586] sm:$0xff]
      %v588 = vmul.f32 %v587, %v407
      %v589 = vadd.f32 %v588, %v414
      %v590 = vmax.f32 %v589, 0.0
      %591 = vst.msk [vmem:[#allocation3 + $0x7e] sm:$0xff] %vm358, %v590
      %s592 = scalar_lea.vmem %s347, 112
      %v593 = vld [vmem:[%s592] sm:$0xff]
      %v594 = vmul.f32 %v593, %v407
      %v595 = vadd.f32 %v594, %v414
      %v596 = vmax.f32 %v595, 0.0
      %597 = vst.msk [vmem:[#allocation3 + $0x87] sm:$0xff] %vm358, %v596
      %s598 = scalar_lea.vmem %s347, 120
      %v599 = vld [vmem:[%s598] sm:$0xff]
      %v600 = vmul.f32 %v599, %v407
      %v601 = vadd.f32 %v600, %v414
      %v602 = vmax.f32 %v601, 0.0
      %603 = vst.msk [vmem:[#allocation3 + $0x90] sm:$0xff] %vm358, %v602
      %vm604 = vcmask 64512
      %605 = vst.msk [vmem:[#allocation5] sm:$0xff] %vm604, 0.0
      %606 = vst.msk [vmem:[#allocation5 + $0x8] sm:$0xff] %vm604, 0.0
      %607 = vst.msk [vmem:[#allocation5 + $0x10] sm:$0xff] %vm604, 0.0
      %608 = vst.msk [vmem:[#allocation5 + $0x18] sm:$0xff] %vm604, 0.0
      %609 = vst.msk [vmem:[#allocation5 + $0x20] sm:$0xff] %vm604, 0.0
      %610 = vst.msk [vmem:[#allocation5 + $0x28] sm:$0xff] %vm604, 0.0
      %611 = vst.msk [vmem:[#allocation5 + $0x30] sm:$0xff] %vm604, 0.0
      %612 = vst.msk [vmem:[#allocation5 + $0x38] sm:$0xff] %vm604, 0.0
      %613 = vst.msk [vmem:[#allocation5 + $0x40] sm:$0xff] %vm604, 0.0
      %614 = vst.msk [vmem:[#allocation5 + $0x48] sm:$0xff] %vm604, 0.0
      %615 = vst.msk [vmem:[#allocation5 + $0x50] sm:$0xff] %vm604, 0.0
      %616 = vst.msk [vmem:[#allocation5 + $0x58] sm:$0xff] %vm604, 0.0
      %617 = vst.msk [vmem:[#allocation5 + $0x60] sm:$0xff] %vm604, 0.0
      %618 = vst.msk [vmem:[#allocation5 + $0x68] sm:$0xff] %vm604, 0.0
      %619 = vst.msk [vmem:[#allocation5 + $0x70] sm:$0xff] %vm604, 0.0
      %620 = vst.msk [vmem:[#allocation5 + $0x78] sm:$0xff] %vm604, 0.0
      %vm621 = vcmask 62464
      %622 = vst.msk [vmem:[#allocation5 + $0x80] sm:$0x3f] %vm621, 0.0
      %v623 = vld [vmem:[#allocation2] sm:$0xff]
      %v624 = vld [vmem:[#allocation2 + $0x8] sm:$0xff]
      %v625 = vld [vmem:[#allocation2 + $0x10] sm:$0xff]
      %v626 = vld [vmem:[#allocation2 + $0x18] sm:$0xff]
      %v627 = vld [vmem:[#allocation2 + $0x20] sm:$0xff]
      %v628 = vld [vmem:[#allocation2 + $0x28] sm:$0xff]
      %v629 = vld [vmem:[#allocation2 + $0x30] sm:$0xff]
      %v630 = vld [vmem:[#allocation2 + $0x38] sm:$0xff]
      %v631 = vld [vmem:[#allocation2 + $0x40] sm:$0xff]
      %v632 = vld [vmem:[#allocation2 + $0x48] sm:$0xff]
      %v633 = vld [vmem:[#allocation2 + $0x50] sm:$0xff]
      %v634 = vld [vmem:[#allocation2 + $0x58] sm:$0xff]
      %v635 = vld [vmem:[#allocation2 + $0x60] sm:$0xff]
      %v636 = vld [vmem:[#allocation2 + $0x68] sm:$0xff]
      %v637 = vld [vmem:[#allocation2 + $0x70] sm:$0xff]
      %v638 = vld [vmem:[#allocation2 + $0x78] sm:$0xff]
      %v639 = vld [vmem:[#allocation2 + $0x80] sm:$0x3f]
      %v640 = vpack.c.bf16 %v624, %v623
      %v641 = vpack.c.bf16 %v626, %v625
      %v642 = vpack.c.bf16 %v628, %v627
      %v643 = vpack.c.bf16 %v630, %v629
      %v644 = vpack.c.bf16 %v632, %v631
      %v645 = vpack.c.bf16 %v634, %v633
      %v646 = vpack.c.bf16 %v636, %v635
      %v647 = vpack.c.bf16 %v638, %v637
      %v648 = vpack.c.bf16 %v639, %v639
      %v649 = vld [vmem:[#allocation5] sm:$0xff]
      %v650 = vld [vmem:[#allocation5 + $0x8] sm:$0xff]
      %v651 = vld [vmem:[#allocation5 + $0x10] sm:$0xff]
      %v652 = vld [vmem:[#allocation5 + $0x18] sm:$0xff]
      %v653 = vld [vmem:[#allocation5 + $0x20] sm:$0xff]
      %v654 = vld [vmem:[#allocation5 + $0x28] sm:$0xff]
      %v655 = vld [vmem:[#allocation5 + $0x30] sm:$0xff]
      %v656 = vld [vmem:[#allocation5 + $0x38] sm:$0xff]
      %v657 = vld [vmem:[#allocation5 + $0x40] sm:$0xff]
      %v658 = vld [vmem:[#allocation5 + $0x48] sm:$0xff]
      %v659 = vld [vmem:[#allocation5 + $0x50] sm:$0xff]
      %v660 = vld [vmem:[#allocation5 + $0x58] sm:$0xff]
      %v661 = vld [vmem:[#allocation5 + $0x60] sm:$0xff]
      %v662 = vld [vmem:[#allocation5 + $0x68] sm:$0xff]
      %v663 = vld [vmem:[#allocation5 + $0x70] sm:$0xff]
      %v664 = vld [vmem:[#allocation5 + $0x78] sm:$0xff]
      %v665 = vld [vmem:[#allocation5 + $0x80] sm:$0x3f]
      %v666 = vld [vmem:[%s4] sm:$0x3]
      %v668 = vsel %vm358, %v640, 0
      %v671 = vsel %vm358, %v641, 0
      %v674 = vsel %vm358, %v642, 0
      %v677 = vsel %vm358, %v643, 0
      %v680 = vsel %vm358, %v644, 0
      %v683 = vsel %vm358, %v645, 0
      %v686 = vsel %vm358, %v646, 0
      %v689 = vsel %vm358, %v647, 0
      %v692 = vsel %vm358, %v648, 0
      %vm694 = vcmask 1041408
      %v696 = vsel %vm694, %v666, 0
      %698 = vmatprep.subr.bf16.mxu0 0
      %699 = vmatpush1.bf16.msra.mxu0 %v696
      %700 = vmatprep.subr.bf16.mxu0 0
      %701 = vmatpush1.bf16.msra.mxu0 0
      %702 = vmatprep.subr.bf16.mxu0 0
      %703 = vmatpush1.bf16.msra.mxu0 0
      %704 = vmatprep.subr.bf16.mxu0 0
      %705 = vmatpush1.bf16.msra.mxu0 0
      %706 = vmatprep.subr.bf16.mxu0 0
      %707 = vmatpush1.bf16.msra.mxu0 0
      %708 = vmatprep.subr.bf16.mxu0 0
      %709 = vmatpush1.bf16.msra.mxu0 0
      %710 = vmatprep.subr.bf16.mxu0 0
      %711 = vmatpush1.bf16.msra.mxu0 0
      %712 = vmatprep.subr.bf16.mxu0 0
      %713 = vmatpush1.bf16.msra.mxu0 0
      %714 = vmatprep.subr.bf16.mxu0 0
      %715 = vmatpush1.bf16.msra.mxu0 0
      %716 = vmatprep.subr.bf16.mxu0 0
      %717 = vmatpush1.bf16.msra.mxu0 0
      %718 = vmatprep.subr.bf16.mxu0 0
      %719 = vmatpush1.bf16.msra.mxu0 0
      %720 = vmatprep.subr.bf16.mxu0 0
      %721 = vmatpush1.bf16.msra.mxu0 0
      %722 = vmatprep.subr.bf16.mxu0 0
      %723 = vmatpush1.bf16.msra.mxu0 0
      %724 = vmatprep.subr.bf16.mxu0 0
      %725 = vmatpush1.bf16.msra.mxu0 0
      %726 = vmatprep.subr.bf16.mxu0 0
      %727 = vmatpush1.bf16.msra.mxu0 0
      %728 = vmatprep.subr.bf16.mxu0 0
      %729 = vmatpush1.bf16.msra.mxu0 0
      %730 = vmatprep.mubr.bf16.mxu0 0
      %731 = vmatmul.mubr.bf16.gmra.mrb[0].mxu0 %v668
      %v732 = vpop.f32.mrb[0].mxu0
      %v733 = vadd.f32 0.0, %v732
      %v734 = vpop.f32.mrb[0].mxu0
      %v735 = vpop.f32.mrb[0].mxu0
      %v736 = vadd.f32 0.0, %v735
      %v737 = vpop.f32.mrb[0].mxu0
      %738 = vmatprep.mubr.bf16.mxu0 0
      %739 = vmatmul.mubr.bf16.gmra.mrb[0].mxu0 %v671
      %v740 = vpop.f32.mrb[0].mxu0
      %v741 = vadd.f32 0.0, %v740
      %v742 = vpop.f32.mrb[0].mxu0
      %v743 = vpop.f32.mrb[0].mxu0
      %v744 = vadd.f32 0.0, %v743
      %v745 = vpop.f32.mrb[0].mxu0
      %746 = vmatprep.mubr.bf16.mxu0 0
      %747 = vmatmul.mubr.bf16.gmra.mrb[0].mxu0 %v674
      %v748 = vpop.f32.mrb[0].mxu0
      %v749 = vadd.f32 0.0, %v748
      %v750 = vpop.f32.mrb[0].mxu0
      %v751 = vpop.f32.mrb[0].mxu0
      %v752 = vadd.f32 0.0, %v751
      %v753 = vpop.f32.mrb[0].mxu0
      %754 = vmatprep.mubr.bf16.mxu0 0
      %755 = vmatmul.mubr.bf16.gmra.mrb[0].mxu0 %v677
      %v756 = vpop.f32.mrb[0].mxu0
      %v757 = vadd.f32 0.0, %v756
      %v758 = vpop.f32.mrb[0].mxu0
      %v759 = vpop.f32.mrb[0].mxu0
      %v760 = vadd.f32 0.0, %v759
      %v761 = vpop.f32.mrb[0].mxu0
      %762 = vmatprep.mubr.bf16.mxu0 0
      %763 = vmatmul.mubr.bf16.gmra.mrb[0].mxu0 %v680
      %v764 = vpop.f32.mrb[0].mxu0
      %v765 = vadd.f32 0.0, %v764
      %v766 = vpop.f32.mrb[0].mxu0
      %v767 = vpop.f32.mrb[0].mxu0
      %v768 = vadd.f32 0.0, %v767
      %v769 = vpop.f32.mrb[0].mxu0
      %770 = vmatprep.mubr.bf16.mxu0 0
      %771 = vmatmul.mubr.bf16.gmra.mrb[0].mxu0 %v683
      %v772 = vpop.f32.mrb[0].mxu0
      %v773 = vadd.f32 0.0, %v772
      %v774 = vpop.f32.mrb[0].mxu0
      %v775 = vpop.f32.mrb[0].mxu0
      %v776 = vadd.f32 0.0, %v775
      %v777 = vpop.f32.mrb[0].mxu0
      %778 = vmatprep.mubr.bf16.mxu0 0
      %779 = vmatmul.mubr.bf16.gmra.mrb[0].mxu0 %v686
      %v780 = vpop.f32.mrb[0].mxu0
      %v781 = vadd.f32 0.0, %v780
      %v782 = vpop.f32.mrb[0].mxu0
      %v783 = vpop.f32.mrb[0].mxu0
      %v784 = vadd.f32 0.0, %v783
      %v785 = vpop.f32.mrb[0].mxu0
      %786 = vmatprep.mubr.bf16.mxu0 0
      %787 = vmatmul.mubr.bf16.gmra.mrb[0].mxu0 %v689
      %v788 = vpop.f32.mrb[0].mxu0
      %v789 = vadd.f32 0.0, %v788
      %v790 = vpop.f32.mrb[0].mxu0
      %v791 = vpop.f32.mrb[0].mxu0
      %v792 = vadd.f32 0.0, %v791
      %v793 = vpop.f32.mrb[0].mxu0
      %794 = vmatprep.mubr.bf16.mxu0 0
      %795 = vmatmul.mubr.bf16.gmra.mrb[0].mxu0 %v692
      %v796 = vpop.f32.mrb[0].mxu0
      %v797 = vadd.f32 0.0, %v796
      %v798 = vpop.f32.mrb[0].mxu0
      %v799 = vpop.f32.mrb[0].mxu0
      %v800 = vpop.f32.mrb[0].mxu0
      %801 = vdwg.mxu0
      %v802 = vadd.f32 %v649, %v733
      %v803 = vadd.f32 %v650, %v736
      %v804 = vadd.f32 %v651, %v741
      %v805 = vadd.f32 %v652, %v744
      %v806 = vadd.f32 %v653, %v749
      %v807 = vadd.f32 %v654, %v752
      %v808 = vadd.f32 %v655, %v757
      %v809 = vadd.f32 %v656, %v760
      %v810 = vadd.f32 %v657, %v765
      %v811 = vadd.f32 %v658, %v768
      %v812 = vadd.f32 %v659, %v773
      %v813 = vadd.f32 %v660, %v776
      %v814 = vadd.f32 %v661, %v781
      %v815 = vadd.f32 %v662, %v784
      %v816 = vadd.f32 %v663, %v789
      %v817 = vadd.f32 %v664, %v792
      %v818 = vadd.f32 %v665, %v797
      %819 = vst.msk [vmem:[#allocation5] sm:$0xff] %vm604, %v802
      %820 = vst.msk [vmem:[#allocation5 + $0x8] sm:$0xff] %vm604, %v803
      %821 = vst.msk [vmem:[#allocation5 + $0x10] sm:$0xff] %vm604, %v804
      %822 = vst.msk [vmem:[#allocation5 + $0x18] sm:$0xff] %vm604, %v805
      %823 = vst.msk [vmem:[#allocation5 + $0x20] sm:$0xff] %vm604, %v806
      %824 = vst.msk [vmem:[#allocation5 + $0x28] sm:$0xff] %vm604, %v807
      %825 = vst.msk [vmem:[#allocation5 + $0x30] sm:$0xff] %vm604, %v808
      %826 = vst.msk [vmem:[#allocation5 + $0x38] sm:$0xff] %vm604, %v809
      %827 = vst.msk [vmem:[#allocation5 + $0x40] sm:$0xff] %vm604, %v810
      %828 = vst.msk [vmem:[#allocation5 + $0x48] sm:$0xff] %vm604, %v811
      %829 = vst.msk [vmem:[#allocation5 + $0x50] sm:$0xff] %vm604, %v812
      %830 = vst.msk [vmem:[#allocation5 + $0x58] sm:$0xff] %vm604, %v813
      %831 = vst.msk [vmem:[#allocation5 + $0x60] sm:$0xff] %vm604, %v814
      %832 = vst.msk [vmem:[#allocation5 + $0x68] sm:$0xff] %vm604, %v815
      %833 = vst.msk [vmem:[#allocation5 + $0x70] sm:$0xff] %vm604, %v816
      %834 = vst.msk [vmem:[#allocation5 + $0x78] sm:$0xff] %vm604, %v817
      %835 = vst.msk [vmem:[#allocation5 + $0x80] sm:$0x3f] %vm621, %v818
      %v836 = vld [vmem:[#allocation3] sm:$0xff]
      %v837 = vld [vmem:[#allocation3 + $0x8] sm:$0xff]
      %v838 = vld [vmem:[#allocation3 + $0x10] sm:$0xff]
      %v839 = vld [vmem:[#allocation3 + $0x18] sm:$0xff]
      %v840 = vld [vmem:[#allocation3 + $0x20] sm:$0xff]
      %v841 = vld [vmem:[#allocation3 + $0x28] sm:$0xff]
      %v842 = vld [vmem:[#allocation3 + $0x30] sm:$0xff]
      %v843 = vld [vmem:[#allocation3 + $0x38] sm:$0xff]
      %v844 = vld [vmem:[#allocation3 + $0x40] sm:$0xff]
      %v845 = vld [vmem:[#allocation3 + $0x48] sm:$0xff]
      %v846 = vld [vmem:[#allocation3 + $0x50] sm:$0xff]
      %v847 = vld [vmem:[#allocation3 + $0x58] sm:$0xff]
      %v848 = vld [vmem:[#allocation3 + $0x60] sm:$0xff]
      %v849 = vld [vmem:[#allocation3 + $0x68] sm:$0xff]
      %v850 = vld [vmem:[#allocation3 + $0x70] sm:$0xff]
      %v851 = vld [vmem:[#allocation3 + $0x78] sm:$0xff]
      %v852 = vld [vmem:[#allocation3 + $0x80] sm:$0x3f]
      %v853 = vpack.c.bf16 %v837, %v836
      %v854 = vpack.c.bf16 %v839, %v838
      %v855 = vpack.c.bf16 %v841, %v840
      %v856 = vpack.c.bf16 %v843, %v842
      %v857 = vpack.c.bf16 %v845, %v844
      %v858 = vpack.c.bf16 %v847, %v846
      %v859 = vpack.c.bf16 %v849, %v848
      %v860 = vpack.c.bf16 %v851, %v850
      %v861 = vpack.c.bf16 %v852, %v852
      %v862 = vld [vmem:[#allocation5] sm:$0xff]
      %v863 = vld [vmem:[#allocation5 + $0x8] sm:$0xff]
      %v864 = vld [vmem:[#allocation5 + $0x10] sm:$0xff]
      %v865 = vld [vmem:[#allocation5 + $0x18] sm:$0xff]
      %v866 = vld [vmem:[#allocation5 + $0x20] sm:$0xff]
      %v867 = vld [vmem:[#allocation5 + $0x28] sm:$0xff]
      %v868 = vld [vmem:[#allocation5 + $0x30] sm:$0xff]
      %v869 = vld [vmem:[#allocation5 + $0x38] sm:$0xff]
      %v870 = vld [vmem:[#allocation5 + $0x40] sm:$0xff]
      %v871 = vld [vmem:[#allocation5 + $0x48] sm:$0xff]
      %v872 = vld [vmem:[#allocation5 + $0x50] sm:$0xff]
      %v873 = vld [vmem:[#allocation5 + $0x58] sm:$0xff]
      %v874 = vld [vmem:[#allocation5 + $0x60] sm:$0xff]
      %v875 = vld [vmem:[#allocation5 + $0x68] sm:$0xff]
      %v876 = vld [vmem:[#allocation5 + $0x70] sm:$0xff]
      %v877 = vld [vmem:[#allocation5 + $0x78] sm:$0xff]
      %v878 = vld [vmem:[#allocation5 + $0x80] sm:$0x3f]
      %s879 = scalar_lea.vmem %s4, 2
      %v880 = vld [vmem:[%s879] sm:$0x3]
      %v882 = vsel %vm358, %v853, 0
      %v885 = vsel %vm358, %v854, 0
      %v888 = vsel %vm358, %v855, 0
      %v891 = vsel %vm358, %v856, 0
      %v894 = vsel %vm358, %v857, 0
      %v897 = vsel %vm358, %v858, 0
      %v900 = vsel %vm358, %v859, 0
      %v903 = vsel %vm358, %v860, 0
      %v906 = vsel %vm358, %v861, 0
      %v909 = vsel %vm694, %v880, 0
      %911 = vmatprep.subr.bf16.mxu0 0
      %912 = vmatpush1.bf16.msra.mxu0 %v909
      %913 = vmatprep.subr.bf16.mxu0 0
      %914 = vmatpush1.bf16.msra.mxu0 0
      %915 = vmatprep.subr.bf16.mxu0 0
      %916 = vmatpush1.bf16.msra.mxu0 0
      %917 = vmatprep.subr.bf16.mxu0 0
      %918 = vmatpush1.bf16.msra.mxu0 0
      %919 = vmatprep.subr.bf16.mxu0 0
      %920 = vmatpush1.bf16.msra.mxu0 0
      %921 = vmatprep.subr.bf16.mxu0 0
      %922 = vmatpush1.bf16.msra.mxu0 0
      %923 = vmatprep.subr.bf16.mxu0 0
      %924 = vmatpush1.bf16.msra.mxu0 0
      %925 = vmatprep.subr.bf16.mxu0 0
      %926 = vmatpush1.bf16.msra.mxu0 0
      %927 = vmatprep.subr.bf16.mxu0 0
      %928 = vmatpush1.bf16.msra.mxu0 0
      %929 = vmatprep.subr.bf16.mxu0 0
      %930 = vmatpush1.bf16.msra.mxu0 0
      %931 = vmatprep.subr.bf16.mxu0 0
      %932 = vmatpush1.bf16.msra.mxu0 0
      %933 = vmatprep.subr.bf16.mxu0 0
      %934 = vmatpush1.bf16.msra.mxu0 0
      %935 = vmatprep.subr.bf16.mxu0 0
      %936 = vmatpush1.bf16.msra.mxu0 0
      %937 = vmatprep.subr.bf16.mxu0 0
      %938 = vmatpush1.bf16.msra.mxu0 0
      %939 = vmatprep.subr.bf16.mxu0 0
      %940 = vmatpush1.bf16.msra.mxu0 0
      %941 = vmatprep.subr.bf16.mxu0 0
      %942 = vmatpush1.bf16.msra.mxu0 0
      %943 = vmatprep.mubr.bf16.mxu0 0
      %944 = vmatmul.mubr.bf16.gmra.mrb[0].mxu0 %v882
      %v945 = vpop.f32.mrb[0].mxu0
      %v946 = vadd.f32 0.0, %v945
      %v947 = vpop.f32.mrb[0].mxu0
      %v948 = vpop.f32.mrb[0].mxu0
      %v949 = vadd.f32 0.0, %v948
      %v950 = vpop.f32.mrb[0].mxu0
      %951 = vmatprep.mubr.bf16.mxu0 0
      %952 = vmatmul.mubr.bf16.gmra.mrb[0].mxu0 %v885
      %v953 = vpop.f32.mrb[0].mxu0
      %v954 = vadd.f32 0.0, %v953
      %v955 = vpop.f32.mrb[0].mxu0
      %v956 = vpop.f32.mrb[0].mxu0
      %v957 = vadd.f32 0.0, %v956
      %v958 = vpop.f32.mrb[0].mxu0
      %959 = vmatprep.mubr.bf16.mxu0 0
      %960 = vmatmul.mubr.bf16.gmra.mrb[0].mxu0 %v888
      %v961 = vpop.f32.mrb[0].mxu0
      %v962 = vadd.f32 0.0, %v961
      %v963 = vpop.f32.mrb[0].mxu0
      %v964 = vpop.f32.mrb[0].mxu0
      %v965 = vadd.f32 0.0, %v964
      %v966 = vpop.f32.mrb[0].mxu0
      %967 = vmatprep.mubr.bf16.mxu0 0
      %968 = vmatmul.mubr.bf16.gmra.mrb[0].mxu0 %v891
      %v969 = vpop.f32.mrb[0].mxu0
      %v970 = vadd.f32 0.0, %v969
      %v971 = vpop.f32.mrb[0].mxu0
      %v972 = vpop.f32.mrb[0].mxu0
      %v973 = vadd.f32 0.0, %v972
      %v974 = vpop.f32.mrb[0].mxu0
      %975 = vmatprep.mubr.bf16.mxu0 0
      %976 = vmatmul.mubr.bf16.gmra.mrb[0].mxu0 %v894
      %v977 = vpop.f32.mrb[0].mxu0
      %v978 = vadd.f32 0.0, %v977
      %v979 = vpop.f32.mrb[0].mxu0
      %v980 = vpop.f32.mrb[0].mxu0
      %v981 = vadd.f32 0.0, %v980
      %v982 = vpop.f32.mrb[0].mxu0
      %983 = vmatprep.mubr.bf16.mxu0 0
      %984 = vmatmul.mubr.bf16.gmra.mrb[0].mxu0 %v897
      %v985 = vpop.f32.mrb[0].mxu0
      %v986 = vadd.f32 0.0, %v985
      %v987 = vpop.f32.mrb[0].mxu0
      %v988 = vpop.f32.mrb[0].mxu0
      %v989 = vadd.f32 0.0, %v988
      %v990 = vpop.f32.mrb[0].mxu0
      %991 = vmatprep.mubr.bf16.mxu0 0
      %992 = vmatmul.mubr.bf16.gmra.mrb[0].mxu0 %v900
      %v993 = vpop.f32.mrb[0].mxu0
      %v994 = vadd.f32 0.0, %v993
      %v995 = vpop.f32.mrb[0].mxu0
      %v996 = vpop.f32.mrb[0].mxu0
      %v997 = vadd.f32 0.0, %v996
      %v998 = vpop.f32.mrb[0].mxu0
      %999 = vmatprep.mubr.bf16.mxu0 0
      %1000 = vmatmul.mubr.bf16.gmra.mrb[0].mxu0 %v903
      %v1001 = vpop.f32.mrb[0].mxu0
      %v1002 = vadd.f32 0.0, %v1001
      %v1003 = vpop.f32.mrb[0].mxu0
      %v1004 = vpop.f32.mrb[0].mxu0
      %v1005 = vadd.f32 0.0, %v1004
      %v1006 = vpop.f32.mrb[0].mxu0
      %1007 = vmatprep.mubr.bf16.mxu0 0
      %1008 = vmatmul.mubr.bf16.gmra.mrb[0].mxu0 %v906
      %v1009 = vpop.f32.mrb[0].mxu0
      %v1010 = vadd.f32 0.0, %v1009
      %v1011 = vpop.f32.mrb[0].mxu0
      %v1012 = vpop.f32.mrb[0].mxu0
      %v1013 = vpop.f32.mrb[0].mxu0
      %1014 = vdwg.mxu0
      %v1015 = vadd.f32 %v862, %v946
      %v1016 = vadd.f32 %v863, %v949
      %v1017 = vadd.f32 %v864, %v954
      %v1018 = vadd.f32 %v865, %v957
      %v1019 = vadd.f32 %v866, %v962
      %v1020 = vadd.f32 %v867, %v965
      %v1021 = vadd.f32 %v868, %v970
      %v1022 = vadd.f32 %v869, %v973
      %v1023 = vadd.f32 %v870, %v978
      %v1024 = vadd.f32 %v871, %v981
      %v1025 = vadd.f32 %v872, %v986
      %v1026 = vadd.f32 %v873, %v989
      %v1027 = vadd.f32 %v874, %v994
      %v1028 = vadd.f32 %v875, %v997
      %v1029 = vadd.f32 %v876, %v1002
      %v1030 = vadd.f32 %v877, %v1005
      %v1031 = vadd.f32 %v878, %v1010
      %1032 = vst.msk [vmem:[#allocation5] sm:$0xff] %vm604, %v1015
      %1033 = vst.msk [vmem:[#allocation5 + $0x8] sm:$0xff] %vm604, %v1016
      %1034 = vst.msk [vmem:[#allocation5 + $0x10] sm:$0xff] %vm604, %v1017
      %1035 = vst.msk [vmem:[#allocation5 + $0x18] sm:$0xff] %vm604, %v1018
      %1036 = vst.msk [vmem:[#allocation5 + $0x20] sm:$0xff] %vm604, %v1019
      %1037 = vst.msk [vmem:[#allocation5 + $0x28] sm:$0xff] %vm604, %v1020
      %1038 = vst.msk [vmem:[#allocation5 + $0x30] sm:$0xff] %vm604, %v1021
      %1039 = vst.msk [vmem:[#allocation5 + $0x38] sm:$0xff] %vm604, %v1022
      %1040 = vst.msk [vmem:[#allocation5 + $0x40] sm:$0xff] %vm604, %v1023
      %1041 = vst.msk [vmem:[#allocation5 + $0x48] sm:$0xff] %vm604, %v1024
      %1042 = vst.msk [vmem:[#allocation5 + $0x50] sm:$0xff] %vm604, %v1025
      %1043 = vst.msk [vmem:[#allocation5 + $0x58] sm:$0xff] %vm604, %v1026
      %1044 = vst.msk [vmem:[#allocation5 + $0x60] sm:$0xff] %vm604, %v1027
      %1045 = vst.msk [vmem:[#allocation5 + $0x68] sm:$0xff] %vm604, %v1028
      %1046 = vst.msk [vmem:[#allocation5 + $0x70] sm:$0xff] %vm604, %v1029
      %1047 = vst.msk [vmem:[#allocation5 + $0x78] sm:$0xff] %vm604, %v1030
      %1048 = vst.msk [vmem:[#allocation5 + $0x80] sm:$0x3f] %vm621, %v1031
      %v1049 = vld [vmem:[#allocation2 + $0x1] sm:$0xff]
      %v1050 = vld [vmem:[#allocation2 + $0x9] sm:$0xff]
      %v1051 = vld [vmem:[#allocation2 + $0x11] sm:$0xff]
      %v1052 = vld [vmem:[#allocation2 + $0x19] sm:$0xff]
      %v1053 = vld [vmem:[#allocation2 + $0x21] sm:$0xff]
      %v1054 = vld [vmem:[#allocation2 + $0x29] sm:$0xff]
      %v1055 = vld [vmem:[#allocation2 + $0x31] sm:$0xff]
      %v1056 = vld [vmem:[#allocation2 + $0x39] sm:$0xff]
      %v1057 = vld [vmem:[#allocation2 + $0x41] sm:$0xff]
      %v1058 = vld [vmem:[#allocation2 + $0x49] sm:$0xff]
      %v1059 = vld [vmem:[#allocation2 + $0x51] sm:$0xff]
      %v1060 = vld [vmem:[#allocation2 + $0x59] sm:$0xff]
      %v1061 = vld [vmem:[#allocation2 + $0x61] sm:$0xff]
      %v1062 = vld [vmem:[#allocation2 + $0x69] sm:$0xff]
      %v1063 = vld [vmem:[#allocation2 + $0x71] sm:$0xff]
      %v1064 = vld [vmem:[#allocation2 + $0x79] sm:$0xff]
      %v1065 = vld [vmem:[#allocation2 + $0x81] sm:$0x3f]
      %v1066 = vpack.c.bf16 %v1050, %v1049
      %v1067 = vpack.c.bf16 %v1052, %v1051
      %v1068 = vpack.c.bf16 %v1054, %v1053
      %v1069 = vpack.c.bf16 %v1056, %v1055
      %v1070 = vpack.c.bf16 %v1058, %v1057
      %v1071 = vpack.c.bf16 %v1060, %v1059
      %v1072 = vpack.c.bf16 %v1062, %v1061
      %v1073 = vpack.c.bf16 %v1064, %v1063
      %v1074 = vpack.c.bf16 %v1065, %v1065
      %v1075 = vld [vmem:[#allocation5] sm:$0xff]
      %v1076 = vld [vmem:[#allocation5 + $0x8] sm:$0xff]
      %v1077 = vld [vmem:[#allocation5 + $0x10] sm:$0xff]
      %v1078 = vld [vmem:[#allocation5 + $0x18] sm:$0xff]
      %v1079 = vld [vmem:[#allocation5 + $0x20] sm:$0xff]
      %v1080 = vld [vmem:[#allocation5 + $0x28] sm:$0xff]
      %v1081 = vld [vmem:[#allocation5 + $0x30] sm:$0xff]
      %v1082 = vld [vmem:[#allocation5 + $0x38] sm:$0xff]
      %v1083 = vld [vmem:[#allocation5 + $0x40] sm:$0xff]
      %v1084 = vld [vmem:[#allocation5 + $0x48] sm:$0xff]
      %v1085 = vld [vmem:[#allocation5 + $0x50] sm:$0xff]
      %v1086 = vld [vmem:[#allocation5 + $0x58] sm:$0xff]
      %v1087 = vld [vmem:[#allocation5 + $0x60] sm:$0xff]
      %v1088 = vld [vmem:[#allocation5 + $0x68] sm:$0xff]
      %v1089 = vld [vmem:[#allocation5 + $0x70] sm:$0xff]
      %v1090 = vld [vmem:[#allocation5 + $0x78] sm:$0xff]
      %v1091 = vld [vmem:[#allocation5 + $0x80] sm:$0x3f]
      %s1092 = scalar_lea.vmem %s4, 4
      %v1093 = vld [vmem:[%s1092] sm:$0x3]
      %v1095 = vsel %vm358, %v1066, 0
      %v1098 = vsel %vm358, %v1067, 0
      %v1101 = vsel %vm358, %v1068, 0
      %v1104 = vsel %vm358, %v1069, 0
      %v1107 = vsel %vm358, %v1070, 0
      %v1110 = vsel %vm358, %v1071, 0
      %v1113 = vsel %vm358, %v1072, 0
      %v1116 = vsel %vm358, %v1073, 0
      %v1119 = vsel %vm358, %v1074, 0
      %v1122 = vsel %vm694, %v1093, 0
      %1124 = vmatprep.subr.bf16.mxu0 0
      %1125 = vmatpush1.bf16.msra.mxu0 %v1122
      %1126 = vmatprep.subr.bf16.mxu0 0
      %1127 = vmatpush1.bf16.msra.mxu0 0
      %1128 = vmatprep.subr.bf16.mxu0 0
      %1129 = vmatpush1.bf16.msra.mxu0 0
      %1130 = vmatprep.subr.bf16.mxu0 0
      %1131 = vmatpush1.bf16.msra.mxu0 0
      %1132 = vmatprep.subr.bf16.mxu0 0
      %1133 = vmatpush1.bf16.msra.mxu0 0
      %1134 = vmatprep.subr.bf16.mxu0 0
      %1135 = vmatpush1.bf16.msra.mxu0 0
      %1136 = vmatprep.subr.bf16.mxu0 0
      %1137 = vmatpush1.bf16.msra.mxu0 0
      %1138 = vmatprep.subr.bf16.mxu0 0
      %1139 = vmatpush1.bf16.msra.mxu0 0
      %1140 = vmatprep.subr.bf16.mxu0 0
      %1141 = vmatpush1.bf16.msra.mxu0 0
      %1142 = vmatprep.subr.bf16.mxu0 0
      %1143 = vmatpush1.bf16.msra.mxu0 0
      %1144 = vmatprep.subr.bf16.mxu0 0
      %1145 = vmatpush1.bf16.msra.mxu0 0
      %1146 = vmatprep.subr.bf16.mxu0 0
      %1147 = vmatpush1.bf16.msra.mxu0 0
      %1148 = vmatprep.subr.bf16.mxu0 0
      %1149 = vmatpush1.bf16.msra.mxu0 0
      %1150 = vmatprep.subr.bf16.mxu0 0
      %1151 = vmatpush1.bf16.msra.mxu0 0
      %1152 = vmatprep.subr.bf16.mxu0 0
      %1153 = vmatpush1.bf16.msra.mxu0 0
      %1154 = vmatprep.subr.bf16.mxu0 0
      %1155 = vmatpush1.bf16.msra.mxu0 0
      %1156 = vmatprep.mubr.bf16.mxu0 0
      %1157 = vmatmul.mubr.bf16.gmra.mrb[0].mxu0 %v1095
      %v1158 = vpop.f32.mrb[0].mxu0
      %v1159 = vadd.f32 0.0, %v1158
      %v1160 = vpop.f32.mrb[0].mxu0
      %v1161 = vpop.f32.mrb[0].mxu0
      %v1162 = vadd.f32 0.0, %v1161
      %v1163 = vpop.f32.mrb[0].mxu0
      %1164 = vmatprep.mubr.bf16.mxu0 0
      %1165 = vmatmul.mubr.bf16.gmra.mrb[0].mxu0 %v1098
      %v1166 = vpop.f32.mrb[0].mxu0
      %v1167 = vadd.f32 0.0, %v1166
      %v1168 = vpop.f32.mrb[0].mxu0
      %v1169 = vpop.f32.mrb[0].mxu0
      %v1170 = vadd.f32 0.0, %v1169
      %v1171 = vpop.f32.mrb[0].mxu0
      %1172 = vmatprep.mubr.bf16.mxu0 0
      %1173 = vmatmul.mubr.bf16.gmra.mrb[0].mxu0 %v1101
      %v1174 = vpop.f32.mrb[0].mxu0
      %v1175 = vadd.f32 0.0, %v1174
      %v1176 = vpop.f32.mrb[0].mxu0
      %v1177 = vpop.f32.mrb[0].mxu0
      %v1178 = vadd.f32 0.0, %v1177
      %v1179 = vpop.f32.mrb[0].mxu0
      %1180 = vmatprep.mubr.bf16.mxu0 0
      %1181 = vmatmul.mubr.bf16.gmra.mrb[0].mxu0 %v1104
      %v1182 = vpop.f32.mrb[0].mxu0
      %v1183 = vadd.f32 0.0, %v1182
      %v1184 = vpop.f32.mrb[0].mxu0
      %v1185 = vpop.f32.mrb[0].mxu0
      %v1186 = vadd.f32 0.0, %v1185
      %v1187 = vpop.f32.mrb[0].mxu0
      %1188 = vmatprep.mubr.bf16.mxu0 0
      %1189 = vmatmul.mubr.bf16.gmra.mrb[0].mxu0 %v1107
      %v1190 = vpop.f32.mrb[0].mxu0
      %v1191 = vadd.f32 0.0, %v1190
      %v1192 = vpop.f32.mrb[0].mxu0
      %v1193 = vpop.f32.mrb[0].mxu0
      %v1194 = vadd.f32 0.0, %v1193
      %v1195 = vpop.f32.mrb[0].mxu0
      %1196 = vmatprep.mubr.bf16.mxu0 0
      %1197 = vmatmul.mubr.bf16.gmra.mrb[0].mxu0 %v1110
      %v1198 = vpop.f32.mrb[0].mxu0
      %v1199 = vadd.f32 0.0, %v1198
      %v1200 = vpop.f32.mrb[0].mxu0
      %v1201 = vpop.f32.mrb[0].mxu0
      %v1202 = vadd.f32 0.0, %v1201
      %v1203 = vpop.f32.mrb[0].mxu0
      %1204 = vmatprep.mubr.bf16.mxu0 0
      %1205 = vmatmul.mubr.bf16.gmra.mrb[0].mxu0 %v1113
      %v1206 = vpop.f32.mrb[0].mxu0
      %v1207 = vadd.f32 0.0, %v1206
      %v1208 = vpop.f32.mrb[0].mxu0
      %v1209 = vpop.f32.mrb[0].mxu0
      %v1210 = vadd.f32 0.0, %v1209
      %v1211 = vpop.f32.mrb[0].mxu0
      %1212 = vmatprep.mubr.bf16.mxu0 0
      %1213 = vmatmul.mubr.bf16.gmra.mrb[0].mxu0 %v1116
      %v1214 = vpop.f32.mrb[0].mxu0
      %v1215 = vadd.f32 0.0, %v1214
      %v1216 = vpop.f32.mrb[0].mxu0
      %v1217 = vpop.f32.mrb[0].mxu0
      %v1218 = vadd.f32 0.0, %v1217
      %v1219 = vpop.f32.mrb[0].mxu0
      %1220 = vmatprep.mubr.bf16.mxu0 0
      %1221 = vmatmul.mubr.bf16.gmra.mrb[0].mxu0 %v1119
      %v1222 = vpop.f32.mrb[0].mxu0
      %v1223 = vadd.f32 0.0, %v1222
      %v1224 = vpop.f32.mrb[0].mxu0
      %v1225 = vpop.f32.mrb[0].mxu0
      %v1226 = vpop.f32.mrb[0].mxu0
      %1227 = vdwg.mxu0
      %v1228 = vadd.f32 %v1075, %v1159
      %v1229 = vadd.f32 %v1076, %v1162
      %v1230 = vadd.f32 %v1077, %v1167
      %v1231 = vadd.f32 %v1078, %v1170
      %v1232 = vadd.f32 %v1079, %v1175
      %v1233 = vadd.f32 %v1080, %v1178
      %v1234 = vadd.f32 %v1081, %v1183
      %v1235 = vadd.f32 %v1082, %v1186
      %v1236 = vadd.f32 %v1083, %v1191
      %v1237 = vadd.f32 %v1084, %v1194
      %v1238 = vadd.f32 %v1085, %v1199
      %v1239 = vadd.f32 %v1086, %v1202
      %v1240 = vadd.f32 %v1087, %v1207
      %v1241 = vadd.f32 %v1088, %v1210
      %v1242 = vadd.f32 %v1089, %v1215
      %v1243 = vadd.f32 %v1090, %v1218
      %v1244 = vadd.f32 %v1091, %v1223
      %1245 = vst.msk [vmem:[#allocation5] sm:$0xff] %vm604, %v1228
      %1246 = vst.msk [vmem:[#allocation5 + $0x8] sm:$0xff] %vm604, %v1229
      %1247 = vst.msk [vmem:[#allocation5 + $0x10] sm:$0xff] %vm604, %v1230
      %1248 = vst.msk [vmem:[#allocation5 + $0x18] sm:$0xff] %vm604, %v1231
      %1249 = vst.msk [vmem:[#allocation5 + $0x20] sm:$0xff] %vm604, %v1232
      %1250 = vst.msk [vmem:[#allocation5 + $0x28] sm:$0xff] %vm604, %v1233
      %1251 = vst.msk [vmem:[#allocation5 + $0x30] sm:$0xff] %vm604, %v1234
      %1252 = vst.msk [vmem:[#allocation5 + $0x38] sm:$0xff] %vm604, %v1235
      %1253 = vst.msk [vmem:[#allocation5 + $0x40] sm:$0xff] %vm604, %v1236
      %1254 = vst.msk [vmem:[#allocation5 + $0x48] sm:$0xff] %vm604, %v1237
      %1255 = vst.msk [vmem:[#allocation5 + $0x50] sm:$0xff] %vm604, %v1238
      %1256 = vst.msk [vmem:[#allocation5 + $0x58] sm:$0xff] %vm604, %v1239
      %1257 = vst.msk [vmem:[#allocation5 + $0x60] sm:$0xff] %vm604, %v1240
      %1258 = vst.msk [vmem:[#allocation5 + $0x68] sm:$0xff] %vm604, %v1241
      %1259 = vst.msk [vmem:[#allocation5 + $0x70] sm:$0xff] %vm604, %v1242
      %1260 = vst.msk [vmem:[#allocation5 + $0x78] sm:$0xff] %vm604, %v1243
      %1261 = vst.msk [vmem:[#allocation5 + $0x80] sm:$0x3f] %vm621, %v1244
      %v1262 = vld [vmem:[#allocation2 + $0x9] sm:$0xff]
      %v1263 = vld [vmem:[#allocation2 + $0x11] sm:$0xff]
      %v1264 = vld [vmem:[#allocation2 + $0x19] sm:$0xff]
      %v1265 = vld [vmem:[#allocation2 + $0x21] sm:$0xff]
      %v1266 = vld [vmem:[#allocation2 + $0x29] sm:$0xff]
      %v1267 = vld [vmem:[#allocation2 + $0x31] sm:$0xff]
      %v1268 = vld [vmem:[#allocation2 + $0x39] sm:$0xff]
      %v1269 = vld [vmem:[#allocation2 + $0x41] sm:$0xff]
      %v1270 = vld [vmem:[#allocation2 + $0x49] sm:$0xff]
      %v1271 = vld [vmem:[#allocation2 + $0x51] sm:$0xff]
      %v1272 = vld [vmem:[#allocation2 + $0x59] sm:$0xff]
      %v1273 = vld [vmem:[#allocation2 + $0x61] sm:$0xff]
      %v1274 = vld [vmem:[#allocation2 + $0x69] sm:$0xff]
      %v1275 = vld [vmem:[#allocation2 + $0x71] sm:$0xff]
      %v1276 = vld [vmem:[#allocation2 + $0x79] sm:$0xff]
      %v1277 = vld [vmem:[#allocation2 + $0x81] sm:$0xff]
      %v1278 = vld [vmem:[#allocation2 + $0x89] sm:$0x3f]
      %v1279 = vpack.c.bf16 %v1263, %v1262
      %v1280 = vpack.c.bf16 %v1265, %v1264
      %v1281 = vpack.c.bf16 %v1267, %v1266
      %v1282 = vpack.c.bf16 %v1269, %v1268
      %v1283 = vpack.c.bf16 %v1271, %v1270
      %v1284 = vpack.c.bf16 %v1273, %v1272
      %v1285 = vpack.c.bf16 %v1275, %v1274
      %v1286 = vpack.c.bf16 %v1277, %v1276
      %v1287 = vpack.c.bf16 %v1278, %v1278
      %v1288 = vld [vmem:[#allocation5] sm:$0xff]
      %v1289 = vld [vmem:[#allocation5 + $0x8] sm:$0xff]
      %v1290 = vld [vmem:[#allocation5 + $0x10] sm:$0xff]
      %v1291 = vld [vmem:[#allocation5 + $0x18] sm:$0xff]
      %v1292 = vld [vmem:[#allocation5 + $0x20] sm:$0xff]
      %v1293 = vld [vmem:[#allocation5 + $0x28] sm:$0xff]
      %v1294 = vld [vmem:[#allocation5 + $0x30] sm:$0xff]
      %v1295 = vld [vmem:[#allocation5 + $0x38] sm:$0xff]
      %v1296 = vld [vmem:[#allocation5 + $0x40] sm:$0xff]
      %v1297 = vld [vmem:[#allocation5 + $0x48] sm:$0xff]
      %v1298 = vld [vmem:[#allocation5 + $0x50] sm:$0xff]
      %v1299 = vld [vmem:[#allocation5 + $0x58] sm:$0xff]
      %v1300 = vld [vmem:[#allocation5 + $0x60] sm:$0xff]
      %v1301 = vld [vmem:[#allocation5 + $0x68] sm:$0xff]
      %v1302 = vld [vmem:[#allocation5 + $0x70] sm:$0xff]
      %v1303 = vld [vmem:[#allocation5 + $0x78] sm:$0xff]
      %v1304 = vld [vmem:[#allocation5 + $0x80] sm:$0x3f]
      %s1305 = scalar_lea.vmem %s4, 6
      %v1306 = vld [vmem:[%s1305] sm:$0x3]
      %v1308 = vsel %vm358, %v1279, 0
      %v1311 = vsel %vm358, %v1280, 0
      %v1314 = vsel %vm358, %v1281, 0
      %v1317 = vsel %vm358, %v1282, 0
      %v1320 = vsel %vm358, %v1283, 0
      %v1323 = vsel %vm358, %v1284, 0
      %v1326 = vsel %vm358, %v1285, 0
      %v1329 = vsel %vm358, %v1286, 0
      %v1332 = vsel %vm358, %v1287, 0
      %v1335 = vsel %vm694, %v1306, 0
      %1337 = vmatprep.subr.bf16.mxu0 0
      %1338 = vmatpush1.bf16.msra.mxu0 %v1335
      %1339 = vmatprep.subr.bf16.mxu0 0
      %1340 = vmatpush1.bf16.msra.mxu0 0
      %1341 = vmatprep.subr.bf16.mxu0 0
      %1342 = vmatpush1.bf16.msra.mxu0 0
      %1343 = vmatprep.subr.bf16.mxu0 0
      %1344 = vmatpush1.bf16.msra.mxu0 0
      %1345 = vmatprep.subr.bf16.mxu0 0
      %1346 = vmatpush1.bf16.msra.mxu0 0
      %1347 = vmatprep.subr.bf16.mxu0 0
      %1348 = vmatpush1.bf16.msra.mxu0 0
      %1349 = vmatprep.subr.bf16.mxu0 0
      %1350 = vmatpush1.bf16.msra.mxu0 0
      %1351 = vmatprep.subr.bf16.mxu0 0
      %1352 = vmatpush1.bf16.msra.mxu0 0
      %1353 = vmatprep.subr.bf16.mxu0 0
      %1354 = vmatpush1.bf16.msra.mxu0 0
      %1355 = vmatprep.subr.bf16.mxu0 0
      %1356 = vmatpush1.bf16.msra.mxu0 0
      %1357 = vmatprep.subr.bf16.mxu0 0
      %1358 = vmatpush1.bf16.msra.mxu0 0
      %1359 = vmatprep.subr.bf16.mxu0 0
      %1360 = vmatpush1.bf16.msra.mxu0 0
      %1361 = vmatprep.subr.bf16.mxu0 0
      %1362 = vmatpush1.bf16.msra.mxu0 0
      %1363 = vmatprep.subr.bf16.mxu0 0
      %1364 = vmatpush1.bf16.msra.mxu0 0
      %1365 = vmatprep.subr.bf16.mxu0 0
      %1366 = vmatpush1.bf16.msra.mxu0 0
      %1367 = vmatprep.subr.bf16.mxu0 0
      %1368 = vmatpush1.bf16.msra.mxu0 0
      %1369 = vmatprep.mubr.bf16.mxu0 0
      %1370 = vmatmul.mubr.bf16.gmra.mrb[0].mxu0 %v1308
      %v1371 = vpop.f32.mrb[0].mxu0
      %v1372 = vadd.f32 0.0, %v1371
      %v1373 = vpop.f32.mrb[0].mxu0
      %v1374 = vpop.f32.mrb[0].mxu0
      %v1375 = vadd.f32 0.0, %v1374
      %v1376 = vpop.f32.mrb[0].mxu0
      %1377 = vmatprep.mubr.bf16.mxu0 0
      %1378 = vmatmul.mubr.bf16.gmra.mrb[0].mxu0 %v1311
      %v1379 = vpop.f32.mrb[0].mxu0
      %v1380 = vadd.f32 0.0, %v1379
      %v1381 = vpop.f32.mrb[0].mxu0
      %v1382 = vpop.f32.mrb[0].mxu0
      %v1383 = vadd.f32 0.0, %v1382
      %v1384 = vpop.f32.mrb[0].mxu0
      %1385 = vmatprep.mubr.bf16.mxu0 0
      %1386 = vmatmul.mubr.bf16.gmra.mrb[0].mxu0 %v1314
      %v1387 = vpop.f32.mrb[0].mxu0
      %v1388 = vadd.f32 0.0, %v1387
      %v1389 = vpop.f32.mrb[0].mxu0
      %v1390 = vpop.f32.mrb[0].mxu0
      %v1391 = vadd.f32 0.0, %v1390
      %v1392 = vpop.f32.mrb[0].mxu0
      %1393 = vmatprep.mubr.bf16.mxu0 0
      %1394 = vmatmul.mubr.bf16.gmra.mrb[0].mxu0 %v1317
      %v1395 = vpop.f32.mrb[0].mxu0
      %v1396 = vadd.f32 0.0, %v1395
      %v1397 = vpop.f32.mrb[0].mxu0
      %v1398 = vpop.f32.mrb[0].mxu0
      %v1399 = vadd.f32 0.0, %v1398
      %v1400 = vpop.f32.mrb[0].mxu0
      %1401 = vmatprep.mubr.bf16.mxu0 0
      %1402 = vmatmul.mubr.bf16.gmra.mrb[0].mxu0 %v1320
      %v1403 = vpop.f32.mrb[0].mxu0
      %v1404 = vadd.f32 0.0, %v1403
      %v1405 = vpop.f32.mrb[0].mxu0
      %v1406 = vpop.f32.mrb[0].mxu0
      %v1407 = vadd.f32 0.0, %v1406
      %v1408 = vpop.f32.mrb[0].mxu0
      %1409 = vmatprep.mubr.bf16.mxu0 0
      %1410 = vmatmul.mubr.bf16.gmra.mrb[0].mxu0 %v1323
      %v1411 = vpop.f32.mrb[0].mxu0
      %v1412 = vadd.f32 0.0, %v1411
      %v1413 = vpop.f32.mrb[0].mxu0
      %v1414 = vpop.f32.mrb[0].mxu0
      %v1415 = vadd.f32 0.0, %v1414
      %v1416 = vpop.f32.mrb[0].mxu0
      %1417 = vmatprep.mubr.bf16.mxu0 0
      %1418 = vmatmul.mubr.bf16.gmra.mrb[0].mxu0 %v1326
      %v1419 = vpop.f32.mrb[0].mxu0
      %v1420 = vadd.f32 0.0, %v1419
      %v1421 = vpop.f32.mrb[0].mxu0
      %v1422 = vpop.f32.mrb[0].mxu0
      %v1423 = vadd.f32 0.0, %v1422
      %v1424 = vpop.f32.mrb[0].mxu0
      %1425 = vmatprep.mubr.bf16.mxu0 0
      %1426 = vmatmul.mubr.bf16.gmra.mrb[0].mxu0 %v1329
      %v1427 = vpop.f32.mrb[0].mxu0
      %v1428 = vadd.f32 0.0, %v1427
      %v1429 = vpop.f32.mrb[0].mxu0
      %v1430 = vpop.f32.mrb[0].mxu0
      %v1431 = vadd.f32 0.0, %v1430
      %v1432 = vpop.f32.mrb[0].mxu0
      %1433 = vmatprep.mubr.bf16.mxu0 0
      %1434 = vmatmul.mubr.bf16.gmra.mrb[0].mxu0 %v1332
      %v1435 = vpop.f32.mrb[0].mxu0
      %v1436 = vadd.f32 0.0, %v1435
      %v1437 = vpop.f32.mrb[0].mxu0
      %v1438 = vpop.f32.mrb[0].mxu0
      %v1439 = vpop.f32.mrb[0].mxu0
      %1440 = vdwg.mxu0
      %v1441 = vadd.f32 %v1288, %v1372
      %v1442 = vadd.f32 %v1289, %v1375
      %v1443 = vadd.f32 %v1290, %v1380
      %v1444 = vadd.f32 %v1291, %v1383
      %v1445 = vadd.f32 %v1292, %v1388
      %v1446 = vadd.f32 %v1293, %v1391
      %v1447 = vadd.f32 %v1294, %v1396
      %v1448 = vadd.f32 %v1295, %v1399
      %v1449 = vadd.f32 %v1296, %v1404
      %v1450 = vadd.f32 %v1297, %v1407
      %v1451 = vadd.f32 %v1298, %v1412
      %v1452 = vadd.f32 %v1299, %v1415
      %v1453 = vadd.f32 %v1300, %v1420
      %v1454 = vadd.f32 %v1301, %v1423
      %v1455 = vadd.f32 %v1302, %v1428
      %v1456 = vadd.f32 %v1303, %v1431
      %v1457 = vadd.f32 %v1304, %v1436
      %1458 = vst.msk [vmem:[#allocation5] sm:$0xff] %vm604, %v1441
      %1459 = vst.msk [vmem:[#allocation5 + $0x8] sm:$0xff] %vm604, %v1442
      %1460 = vst.msk [vmem:[#allocation5 + $0x10] sm:$0xff] %vm604, %v1443
      %1461 = vst.msk [vmem:[#allocation5 + $0x18] sm:$0xff] %vm604, %v1444
      %1462 = vst.msk [vmem:[#allocation5 + $0x20] sm:$0xff] %vm604, %v1445
      %1463 = vst.msk [vmem:[#allocation5 + $0x28] sm:$0xff] %vm604, %v1446
      %1464 = vst.msk [vmem:[#allocation5 + $0x30] sm:$0xff] %vm604, %v1447
      %1465 = vst.msk [vmem:[#allocation5 + $0x38] sm:$0xff] %vm604, %v1448
      %1466 = vst.msk [vmem:[#allocation5 + $0x40] sm:$0xff] %vm604, %v1449
      %1467 = vst.msk [vmem:[#allocation5 + $0x48] sm:$0xff] %vm604, %v1450
      %1468 = vst.msk [vmem:[#allocation5 + $0x50] sm:$0xff] %vm604, %v1451
      %1469 = vst.msk [vmem:[#allocation5 + $0x58] sm:$0xff] %vm604, %v1452
      %1470 = vst.msk [vmem:[#allocation5 + $0x60] sm:$0xff] %vm604, %v1453
      %1471 = vst.msk [vmem:[#allocation5 + $0x68] sm:$0xff] %vm604, %v1454
      %1472 = vst.msk [vmem:[#allocation5 + $0x70] sm:$0xff] %vm604, %v1455
      %1473 = vst.msk [vmem:[#allocation5 + $0x78] sm:$0xff] %vm604, %v1456
      %1474 = vst.msk [vmem:[#allocation5 + $0x80] sm:$0x3f] %vm621, %v1457
      %v1475 = vld [vmem:[#allocation3 + $0x9] sm:$0xff]
      %v1476 = vld [vmem:[#allocation3 + $0x11] sm:$0xff]
      %v1477 = vld [vmem:[#allocation3 + $0x19] sm:$0xff]
      %v1478 = vld [vmem:[#allocation3 + $0x21] sm:$0xff]
      %v1479 = vld [vmem:[#allocation3 + $0x29] sm:$0xff]
      %v1480 = vld [vmem:[#allocation3 + $0x31] sm:$0xff]
      %v1481 = vld [vmem:[#allocation3 + $0x39] sm:$0xff]
      %v1482 = vld [vmem:[#allocation3 + $0x41] sm:$0xff]
      %v1483 = vld [vmem:[#allocation3 + $0x49] sm:$0xff]
      %v1484 = vld [vmem:[#allocation3 + $0x51] sm:$0xff]
      %v1485 = vld [vmem:[#allocation3 + $0x59] sm:$0xff]
      %v1486 = vld [vmem:[#allocation3 + $0x61] sm:$0xff]
      %v1487 = vld [vmem:[#allocation3 + $0x69] sm:$0xff]
      %v1488 = vld [vmem:[#allocation3 + $0x71] sm:$0xff]
      %v1489 = vld [vmem:[#allocation3 + $0x79] sm:$0xff]
      %v1490 = vld [vmem:[#allocation3 + $0x81] sm:$0xff]
      %v1491 = vld [vmem:[#allocation3 + $0x89] sm:$0x3f]
      %v1492 = vpack.c.bf16 %v1476, %v1475
      %v1493 = vpack.c.bf16 %v1478, %v1477
      %v1494 = vpack.c.bf16 %v1480, %v1479
      %v1495 = vpack.c.bf16 %v1482, %v1481
      %v1496 = vpack.c.bf16 %v1484, %v1483
      %v1497 = vpack.c.bf16 %v1486, %v1485
      %v1498 = vpack.c.bf16 %v1488, %v1487
      %v1499 = vpack.c.bf16 %v1490, %v1489
      %v1500 = vpack.c.bf16 %v1491, %v1491
      %v1501 = vld [vmem:[#allocation5] sm:$0xff]
      %v1502 = vld [vmem:[#allocation5 + $0x8] sm:$0xff]
      %v1503 = vld [vmem:[#allocation5 + $0x10] sm:$0xff]
      %v1504 = vld [vmem:[#allocation5 + $0x18] sm:$0xff]
      %v1505 = vld [vmem:[#allocation5 + $0x20] sm:$0xff]
      %v1506 = vld [vmem:[#allocation5 + $0x28] sm:$0xff]
      %v1507 = vld [vmem:[#allocation5 + $0x30] sm:$0xff]
      %v1508 = vld [vmem:[#allocation5 + $0x38] sm:$0xff]
      %v1509 = vld [vmem:[#allocation5 + $0x40] sm:$0xff]
      %v1510 = vld [vmem:[#allocation5 + $0x48] sm:$0xff]
      %v1511 = vld [vmem:[#allocation5 + $0x50] sm:$0xff]
      %v1512 = vld [vmem:[#allocation5 + $0x58] sm:$0xff]
      %v1513 = vld [vmem:[#allocation5 + $0x60] sm:$0xff]
      %v1514 = vld [vmem:[#allocation5 + $0x68] sm:$0xff]
      %v1515 = vld [vmem:[#allocation5 + $0x70] sm:$0xff]
      %v1516 = vld [vmem:[#allocation5 + $0x78] sm:$0xff]
      %v1517 = vld [vmem:[#allocation5 + $0x80] sm:$0x3f]
      %s1518 = scalar_lea.vmem %s4, 8
      %v1519 = vld [vmem:[%s1518] sm:$0x3]
      %v1521 = vsel %vm358, %v1492, 0
      %v1524 = vsel %vm358, %v1493, 0
      %v1527 = vsel %vm358, %v1494, 0
      %v1530 = vsel %vm358, %v1495, 0
      %v1533 = vsel %vm358, %v1496, 0
      %v1536 = vsel %vm358, %v1497, 0
      %v1539 = vsel %vm358, %v1498, 0
      %v1542 = vsel %vm358, %v1499, 0
      %v1545 = vsel %vm358, %v1500, 0
      %v1548 = vsel %vm694, %v1519, 0
      %1550 = vmatprep.subr.bf16.mxu0 0
      %1551 = vmatpush1.bf16.msra.mxu0 %v1548
      %1552 = vmatprep.subr.bf16.mxu0 0
      %1553 = vmatpush1.bf16.msra.mxu0 0
      %1554 = vmatprep.subr.bf16.mxu0 0
      %1555 = vmatpush1.bf16.msra.mxu0 0
      %1556 = vmatprep.subr.bf16.mxu0 0
      %1557 = vmatpush1.bf16.msra.mxu0 0
      %1558 = vmatprep.subr.bf16.mxu0 0
      %1559 = vmatpush1.bf16.msra.mxu0 0
      %1560 = vmatprep.subr.bf16.mxu0 0
      %1561 = vmatpush1.bf16.msra.mxu0 0
      %1562 = vmatprep.subr.bf16.mxu0 0
      %1563 = vmatpush1.bf16.msra.mxu0 0
      %1564 = vmatprep.subr.bf16.mxu0 0
      %1565 = vmatpush1.bf16.msra.mxu0 0
      %1566 = vmatprep.subr.bf16.mxu0 0
      %1567 = vmatpush1.bf16.msra.mxu0 0
      %1568 = vmatprep.subr.bf16.mxu0 0
      %1569 = vmatpush1.bf16.msra.mxu0 0
      %1570 = vmatprep.subr.bf16.mxu0 0
      %1571 = vmatpush1.bf16.msra.mxu0 0
      %1572 = vmatprep.subr.bf16.mxu0 0
      %1573 = vmatpush1.bf16.msra.mxu0 0
      %1574 = vmatprep.subr.bf16.mxu0 0
      %1575 = vmatpush1.bf16.msra.mxu0 0
      %1576 = vmatprep.subr.bf16.mxu0 0
      %1577 = vmatpush1.bf16.msra.mxu0 0
      %1578 = vmatprep.subr.bf16.mxu0 0
      %1579 = vmatpush1.bf16.msra.mxu0 0
      %1580 = vmatprep.subr.bf16.mxu0 0
      %1581 = vmatpush1.bf16.msra.mxu0 0
      %1582 = vmatprep.mubr.bf16.mxu0 0
      %1583 = vmatmul.mubr.bf16.gmra.mrb[0].mxu0 %v1521
      %v1584 = vpop.f32.mrb[0].mxu0
      %v1585 = vadd.f32 0.0, %v1584
      %v1586 = vpop.f32.mrb[0].mxu0
      %v1587 = vpop.f32.mrb[0].mxu0
      %v1588 = vadd.f32 0.0, %v1587
      %v1589 = vpop.f32.mrb[0].mxu0
      %1590 = vmatprep.mubr.bf16.mxu0 0
      %1591 = vmatmul.mubr.bf16.gmra.mrb[0].mxu0 %v1524
      %v1592 = vpop.f32.mrb[0].mxu0
      %v1593 = vadd.f32 0.0, %v1592
      %v1594 = vpop.f32.mrb[0].mxu0
      %v1595 = vpop.f32.mrb[0].mxu0
      %v1596 = vadd.f32 0.0, %v1595
      %v1597 = vpop.f32.mrb[0].mxu0
      %1598 = vmatprep.mubr.bf16.mxu0 0
      %1599 = vmatmul.mubr.bf16.gmra.mrb[0].mxu0 %v1527
      %v1600 = vpop.f32.mrb[0].mxu0
      %v1601 = vadd.f32 0.0, %v1600
      %v1602 = vpop.f32.mrb[0].mxu0
      %v1603 = vpop.f32.mrb[0].mxu0
      %v1604 = vadd.f32 0.0, %v1603
      %v1605 = vpop.f32.mrb[0].mxu0
      %1606 = vmatprep.mubr.bf16.mxu0 0
      %1607 = vmatmul.mubr.bf16.gmra.mrb[0].mxu0 %v1530
      %v1608 = vpop.f32.mrb[0].mxu0
      %v1609 = vadd.f32 0.0, %v1608
      %v1610 = vpop.f32.mrb[0].mxu0
      %v1611 = vpop.f32.mrb[0].mxu0
      %v1612 = vadd.f32 0.0, %v1611
      %v1613 = vpop.f32.mrb[0].mxu0
      %1614 = vmatprep.mubr.bf16.mxu0 0
      %1615 = vmatmul.mubr.bf16.gmra.mrb[0].mxu0 %v1533
      %v1616 = vpop.f32.mrb[0].mxu0
      %v1617 = vadd.f32 0.0, %v1616
      %v1618 = vpop.f32.mrb[0].mxu0
      %v1619 = vpop.f32.mrb[0].mxu0
      %v1620 = vadd.f32 0.0, %v1619
      %v1621 = vpop.f32.mrb[0].mxu0
      %1622 = vmatprep.mubr.bf16.mxu0 0
      %1623 = vmatmul.mubr.bf16.gmra.mrb[0].mxu0 %v1536
      %v1624 = vpop.f32.mrb[0].mxu0
      %v1625 = vadd.f32 0.0, %v1624
      %v1626 = vpop.f32.mrb[0].mxu0
      %v1627 = vpop.f32.mrb[0].mxu0
      %v1628 = vadd.f32 0.0, %v1627
      %v1629 = vpop.f32.mrb[0].mxu0
      %1630 = vmatprep.mubr.bf16.mxu0 0
      %1631 = vmatmul.mubr.bf16.gmra.mrb[0].mxu0 %v1539
      %v1632 = vpop.f32.mrb[0].mxu0
      %v1633 = vadd.f32 0.0, %v1632
      %v1634 = vpop.f32.mrb[0].mxu0
      %v1635 = vpop.f32.mrb[0].mxu0
      %v1636 = vadd.f32 0.0, %v1635
      %v1637 = vpop.f32.mrb[0].mxu0
      %1638 = vmatprep.mubr.bf16.mxu0 0
      %1639 = vmatmul.mubr.bf16.gmra.mrb[0].mxu0 %v1542
      %v1640 = vpop.f32.mrb[0].mxu0
      %v1641 = vadd.f32 0.0, %v1640
      %v1642 = vpop.f32.mrb[0].mxu0
      %v1643 = vpop.f32.mrb[0].mxu0
      %v1644 = vadd.f32 0.0, %v1643
      %v1645 = vpop.f32.mrb[0].mxu0
      %1646 = vmatprep.mubr.bf16.mxu0 0
      %1647 = vmatmul.mubr.bf16.gmra.mrb[0].mxu0 %v1545
      %v1648 = vpop.f32.mrb[0].mxu0
      %v1649 = vadd.f32 0.0, %v1648
      %v1650 = vpop.f32.mrb[0].mxu0
      %v1651 = vpop.f32.mrb[0].mxu0
      %v1652 = vpop.f32.mrb[0].mxu0
      %1653 = vdwg.mxu0
      %v1654 = vadd.f32 %v1501, %v1585
      %v1655 = vadd.f32 %v1502, %v1588
      %v1656 = vadd.f32 %v1503, %v1593
      %v1657 = vadd.f32 %v1504, %v1596
      %v1658 = vadd.f32 %v1505, %v1601
      %v1659 = vadd.f32 %v1506, %v1604
      %v1660 = vadd.f32 %v1507, %v1609
      %v1661 = vadd.f32 %v1508, %v1612
      %v1662 = vadd.f32 %v1509, %v1617
      %v1663 = vadd.f32 %v1510, %v1620
      %v1664 = vadd.f32 %v1511, %v1625
      %v1665 = vadd.f32 %v1512, %v1628
      %v1666 = vadd.f32 %v1513, %v1633
      %v1667 = vadd.f32 %v1514, %v1636
      %v1668 = vadd.f32 %v1515, %v1641
      %v1669 = vadd.f32 %v1516, %v1644
      %v1670 = vadd.f32 %v1517, %v1649
      %1671 = vst.msk [vmem:[#allocation5] sm:$0xff] %vm604, %v1654
      %1672 = vst.msk [vmem:[#allocation5 + $0x8] sm:$0xff] %vm604, %v1655
      %1673 = vst.msk [vmem:[#allocation5 + $0x10] sm:$0xff] %vm604, %v1656
      %1674 = vst.msk [vmem:[#allocation5 + $0x18] sm:$0xff] %vm604, %v1657
      %1675 = vst.msk [vmem:[#allocation5 + $0x20] sm:$0xff] %vm604, %v1658
      %1676 = vst.msk [vmem:[#allocation5 + $0x28] sm:$0xff] %vm604, %v1659
      %1677 = vst.msk [vmem:[#allocation5 + $0x30] sm:$0xff] %vm604, %v1660
      %1678 = vst.msk [vmem:[#allocation5 + $0x38] sm:$0xff] %vm604, %v1661
      %1679 = vst.msk [vmem:[#allocation5 + $0x40] sm:$0xff] %vm604, %v1662
      %1680 = vst.msk [vmem:[#allocation5 + $0x48] sm:$0xff] %vm604, %v1663
      %1681 = vst.msk [vmem:[#allocation5 + $0x50] sm:$0xff] %vm604, %v1664
      %1682 = vst.msk [vmem:[#allocation5 + $0x58] sm:$0xff] %vm604, %v1665
      %1683 = vst.msk [vmem:[#allocation5 + $0x60] sm:$0xff] %vm604, %v1666
      %1684 = vst.msk [vmem:[#allocation5 + $0x68] sm:$0xff] %vm604, %v1667
      %1685 = vst.msk [vmem:[#allocation5 + $0x70] sm:$0xff] %vm604, %v1668
      %1686 = vst.msk [vmem:[#allocation5 + $0x78] sm:$0xff] %vm604, %v1669
      %1687 = vst.msk [vmem:[#allocation5 + $0x80] sm:$0x3f] %vm621, %v1670
      %v1688 = vld [vmem:[#allocation2 + $0xa] sm:$0xff]
      %v1689 = vld [vmem:[#allocation2 + $0x12] sm:$0xff]
      %v1690 = vld [vmem:[#allocation2 + $0x1a] sm:$0xff]
      %v1691 = vld [vmem:[#allocation2 + $0x22] sm:$0xff]
      %v1692 = vld [vmem:[#allocation2 + $0x2a] sm:$0xff]
      %v1693 = vld [vmem:[#allocation2 + $0x32] sm:$0xff]
      %v1694 = vld [vmem:[#allocation2 + $0x3a] sm:$0xff]
      %v1695 = vld [vmem:[#allocation2 + $0x42] sm:$0xff]
      %v1696 = vld [vmem:[#allocation2 + $0x4a] sm:$0xff]
      %v1697 = vld [vmem:[#allocation2 + $0x52] sm:$0xff]
      %v1698 = vld [vmem:[#allocation2 + $0x5a] sm:$0xff]
      %v1699 = vld [vmem:[#allocation2 + $0x62] sm:$0xff]
      %v1700 = vld [vmem:[#allocation2 + $0x6a] sm:$0xff]
      %v1701 = vld [vmem:[#allocation2 + $0x72] sm:$0xff]
      %v1702 = vld [vmem:[#allocation2 + $0x7a] sm:$0xff]
      %v1703 = vld [vmem:[#allocation2 + $0x82] sm:$0xff]
      %v1704 = vld [vmem:[#allocation2 + $0x8a] sm:$0x3f]
      %v1705 = vpack.c.bf16 %v1689, %v1688
      %v1706 = vpack.c.bf16 %v1691, %v1690
      %v1707 = vpack.c.bf16 %v1693, %v1692
      %v1708 = vpack.c.bf16 %v1695, %v1694
      %v1709 = vpack.c.bf16 %v1697, %v1696
      %v1710 = vpack.c.bf16 %v1699, %v1698
      %v1711 = vpack.c.bf16 %v1701, %v1700
      %v1712 = vpack.c.bf16 %v1703, %v1702
      %v1713 = vpack.c.bf16 %v1704, %v1704
      %v1714 = vld [vmem:[#allocation5] sm:$0xff]
      %v1715 = vld [vmem:[#allocation5 + $0x8] sm:$0xff]
      %v1716 = vld [vmem:[#allocation5 + $0x10] sm:$0xff]
      %v1717 = vld [vmem:[#allocation5 + $0x18] sm:$0xff]
      %v1718 = vld [vmem:[#allocation5 + $0x20] sm:$0xff]
      %v1719 = vld [vmem:[#allocation5 + $0x28] sm:$0xff]
      %v1720 = vld [vmem:[#allocation5 + $0x30] sm:$0xff]
      %v1721 = vld [vmem:[#allocation5 + $0x38] sm:$0xff]
      %v1722 = vld [vmem:[#allocation5 + $0x40] sm:$0xff]
      %v1723 = vld [vmem:[#allocation5 + $0x48] sm:$0xff]
      %v1724 = vld [vmem:[#allocation5 + $0x50] sm:$0xff]
      %v1725 = vld [vmem:[#allocation5 + $0x58] sm:$0xff]
      %v1726 = vld [vmem:[#allocation5 + $0x60] sm:$0xff]
      %v1727 = vld [vmem:[#allocation5 + $0x68] sm:$0xff]
      %v1728 = vld [vmem:[#allocation5 + $0x70] sm:$0xff]
      %v1729 = vld [vmem:[#allocation5 + $0x78] sm:$0xff]
      %v1730 = vld [vmem:[#allocation5 + $0x80] sm:$0x3f]
      %s1731 = scalar_lea.vmem %s4, 10
      %v1732 = vld [vmem:[%s1731] sm:$0x3]
      %v1734 = vsel %vm358, %v1705, 0
      %v1737 = vsel %vm358, %v1706, 0
      %v1740 = vsel %vm358, %v1707, 0
      %v1743 = vsel %vm358, %v1708, 0
      %v1746 = vsel %vm358, %v1709, 0
      %v1749 = vsel %vm358, %v1710, 0
      %v1752 = vsel %vm358, %v1711, 0
      %v1755 = vsel %vm358, %v1712, 0
      %v1758 = vsel %vm358, %v1713, 0
      %v1761 = vsel %vm694, %v1732, 0
      %1763 = vmatprep.subr.bf16.mxu0 0
      %1764 = vmatpush1.bf16.msra.mxu0 %v1761
      %1765 = vmatprep.subr.bf16.mxu0 0
      %1766 = vmatpush1.bf16.msra.mxu0 0
      %1767 = vmatprep.subr.bf16.mxu0 0
      %1768 = vmatpush1.bf16.msra.mxu0 0
      %1769 = vmatprep.subr.bf16.mxu0 0
      %1770 = vmatpush1.bf16.msra.mxu0 0
      %1771 = vmatprep.subr.bf16.mxu0 0
      %1772 = vmatpush1.bf16.msra.mxu0 0
      %1773 = vmatprep.subr.bf16.mxu0 0
      %1774 = vmatpush1.bf16.msra.mxu0 0
      %1775 = vmatprep.subr.bf16.mxu0 0
      %1776 = vmatpush1.bf16.msra.mxu0 0
      %1777 = vmatprep.subr.bf16.mxu0 0
      %1778 = vmatpush1.bf16.msra.mxu0 0
      %1779 = vmatprep.subr.bf16.mxu0 0
      %1780 = vmatpush1.bf16.msra.mxu0 0
      %1781 = vmatprep.subr.bf16.mxu0 0
      %1782 = vmatpush1.bf16.msra.mxu0 0
      %1783 = vmatprep.subr.bf16.mxu0 0
      %1784 = vmatpush1.bf16.msra.mxu0 0
      %1785 = vmatprep.subr.bf16.mxu0 0
      %1786 = vmatpush1.bf16.msra.mxu0 0
      %1787 = vmatprep.subr.bf16.mxu0 0
      %1788 = vmatpush1.bf16.msra.mxu0 0
      %1789 = vmatprep.subr.bf16.mxu0 0
      %1790 = vmatpush1.bf16.msra.mxu0 0
      %1791 = vmatprep.subr.bf16.mxu0 0
      %1792 = vmatpush1.bf16.msra.mxu0 0
      %1793 = vmatprep.subr.bf16.mxu0 0
      %1794 = vmatpush1.bf16.msra.mxu0 0
      %1795 = vmatprep.mubr.bf16.mxu0 0
      %1796 = vmatmul.mubr.bf16.gmra.mrb[0].mxu0 %v1734
      %v1797 = vpop.f32.mrb[0].mxu0
      %v1798 = vadd.f32 0.0, %v1797
      %v1799 = vpop.f32.mrb[0].mxu0
      %v1800 = vpop.f32.mrb[0].mxu0
      %v1801 = vadd.f32 0.0, %v1800
      %v1802 = vpop.f32.mrb[0].mxu0
      %1803 = vmatprep.mubr.bf16.mxu0 0
      %1804 = vmatmul.mubr.bf16.gmra.mrb[0].mxu0 %v1737
      %v1805 = vpop.f32.mrb[0].mxu0
      %v1806 = vadd.f32 0.0, %v1805
      %v1807 = vpop.f32.mrb[0].mxu0
      %v1808 = vpop.f32.mrb[0].mxu0
      %v1809 = vadd.f32 0.0, %v1808
      %v1810 = vpop.f32.mrb[0].mxu0
      %1811 = vmatprep.mubr.bf16.mxu0 0
      %1812 = vmatmul.mubr.bf16.gmra.mrb[0].mxu0 %v1740
      %v1813 = vpop.f32.mrb[0].mxu0
      %v1814 = vadd.f32 0.0, %v1813
      %v1815 = vpop.f32.mrb[0].mxu0
      %v1816 = vpop.f32.mrb[0].mxu0
      %v1817 = vadd.f32 0.0, %v1816
      %v1818 = vpop.f32.mrb[0].mxu0
      %1819 = vmatprep.mubr.bf16.mxu0 0
      %1820 = vmatmul.mubr.bf16.gmra.mrb[0].mxu0 %v1743
      %v1821 = vpop.f32.mrb[0].mxu0
      %v1822 = vadd.f32 0.0, %v1821
      %v1823 = vpop.f32.mrb[0].mxu0
      %v1824 = vpop.f32.mrb[0].mxu0
      %v1825 = vadd.f32 0.0, %v1824
      %v1826 = vpop.f32.mrb[0].mxu0
      %1827 = vmatprep.mubr.bf16.mxu0 0
      %1828 = vmatmul.mubr.bf16.gmra.mrb[0].mxu0 %v1746
      %v1829 = vpop.f32.mrb[0].mxu0
      %v1830 = vadd.f32 0.0, %v1829
      %v1831 = vpop.f32.mrb[0].mxu0
      %v1832 = vpop.f32.mrb[0].mxu0
      %v1833 = vadd.f32 0.0, %v1832
      %v1834 = vpop.f32.mrb[0].mxu0
      %1835 = vmatprep.mubr.bf16.mxu0 0
      %1836 = vmatmul.mubr.bf16.gmra.mrb[0].mxu0 %v1749
      %v1837 = vpop.f32.mrb[0].mxu0
      %v1838 = vadd.f32 0.0, %v1837
      %v1839 = vpop.f32.mrb[0].mxu0
      %v1840 = vpop.f32.mrb[0].mxu0
      %v1841 = vadd.f32 0.0, %v1840
      %v1842 = vpop.f32.mrb[0].mxu0
      %1843 = vmatprep.mubr.bf16.mxu0 0
      %1844 = vmatmul.mubr.bf16.gmra.mrb[0].mxu0 %v1752
      %v1845 = vpop.f32.mrb[0].mxu0
      %v1846 = vadd.f32 0.0, %v1845
      %v1847 = vpop.f32.mrb[0].mxu0
      %v1848 = vpop.f32.mrb[0].mxu0
      %v1849 = vadd.f32 0.0, %v1848
      %v1850 = vpop.f32.mrb[0].mxu0
      %1851 = vmatprep.mubr.bf16.mxu0 0
      %1852 = vmatmul.mubr.bf16.gmra.mrb[0].mxu0 %v1755
      %v1853 = vpop.f32.mrb[0].mxu0
      %v1854 = vadd.f32 0.0, %v1853
      %v1855 = vpop.f32.mrb[0].mxu0
      %v1856 = vpop.f32.mrb[0].mxu0
      %v1857 = vadd.f32 0.0, %v1856
      %v1858 = vpop.f32.mrb[0].mxu0
      %1859 = vmatprep.mubr.bf16.mxu0 0
      %1860 = vmatmul.mubr.bf16.gmra.mrb[0].mxu0 %v1758
      %v1861 = vpop.f32.mrb[0].mxu0
      %v1862 = vadd.f32 0.0, %v1861
      %v1863 = vpop.f32.mrb[0].mxu0
      %v1864 = vpop.f32.mrb[0].mxu0
      %v1865 = vpop.f32.mrb[0].mxu0
      %1866 = vdwg.mxu0
      %v1867 = vadd.f32 %v1714, %v1798
      %v1868 = vadd.f32 %v1715, %v1801
      %v1869 = vadd.f32 %v1716, %v1806
      %v1870 = vadd.f32 %v1717, %v1809
      %v1871 = vadd.f32 %v1718, %v1814
      %v1872 = vadd.f32 %v1719, %v1817
      %v1873 = vadd.f32 %v1720, %v1822
      %v1874 = vadd.f32 %v1721, %v1825
      %v1875 = vadd.f32 %v1722, %v1830
      %v1876 = vadd.f32 %v1723, %v1833
      %v1877 = vadd.f32 %v1724, %v1838
      %v1878 = vadd.f32 %v1725, %v1841
      %v1879 = vadd.f32 %v1726, %v1846
      %v1880 = vadd.f32 %v1727, %v1849
      %v1881 = vadd.f32 %v1728, %v1854
      %v1882 = vadd.f32 %v1729, %v1857
      %v1883 = vadd.f32 %v1730, %v1862
      %1884 = vst.msk [vmem:[#allocation5] sm:$0xff] %vm604, %v1867
      %1885 = vst.msk [vmem:[#allocation5 + $0x8] sm:$0xff] %vm604, %v1868
      %1886 = vst.msk [vmem:[#allocation5 + $0x10] sm:$0xff] %vm604, %v1869
      %1887 = vst.msk [vmem:[#allocation5 + $0x18] sm:$0xff] %vm604, %v1870
      %1888 = vst.msk [vmem:[#allocation5 + $0x20] sm:$0xff] %vm604, %v1871
      %1889 = vst.msk [vmem:[#allocation5 + $0x28] sm:$0xff] %vm604, %v1872
      %1890 = vst.msk [vmem:[#allocation5 + $0x30] sm:$0xff] %vm604, %v1873
      %1891 = vst.msk [vmem:[#allocation5 + $0x38] sm:$0xff] %vm604, %v1874
      %1892 = vst.msk [vmem:[#allocation5 + $0x40] sm:$0xff] %vm604, %v1875
      %1893 = vst.msk [vmem:[#allocation5 + $0x48] sm:$0xff] %vm604, %v1876
      %1894 = vst.msk [vmem:[#allocation5 + $0x50] sm:$0xff] %vm604, %v1877
      %1895 = vst.msk [vmem:[#allocation5 + $0x58] sm:$0xff] %vm604, %v1878
      %1896 = vst.msk [vmem:[#allocation5 + $0x60] sm:$0xff] %vm604, %v1879
      %1897 = vst.msk [vmem:[#allocation5 + $0x68] sm:$0xff] %vm604, %v1880
      %1898 = vst.msk [vmem:[#allocation5 + $0x70] sm:$0xff] %vm604, %v1881
      %1899 = vst.msk [vmem:[#allocation5 + $0x78] sm:$0xff] %vm604, %v1882
      %1900 = vst.msk [vmem:[#allocation5 + $0x80] sm:$0x3f] %vm621, %v1883
      %v1901 = vld [vmem:[#allocation2 + $0x12] sm:$0xff]
      %v1902 = vld [vmem:[#allocation2 + $0x1a] sm:$0xff]
      %v1903 = vld [vmem:[#allocation2 + $0x22] sm:$0xff]
      %v1904 = vld [vmem:[#allocation2 + $0x2a] sm:$0xff]
      %v1905 = vld [vmem:[#allocation2 + $0x32] sm:$0xff]
      %v1906 = vld [vmem:[#allocation2 + $0x3a] sm:$0xff]
      %v1907 = vld [vmem:[#allocation2 + $0x42] sm:$0xff]
      %v1908 = vld [vmem:[#allocation2 + $0x4a] sm:$0xff]
      %v1909 = vld [vmem:[#allocation2 + $0x52] sm:$0xff]
      %v1910 = vld [vmem:[#allocation2 + $0x5a] sm:$0xff]
      %v1911 = vld [vmem:[#allocation2 + $0x62] sm:$0xff]
      %v1912 = vld [vmem:[#allocation2 + $0x6a] sm:$0xff]
      %v1913 = vld [vmem:[#allocation2 + $0x72] sm:$0xff]
      %v1914 = vld [vmem:[#allocation2 + $0x7a] sm:$0xff]
      %v1915 = vld [vmem:[#allocation2 + $0x82] sm:$0xff]
      %v1916 = vld [vmem:[#allocation2 + $0x8a] sm:$0xff]
      %v1917 = vld [vmem:[#allocation2 + $0x92] sm:$0x3f]
      %v1918 = vpack.c.bf16 %v1902, %v1901
      %v1919 = vpack.c.bf16 %v1904, %v1903
      %v1920 = vpack.c.bf16 %v1906, %v1905
      %v1921 = vpack.c.bf16 %v1908, %v1907
      %v1922 = vpack.c.bf16 %v1910, %v1909
      %v1923 = vpack.c.bf16 %v1912, %v1911
      %v1924 = vpack.c.bf16 %v1914, %v1913
      %v1925 = vpack.c.bf16 %v1916, %v1915
      %v1926 = vpack.c.bf16 %v1917, %v1917
      %v1927 = vld [vmem:[#allocation5] sm:$0xff]
      %v1928 = vld [vmem:[#allocation5 + $0x8] sm:$0xff]
      %v1929 = vld [vmem:[#allocation5 + $0x10] sm:$0xff]
      %v1930 = vld [vmem:[#allocation5 + $0x18] sm:$0xff]
      %v1931 = vld [vmem:[#allocation5 + $0x20] sm:$0xff]
      %v1932 = vld [vmem:[#allocation5 + $0x28] sm:$0xff]
      %v1933 = vld [vmem:[#allocation5 + $0x30] sm:$0xff]
      %v1934 = vld [vmem:[#allocation5 + $0x38] sm:$0xff]
      %v1935 = vld [vmem:[#allocation5 + $0x40] sm:$0xff]
      %v1936 = vld [vmem:[#allocation5 + $0x48] sm:$0xff]
      %v1937 = vld [vmem:[#allocation5 + $0x50] sm:$0xff]
      %v1938 = vld [vmem:[#allocation5 + $0x58] sm:$0xff]
      %v1939 = vld [vmem:[#allocation5 + $0x60] sm:$0xff]
      %v1940 = vld [vmem:[#allocation5 + $0x68] sm:$0xff]
      %v1941 = vld [vmem:[#allocation5 + $0x70] sm:$0xff]
      %v1942 = vld [vmem:[#allocation5 + $0x78] sm:$0xff]
      %v1943 = vld [vmem:[#allocation5 + $0x80] sm:$0x3f]
      %s1944 = scalar_lea.vmem %s4, 12
      %v1945 = vld [vmem:[%s1944] sm:$0x3]
      %v1947 = vsel %vm358, %v1918, 0
      %v1950 = vsel %vm358, %v1919, 0
      %v1953 = vsel %vm358, %v1920, 0
      %v1956 = vsel %vm358, %v1921, 0
      %v1959 = vsel %vm358, %v1922, 0
      %v1962 = vsel %vm358, %v1923, 0
      %v1965 = vsel %vm358, %v1924, 0
      %v1968 = vsel %vm358, %v1925, 0
      %v1971 = vsel %vm358, %v1926, 0
      %v1974 = vsel %vm694, %v1945, 0
      %1976 = vmatprep.subr.bf16.mxu0 0
      %1977 = vmatpush1.bf16.msra.mxu0 %v1974
      %1978 = vmatprep.subr.bf16.mxu0 0
      %1979 = vmatpush1.bf16.msra.mxu0 0
      %1980 = vmatprep.subr.bf16.mxu0 0
      %1981 = vmatpush1.bf16.msra.mxu0 0
      %1982 = vmatprep.subr.bf16.mxu0 0
      %1983 = vmatpush1.bf16.msra.mxu0 0
      %1984 = vmatprep.subr.bf16.mxu0 0
      %1985 = vmatpush1.bf16.msra.mxu0 0
      %1986 = vmatprep.subr.bf16.mxu0 0
      %1987 = vmatpush1.bf16.msra.mxu0 0
      %1988 = vmatprep.subr.bf16.mxu0 0
      %1989 = vmatpush1.bf16.msra.mxu0 0
      %1990 = vmatprep.subr.bf16.mxu0 0
      %1991 = vmatpush1.bf16.msra.mxu0 0
      %1992 = vmatprep.subr.bf16.mxu0 0
      %1993 = vmatpush1.bf16.msra.mxu0 0
      %1994 = vmatprep.subr.bf16.mxu0 0
      %1995 = vmatpush1.bf16.msra.mxu0 0
      %1996 = vmatprep.subr.bf16.mxu0 0
      %1997 = vmatpush1.bf16.msra.mxu0 0
      %1998 = vmatprep.subr.bf16.mxu0 0
      %1999 = vmatpush1.bf16.msra.mxu0 0
      %2000 = vmatprep.subr.bf16.mxu0 0
      %2001 = vmatpush1.bf16.msra.mxu0 0
      %2002 = vmatprep.subr.bf16.mxu0 0
      %2003 = vmatpush1.bf16.msra.mxu0 0
      %2004 = vmatprep.subr.bf16.mxu0 0
      %2005 = vmatpush1.bf16.msra.mxu0 0
      %2006 = vmatprep.subr.bf16.mxu0 0
      %2007 = vmatpush1.bf16.msra.mxu0 0
      %2008 = vmatprep.mubr.bf16.mxu0 0
      %2009 = vmatmul.mubr.bf16.gmra.mrb[0].mxu0 %v1947
      %v2010 = vpop.f32.mrb[0].mxu0
      %v2011 = vadd.f32 0.0, %v2010
      %v2012 = vpop.f32.mrb[0].mxu0
      %v2013 = vpop.f32.mrb[0].mxu0
      %v2014 = vadd.f32 0.0, %v2013
      %v2015 = vpop.f32.mrb[0].mxu0
      %2016 = vmatprep.mubr.bf16.mxu0 0
      %2017 = vmatmul.mubr.bf16.gmra.mrb[0].mxu0 %v1950
      %v2018 = vpop.f32.mrb[0].mxu0
      %v2019 = vadd.f32 0.0, %v2018
      %v2020 = vpop.f32.mrb[0].mxu0
      %v2021 = vpop.f32.mrb[0].mxu0
      %v2022 = vadd.f32 0.0, %v2021
      %v2023 = vpop.f32.mrb[0].mxu0
      %2024 = vmatprep.mubr.bf16.mxu0 0
      %2025 = vmatmul.mubr.bf16.gmra.mrb[0].mxu0 %v1953
      %v2026 = vpop.f32.mrb[0].mxu0
      %v2027 = vadd.f32 0.0, %v2026
      %v2028 = vpop.f32.mrb[0].mxu0
      %v2029 = vpop.f32.mrb[0].mxu0
      %v2030 = vadd.f32 0.0, %v2029
      %v2031 = vpop.f32.mrb[0].mxu0
      %2032 = vmatprep.mubr.bf16.mxu0 0
      %2033 = vmatmul.mubr.bf16.gmra.mrb[0].mxu0 %v1956
      %v2034 = vpop.f32.mrb[0].mxu0
      %v2035 = vadd.f32 0.0, %v2034
      %v2036 = vpop.f32.mrb[0].mxu0
      %v2037 = vpop.f32.mrb[0].mxu0
      %v2038 = vadd.f32 0.0, %v2037
      %v2039 = vpop.f32.mrb[0].mxu0
      %2040 = vmatprep.mubr.bf16.mxu0 0
      %2041 = vmatmul.mubr.bf16.gmra.mrb[0].mxu0 %v1959
      %v2042 = vpop.f32.mrb[0].mxu0
      %v2043 = vadd.f32 0.0, %v2042
      %v2044 = vpop.f32.mrb[0].mxu0
      %v2045 = vpop.f32.mrb[0].mxu0
      %v2046 = vadd.f32 0.0, %v2045
      %v2047 = vpop.f32.mrb[0].mxu0
      %2048 = vmatprep.mubr.bf16.mxu0 0
      %2049 = vmatmul.mubr.bf16.gmra.mrb[0].mxu0 %v1962
      %v2050 = vpop.f32.mrb[0].mxu0
      %v2051 = vadd.f32 0.0, %v2050
      %v2052 = vpop.f32.mrb[0].mxu0
      %v2053 = vpop.f32.mrb[0].mxu0
      %v2054 = vadd.f32 0.0, %v2053
      %v2055 = vpop.f32.mrb[0].mxu0
      %2056 = vmatprep.mubr.bf16.mxu0 0
      %2057 = vmatmul.mubr.bf16.gmra.mrb[0].mxu0 %v1965
      %v2058 = vpop.f32.mrb[0].mxu0
      %v2059 = vadd.f32 0.0, %v2058
      %v2060 = vpop.f32.mrb[0].mxu0
      %v2061 = vpop.f32.mrb[0].mxu0
      %v2062 = vadd.f32 0.0, %v2061
      %v2063 = vpop.f32.mrb[0].mxu0
      %2064 = vmatprep.mubr.bf16.mxu0 0
      %2065 = vmatmul.mubr.bf16.gmra.mrb[0].mxu0 %v1968
      %v2066 = vpop.f32.mrb[0].mxu0
      %v2067 = vadd.f32 0.0, %v2066
      %v2068 = vpop.f32.mrb[0].mxu0
      %v2069 = vpop.f32.mrb[0].mxu0
      %v2070 = vadd.f32 0.0, %v2069
      %v2071 = vpop.f32.mrb[0].mxu0
      %2072 = vmatprep.mubr.bf16.mxu0 0
      %2073 = vmatmul.mubr.bf16.gmra.mrb[0].mxu0 %v1971
      %v2074 = vpop.f32.mrb[0].mxu0
      %v2075 = vadd.f32 0.0, %v2074
      %v2076 = vpop.f32.mrb[0].mxu0
      %v2077 = vpop.f32.mrb[0].mxu0
      %v2078 = vpop.f32.mrb[0].mxu0
      %2079 = vdwg.mxu0
      %v2080 = vadd.f32 %v1927, %v2011
      %v2081 = vadd.f32 %v1928, %v2014
      %v2082 = vadd.f32 %v1929, %v2019
      %v2083 = vadd.f32 %v1930, %v2022
      %v2084 = vadd.f32 %v1931, %v2027
      %v2085 = vadd.f32 %v1932, %v2030
      %v2086 = vadd.f32 %v1933, %v2035
      %v2087 = vadd.f32 %v1934, %v2038
      %v2088 = vadd.f32 %v1935, %v2043
      %v2089 = vadd.f32 %v1936, %v2046
      %v2090 = vadd.f32 %v1937, %v2051
      %v2091 = vadd.f32 %v1938, %v2054
      %v2092 = vadd.f32 %v1939, %v2059
      %v2093 = vadd.f32 %v1940, %v2062
      %v2094 = vadd.f32 %v1941, %v2067
      %v2095 = vadd.f32 %v1942, %v2070
      %v2096 = vadd.f32 %v1943, %v2075
      %2097 = vst.msk [vmem:[#allocation5] sm:$0xff] %vm604, %v2080
      %2098 = vst.msk [vmem:[#allocation5 + $0x8] sm:$0xff] %vm604, %v2081
      %2099 = vst.msk [vmem:[#allocation5 + $0x10] sm:$0xff] %vm604, %v2082
      %2100 = vst.msk [vmem:[#allocation5 + $0x18] sm:$0xff] %vm604, %v2083
      %2101 = vst.msk [vmem:[#allocation5 + $0x20] sm:$0xff] %vm604, %v2084
      %2102 = vst.msk [vmem:[#allocation5 + $0x28] sm:$0xff] %vm604, %v2085
      %2103 = vst.msk [vmem:[#allocation5 + $0x30] sm:$0xff] %vm604, %v2086
      %2104 = vst.msk [vmem:[#allocation5 + $0x38] sm:$0xff] %vm604, %v2087
      %2105 = vst.msk [vmem:[#allocation5 + $0x40] sm:$0xff] %vm604, %v2088
      %2106 = vst.msk [vmem:[#allocation5 + $0x48] sm:$0xff] %vm604, %v2089
      %2107 = vst.msk [vmem:[#allocation5 + $0x50] sm:$0xff] %vm604, %v2090
      %2108 = vst.msk [vmem:[#allocation5 + $0x58] sm:$0xff] %vm604, %v2091
      %2109 = vst.msk [vmem:[#allocation5 + $0x60] sm:$0xff] %vm604, %v2092
      %2110 = vst.msk [vmem:[#allocation5 + $0x68] sm:$0xff] %vm604, %v2093
      %2111 = vst.msk [vmem:[#allocation5 + $0x70] sm:$0xff] %vm604, %v2094
      %2112 = vst.msk [vmem:[#allocation5 + $0x78] sm:$0xff] %vm604, %v2095
      %2113 = vst.msk [vmem:[#allocation5 + $0x80] sm:$0x3f] %vm621, %v2096
      %v2114 = vld [vmem:[#allocation3 + $0x12] sm:$0xff]
      %v2115 = vld [vmem:[#allocation3 + $0x1a] sm:$0xff]
      %v2116 = vld [vmem:[#allocation3 + $0x22] sm:$0xff]
      %v2117 = vld [vmem:[#allocation3 + $0x2a] sm:$0xff]
      %v2118 = vld [vmem:[#allocation3 + $0x32] sm:$0xff]
      %v2119 = vld [vmem:[#allocation3 + $0x3a] sm:$0xff]
      %v2120 = vld [vmem:[#allocation3 + $0x42] sm:$0xff]
      %v2121 = vld [vmem:[#allocation3 + $0x4a] sm:$0xff]
      %v2122 = vld [vmem:[#allocation3 + $0x52] sm:$0xff]
      %v2123 = vld [vmem:[#allocation3 + $0x5a] sm:$0xff]
      %v2124 = vld [vmem:[#allocation3 + $0x62] sm:$0xff]
      %v2125 = vld [vmem:[#allocation3 + $0x6a] sm:$0xff]
      %v2126 = vld [vmem:[#allocation3 + $0x72] sm:$0xff]
      %v2127 = vld [vmem:[#allocation3 + $0x7a] sm:$0xff]
      %v2128 = vld [vmem:[#allocation3 + $0x82] sm:$0xff]
      %v2129 = vld [vmem:[#allocation3 + $0x8a] sm:$0xff]
      %v2130 = vld [vmem:[#allocation3 + $0x92] sm:$0x3f]
      %v2131 = vpack.c.bf16 %v2115, %v2114
      %v2132 = vpack.c.bf16 %v2117, %v2116
      %v2133 = vpack.c.bf16 %v2119, %v2118
      %v2134 = vpack.c.bf16 %v2121, %v2120
      %v2135 = vpack.c.bf16 %v2123, %v2122
      %v2136 = vpack.c.bf16 %v2125, %v2124
      %v2137 = vpack.c.bf16 %v2127, %v2126
      %v2138 = vpack.c.bf16 %v2129, %v2128
      %v2139 = vpack.c.bf16 %v2130, %v2130
      %v2140 = vld [vmem:[#allocation5] sm:$0xff]
      %v2141 = vld [vmem:[#allocation5 + $0x8] sm:$0xff]
      %v2142 = vld [vmem:[#allocation5 + $0x10] sm:$0xff]
      %v2143 = vld [vmem:[#allocation5 + $0x18] sm:$0xff]
      %v2144 = vld [vmem:[#allocation5 + $0x20] sm:$0xff]
      %v2145 = vld [vmem:[#allocation5 + $0x28] sm:$0xff]
      %v2146 = vld [vmem:[#allocation5 + $0x30] sm:$0xff]
      %v2147 = vld [vmem:[#allocation5 + $0x38] sm:$0xff]
      %v2148 = vld [vmem:[#allocation5 + $0x40] sm:$0xff]
      %v2149 = vld [vmem:[#allocation5 + $0x48] sm:$0xff]
      %v2150 = vld [vmem:[#allocation5 + $0x50] sm:$0xff]
      %v2151 = vld [vmem:[#allocation5 + $0x58] sm:$0xff]
      %v2152 = vld [vmem:[#allocation5 + $0x60] sm:$0xff]
      %v2153 = vld [vmem:[#allocation5 + $0x68] sm:$0xff]
      %v2154 = vld [vmem:[#allocation5 + $0x70] sm:$0xff]
      %v2155 = vld [vmem:[#allocation5 + $0x78] sm:$0xff]
      %v2156 = vld [vmem:[#allocation5 + $0x80] sm:$0x3f]
      %s2157 = scalar_lea.vmem %s4, 14
      %v2158 = vld [vmem:[%s2157] sm:$0x3]
      %v2160 = vsel %vm358, %v2131, 0
      %v2163 = vsel %vm358, %v2132, 0
      %v2166 = vsel %vm358, %v2133, 0
      %v2169 = vsel %vm358, %v2134, 0
      %v2172 = vsel %vm358, %v2135, 0
      %v2175 = vsel %vm358, %v2136, 0
      %v2178 = vsel %vm358, %v2137, 0
      %v2181 = vsel %vm358, %v2138, 0
      %v2184 = vsel %vm358, %v2139, 0
      %v2187 = vsel %vm694, %v2158, 0
      %2189 = vmatprep.subr.bf16.mxu0 0
      %2190 = vmatpush1.bf16.msra.mxu0 %v2187
      %2191 = vmatprep.subr.bf16.mxu0 0
      %2192 = vmatpush1.bf16.msra.mxu0 0
      %2193 = vmatprep.subr.bf16.mxu0 0
      %2194 = vmatpush1.bf16.msra.mxu0 0
      %2195 = vmatprep.subr.bf16.mxu0 0
      %2196 = vmatpush1.bf16.msra.mxu0 0
      %2197 = vmatprep.subr.bf16.mxu0 0
      %2198 = vmatpush1.bf16.msra.mxu0 0
      %2199 = vmatprep.subr.bf16.mxu0 0
      %2200 = vmatpush1.bf16.msra.mxu0 0
      %2201 = vmatprep.subr.bf16.mxu0 0
      %2202 = vmatpush1.bf16.msra.mxu0 0
      %2203 = vmatprep.subr.bf16.mxu0 0
      %2204 = vmatpush1.bf16.msra.mxu0 0
      %2205 = vmatprep.subr.bf16.mxu0 0
      %2206 = vmatpush1.bf16.msra.mxu0 0
      %2207 = vmatprep.subr.bf16.mxu0 0
      %2208 = vmatpush1.bf16.msra.mxu0 0
      %2209 = vmatprep.subr.bf16.mxu0 0
      %2210 = vmatpush1.bf16.msra.mxu0 0
      %2211 = vmatprep.subr.bf16.mxu0 0
      %2212 = vmatpush1.bf16.msra.mxu0 0
      %2213 = vmatprep.subr.bf16.mxu0 0
      %2214 = vmatpush1.bf16.msra.mxu0 0
      %2215 = vmatprep.subr.bf16.mxu0 0
      %2216 = vmatpush1.bf16.msra.mxu0 0
      %2217 = vmatprep.subr.bf16.mxu0 0
      %2218 = vmatpush1.bf16.msra.mxu0 0
      %2219 = vmatprep.subr.bf16.mxu0 0
      %2220 = vmatpush1.bf16.msra.mxu0 0
      %2221 = vmatprep.mubr.bf16.mxu0 0
      %2222 = vmatmul.mubr.bf16.gmra.mrb[0].mxu0 %v2160
      %v2223 = vpop.f32.mrb[0].mxu0
      %v2224 = vadd.f32 0.0, %v2223
      %v2225 = vpop.f32.mrb[0].mxu0
      %v2226 = vpop.f32.mrb[0].mxu0
      %v2227 = vadd.f32 0.0, %v2226
      %v2228 = vpop.f32.mrb[0].mxu0
      %2229 = vmatprep.mubr.bf16.mxu0 0
      %2230 = vmatmul.mubr.bf16.gmra.mrb[0].mxu0 %v2163
      %v2231 = vpop.f32.mrb[0].mxu0
      %v2232 = vadd.f32 0.0, %v2231
      %v2233 = vpop.f32.mrb[0].mxu0
      %v2234 = vpop.f32.mrb[0].mxu0
      %v2235 = vadd.f32 0.0, %v2234
      %v2236 = vpop.f32.mrb[0].mxu0
      %2237 = vmatprep.mubr.bf16.mxu0 0
      %2238 = vmatmul.mubr.bf16.gmra.mrb[0].mxu0 %v2166
      %v2239 = vpop.f32.mrb[0].mxu0
      %v2240 = vadd.f32 0.0, %v2239
      %v2241 = vpop.f32.mrb[0].mxu0
      %v2242 = vpop.f32.mrb[0].mxu0
      %v2243 = vadd.f32 0.0, %v2242
      %v2244 = vpop.f32.mrb[0].mxu0
      %2245 = vmatprep.mubr.bf16.mxu0 0
      %2246 = vmatmul.mubr.bf16.gmra.mrb[0].mxu0 %v2169
      %v2247 = vpop.f32.mrb[0].mxu0
      %v2248 = vadd.f32 0.0, %v2247
      %v2249 = vpop.f32.mrb[0].mxu0
      %v2250 = vpop.f32.mrb[0].mxu0
      %v2251 = vadd.f32 0.0, %v2250
      %v2252 = vpop.f32.mrb[0].mxu0
      %2253 = vmatprep.mubr.bf16.mxu0 0
      %2254 = vmatmul.mubr.bf16.gmra.mrb[0].mxu0 %v2172
      %v2255 = vpop.f32.mrb[0].mxu0
      %v2256 = vadd.f32 0.0, %v2255
      %v2257 = vpop.f32.mrb[0].mxu0
      %v2258 = vpop.f32.mrb[0].mxu0
      %v2259 = vadd.f32 0.0, %v2258
      %v2260 = vpop.f32.mrb[0].mxu0
      %2261 = vmatprep.mubr.bf16.mxu0 0
      %2262 = vmatmul.mubr.bf16.gmra.mrb[0].mxu0 %v2175
      %v2263 = vpop.f32.mrb[0].mxu0
      %v2264 = vadd.f32 0.0, %v2263
      %v2265 = vpop.f32.mrb[0].mxu0
      %v2266 = vpop.f32.mrb[0].mxu0
      %v2267 = vadd.f32 0.0, %v2266
      %v2268 = vpop.f32.mrb[0].mxu0
      %2269 = vmatprep.mubr.bf16.mxu0 0
      %2270 = vmatmul.mubr.bf16.gmra.mrb[0].mxu0 %v2178
      %v2271 = vpop.f32.mrb[0].mxu0
      %v2272 = vadd.f32 0.0, %v2271
      %v2273 = vpop.f32.mrb[0].mxu0
      %v2274 = vpop.f32.mrb[0].mxu0
      %v2275 = vadd.f32 0.0, %v2274
      %v2276 = vpop.f32.mrb[0].mxu0
      %2277 = vmatprep.mubr.bf16.mxu0 0
      %2278 = vmatmul.mubr.bf16.gmra.mrb[0].mxu0 %v2181
      %v2279 = vpop.f32.mrb[0].mxu0
      %v2280 = vadd.f32 0.0, %v2279
      %v2281 = vpop.f32.mrb[0].mxu0
      %v2282 = vpop.f32.mrb[0].mxu0
      %v2283 = vadd.f32 0.0, %v2282
      %v2284 = vpop.f32.mrb[0].mxu0
      %2285 = vmatprep.mubr.bf16.mxu0 0
      %2286 = vmatmul.mubr.bf16.gmra.mrb[0].mxu0 %v2184
      %v2287 = vpop.f32.mrb[0].mxu0
      %v2288 = vadd.f32 0.0, %v2287
      %v2289 = vpop.f32.mrb[0].mxu0
      %v2290 = vpop.f32.mrb[0].mxu0
      %v2291 = vpop.f32.mrb[0].mxu0
      %2292 = vdwg.mxu0
      %v2293 = vadd.f32 %v2140, %v2224
      %v2294 = vadd.f32 %v2141, %v2227
      %v2295 = vadd.f32 %v2142, %v2232
      %v2296 = vadd.f32 %v2143, %v2235
      %v2297 = vadd.f32 %v2144, %v2240
      %v2298 = vadd.f32 %v2145, %v2243
      %v2299 = vadd.f32 %v2146, %v2248
      %v2300 = vadd.f32 %v2147, %v2251
      %v2301 = vadd.f32 %v2148, %v2256
      %v2302 = vadd.f32 %v2149, %v2259
      %v2303 = vadd.f32 %v2150, %v2264
      %v2304 = vadd.f32 %v2151, %v2267
      %v2305 = vadd.f32 %v2152, %v2272
      %v2306 = vadd.f32 %v2153, %v2275
      %v2307 = vadd.f32 %v2154, %v2280
      %v2308 = vadd.f32 %v2155, %v2283
      %v2309 = vadd.f32 %v2156, %v2288
      %2310 = vst.msk [vmem:[#allocation5] sm:$0xff] %vm604, %v2293
      %2311 = vst.msk [vmem:[#allocation5 + $0x8] sm:$0xff] %vm604, %v2294
      %2312 = vst.msk [vmem:[#allocation5 + $0x10] sm:$0xff] %vm604, %v2295
      %2313 = vst.msk [vmem:[#allocation5 + $0x18] sm:$0xff] %vm604, %v2296
      %2314 = vst.msk [vmem:[#allocation5 + $0x20] sm:$0xff] %vm604, %v2297
      %2315 = vst.msk [vmem:[#allocation5 + $0x28] sm:$0xff] %vm604, %v2298
      %2316 = vst.msk [vmem:[#allocation5 + $0x30] sm:$0xff] %vm604, %v2299
      %2317 = vst.msk [vmem:[#allocation5 + $0x38] sm:$0xff] %vm604, %v2300
      %2318 = vst.msk [vmem:[#allocation5 + $0x40] sm:$0xff] %vm604, %v2301
      %2319 = vst.msk [vmem:[#allocation5 + $0x48] sm:$0xff] %vm604, %v2302
      %2320 = vst.msk [vmem:[#allocation5 + $0x50] sm:$0xff] %vm604, %v2303
      %2321 = vst.msk [vmem:[#allocation5 + $0x58] sm:$0xff] %vm604, %v2304
      %2322 = vst.msk [vmem:[#allocation5 + $0x60] sm:$0xff] %vm604, %v2305
      %2323 = vst.msk [vmem:[#allocation5 + $0x68] sm:$0xff] %vm604, %v2306
      %2324 = vst.msk [vmem:[#allocation5 + $0x70] sm:$0xff] %vm604, %v2307
      %2325 = vst.msk [vmem:[#allocation5 + $0x78] sm:$0xff] %vm604, %v2308
      %2326 = vst.msk [vmem:[#allocation5 + $0x80] sm:$0x3f] %vm621, %v2309
      %v2327 = vld [vmem:[#allocation2 + $0x13] sm:$0xff]
      %v2328 = vld [vmem:[#allocation2 + $0x1b] sm:$0xff]
      %v2329 = vld [vmem:[#allocation2 + $0x23] sm:$0xff]
      %v2330 = vld [vmem:[#allocation2 + $0x2b] sm:$0xff]
      %v2331 = vld [vmem:[#allocation2 + $0x33] sm:$0xff]
      %v2332 = vld [vmem:[#allocation2 + $0x3b] sm:$0xff]
      %v2333 = vld [vmem:[#allocation2 + $0x43] sm:$0xff]
      %v2334 = vld [vmem:[#allocation2 + $0x4b] sm:$0xff]
      %v2335 = vld [vmem:[#allocation2 + $0x53] sm:$0xff]
      %v2336 = vld [vmem:[#allocation2 + $0x5b] sm:$0xff]
      %v2337 = vld [vmem:[#allocation2 + $0x63] sm:$0xff]
      %v2338 = vld [vmem:[#allocation2 + $0x6b] sm:$0xff]
      %v2339 = vld [vmem:[#allocation2 + $0x73] sm:$0xff]
      %v2340 = vld [vmem:[#allocation2 + $0x7b] sm:$0xff]
      %v2341 = vld [vmem:[#allocation2 + $0x83] sm:$0xff]
      %v2342 = vld [vmem:[#allocation2 + $0x8b] sm:$0xff]
      %v2343 = vld [vmem:[#allocation2 + $0x93] sm:$0x3f]
      %v2344 = vpack.c.bf16 %v2328, %v2327
      %v2345 = vpack.c.bf16 %v2330, %v2329
      %v2346 = vpack.c.bf16 %v2332, %v2331
      %v2347 = vpack.c.bf16 %v2334, %v2333
      %v2348 = vpack.c.bf16 %v2336, %v2335
      %v2349 = vpack.c.bf16 %v2338, %v2337
      %v2350 = vpack.c.bf16 %v2340, %v2339
      %v2351 = vpack.c.bf16 %v2342, %v2341
      %v2352 = vpack.c.bf16 %v2343, %v2343
      %v2353 = vld [vmem:[#allocation5] sm:$0xff]
      %v2354 = vld [vmem:[#allocation5 + $0x8] sm:$0xff]
      %v2355 = vld [vmem:[#allocation5 + $0x10] sm:$0xff]
      %v2356 = vld [vmem:[#allocation5 + $0x18] sm:$0xff]
      %v2357 = vld [vmem:[#allocation5 + $0x20] sm:$0xff]
      %v2358 = vld [vmem:[#allocation5 + $0x28] sm:$0xff]
      %v2359 = vld [vmem:[#allocation5 + $0x30] sm:$0xff]
      %v2360 = vld [vmem:[#allocation5 + $0x38] sm:$0xff]
      %v2361 = vld [vmem:[#allocation5 + $0x40] sm:$0xff]
      %v2362 = vld [vmem:[#allocation5 + $0x48] sm:$0xff]
      %v2363 = vld [vmem:[#allocation5 + $0x50] sm:$0xff]
      %v2364 = vld [vmem:[#allocation5 + $0x58] sm:$0xff]
      %v2365 = vld [vmem:[#allocation5 + $0x60] sm:$0xff]
      %v2366 = vld [vmem:[#allocation5 + $0x68] sm:$0xff]
      %v2367 = vld [vmem:[#allocation5 + $0x70] sm:$0xff]
      %v2368 = vld [vmem:[#allocation5 + $0x78] sm:$0xff]
      %v2369 = vld [vmem:[#allocation5 + $0x80] sm:$0x3f]
      %s2370 = scalar_lea.vmem %s4, 16
      %v2371 = vld [vmem:[%s2370] sm:$0x3]
      %v2373 = vsel %vm358, %v2344, 0
      %v2376 = vsel %vm358, %v2345, 0
      %v2379 = vsel %vm358, %v2346, 0
      %v2382 = vsel %vm358, %v2347, 0
      %v2385 = vsel %vm358, %v2348, 0
      %v2388 = vsel %vm358, %v2349, 0
      %v2391 = vsel %vm358, %v2350, 0
      %v2394 = vsel %vm358, %v2351, 0
      %v2397 = vsel %vm358, %v2352, 0
      %v2400 = vsel %vm694, %v2371, 0
      %2402 = vmatprep.subr.bf16.mxu0 0
      %2403 = vmatpush1.bf16.msra.mxu0 %v2400
      %2404 = vmatprep.subr.bf16.mxu0 0
      %2405 = vmatpush1.bf16.msra.mxu0 0
      %2406 = vmatprep.subr.bf16.mxu0 0
      %2407 = vmatpush1.bf16.msra.mxu0 0
      %2408 = vmatprep.subr.bf16.mxu0 0
      %2409 = vmatpush1.bf16.msra.mxu0 0
      %2410 = vmatprep.subr.bf16.mxu0 0
      %2411 = vmatpush1.bf16.msra.mxu0 0
      %2412 = vmatprep.subr.bf16.mxu0 0
      %2413 = vmatpush1.bf16.msra.mxu0 0
      %2414 = vmatprep.subr.bf16.mxu0 0
      %2415 = vmatpush1.bf16.msra.mxu0 0
      %2416 = vmatprep.subr.bf16.mxu0 0
      %2417 = vmatpush1.bf16.msra.mxu0 0
      %2418 = vmatprep.subr.bf16.mxu0 0
      %2419 = vmatpush1.bf16.msra.mxu0 0
      %2420 = vmatprep.subr.bf16.mxu0 0
      %2421 = vmatpush1.bf16.msra.mxu0 0
      %2422 = vmatprep.subr.bf16.mxu0 0
      %2423 = vmatpush1.bf16.msra.mxu0 0
      %2424 = vmatprep.subr.bf16.mxu0 0
      %2425 = vmatpush1.bf16.msra.mxu0 0
      %2426 = vmatprep.subr.bf16.mxu0 0
      %2427 = vmatpush1.bf16.msra.mxu0 0
      %2428 = vmatprep.subr.bf16.mxu0 0
      %2429 = vmatpush1.bf16.msra.mxu0 0
      %2430 = vmatprep.subr.bf16.mxu0 0
      %2431 = vmatpush1.bf16.msra.mxu0 0
      %2432 = vmatprep.subr.bf16.mxu0 0
      %2433 = vmatpush1.bf16.msra.mxu0 0
      %2434 = vmatprep.mubr.bf16.mxu0 0
      %2435 = vmatmul.mubr.bf16.gmra.mrb[0].mxu0 %v2373
      %v2436 = vpop.f32.mrb[0].mxu0
      %v2437 = vadd.f32 0.0, %v2436
      %v2438 = vpop.f32.mrb[0].mxu0
      %v2439 = vpop.f32.mrb[0].mxu0
      %v2440 = vadd.f32 0.0, %v2439
      %v2441 = vpop.f32.mrb[0].mxu0
      %2442 = vmatprep.mubr.bf16.mxu0 0
      %2443 = vmatmul.mubr.bf16.gmra.mrb[0].mxu0 %v2376
      %v2444 = vpop.f32.mrb[0].mxu0
      %v2445 = vadd.f32 0.0, %v2444
      %v2446 = vpop.f32.mrb[0].mxu0
      %v2447 = vpop.f32.mrb[0].mxu0
      %v2448 = vadd.f32 0.0, %v2447
      %v2449 = vpop.f32.mrb[0].mxu0
      %2450 = vmatprep.mubr.bf16.mxu0 0
      %2451 = vmatmul.mubr.bf16.gmra.mrb[0].mxu0 %v2379
      %v2452 = vpop.f32.mrb[0].mxu0
      %v2453 = vadd.f32 0.0, %v2452
      %v2454 = vpop.f32.mrb[0].mxu0
      %v2455 = vpop.f32.mrb[0].mxu0
      %v2456 = vadd.f32 0.0, %v2455
      %v2457 = vpop.f32.mrb[0].mxu0
      %2458 = vmatprep.mubr.bf16.mxu0 0
      %2459 = vmatmul.mubr.bf16.gmra.mrb[0].mxu0 %v2382
      %v2460 = vpop.f32.mrb[0].mxu0
      %v2461 = vadd.f32 0.0, %v2460
      %v2462 = vpop.f32.mrb[0].mxu0
      %v2463 = vpop.f32.mrb[0].mxu0
      %v2464 = vadd.f32 0.0, %v2463
      %v2465 = vpop.f32.mrb[0].mxu0
      %2466 = vmatprep.mubr.bf16.mxu0 0
      %2467 = vmatmul.mubr.bf16.gmra.mrb[0].mxu0 %v2385
      %v2468 = vpop.f32.mrb[0].mxu0
      %v2469 = vadd.f32 0.0, %v2468
      %v2470 = vpop.f32.mrb[0].mxu0
      %v2471 = vpop.f32.mrb[0].mxu0
      %v2472 = vadd.f32 0.0, %v2471
      %v2473 = vpop.f32.mrb[0].mxu0
      %2474 = vmatprep.mubr.bf16.mxu0 0
      %2475 = vmatmul.mubr.bf16.gmra.mrb[0].mxu0 %v2388
      %v2476 = vpop.f32.mrb[0].mxu0
      %v2477 = vadd.f32 0.0, %v2476
      %v2478 = vpop.f32.mrb[0].mxu0
      %v2479 = vpop.f32.mrb[0].mxu0
      %v2480 = vadd.f32 0.0, %v2479
      %v2481 = vpop.f32.mrb[0].mxu0
      %2482 = vmatprep.mubr.bf16.mxu0 0
      %2483 = vmatmul.mubr.bf16.gmra.mrb[0].mxu0 %v2391
      %v2484 = vpop.f32.mrb[0].mxu0
      %v2485 = vadd.f32 0.0, %v2484
      %v2486 = vpop.f32.mrb[0].mxu0
      %v2487 = vpop.f32.mrb[0].mxu0
      %v2488 = vadd.f32 0.0, %v2487
      %v2489 = vpop.f32.mrb[0].mxu0
      %2490 = vmatprep.mubr.bf16.mxu0 0
      %2491 = vmatmul.mubr.bf16.gmra.mrb[0].mxu0 %v2394
      %v2492 = vpop.f32.mrb[0].mxu0
      %v2493 = vadd.f32 0.0, %v2492
      %v2494 = vpop.f32.mrb[0].mxu0
      %v2495 = vpop.f32.mrb[0].mxu0
      %v2496 = vadd.f32 0.0, %v2495
      %v2497 = vpop.f32.mrb[0].mxu0
      %2498 = vmatprep.mubr.bf16.mxu0 0
      %2499 = vmatmul.mubr.bf16.gmra.mrb[0].mxu0 %v2397
      %v2500 = vpop.f32.mrb[0].mxu0
      %v2501 = vadd.f32 0.0, %v2500
      %v2502 = vpop.f32.mrb[0].mxu0
      %v2503 = vpop.f32.mrb[0].mxu0
      %v2504 = vpop.f32.mrb[0].mxu0
      %2505 = vdwg.mxu0
      %v2506 = vadd.f32 %v2353, %v2437
      %v2507 = vadd.f32 %v2354, %v2440
      %v2508 = vadd.f32 %v2355, %v2445
      %v2509 = vadd.f32 %v2356, %v2448
      %v2510 = vadd.f32 %v2357, %v2453
      %v2511 = vadd.f32 %v2358, %v2456
      %v2512 = vadd.f32 %v2359, %v2461
      %v2513 = vadd.f32 %v2360, %v2464
      %v2514 = vadd.f32 %v2361, %v2469
      %v2515 = vadd.f32 %v2362, %v2472
      %v2516 = vadd.f32 %v2363, %v2477
      %v2517 = vadd.f32 %v2364, %v2480
      %v2518 = vadd.f32 %v2365, %v2485
      %v2519 = vadd.f32 %v2366, %v2488
      %v2520 = vadd.f32 %v2367, %v2493
      %v2521 = vadd.f32 %v2368, %v2496
      %v2522 = vadd.f32 %v2369, %v2501
      %2523 = vst.msk [vmem:[#allocation5] sm:$0xff] %vm604, %v2506
      %2524 = vst.msk [vmem:[#allocation5 + $0x8] sm:$0xff] %vm604, %v2507
      %2525 = vst.msk [vmem:[#allocation5 + $0x10] sm:$0xff] %vm604, %v2508
      %2526 = vst.msk [vmem:[#allocation5 + $0x18] sm:$0xff] %vm604, %v2509
      %2527 = vst.msk [vmem:[#allocation5 + $0x20] sm:$0xff] %vm604, %v2510
      %2528 = vst.msk [vmem:[#allocation5 + $0x28] sm:$0xff] %vm604, %v2511
      %2529 = vst.msk [vmem:[#allocation5 + $0x30] sm:$0xff] %vm604, %v2512
      %2530 = vst.msk [vmem:[#allocation5 + $0x38] sm:$0xff] %vm604, %v2513
      %2531 = vst.msk [vmem:[#allocation5 + $0x40] sm:$0xff] %vm604, %v2514
      %2532 = vst.msk [vmem:[#allocation5 + $0x48] sm:$0xff] %vm604, %v2515
      %2533 = vst.msk [vmem:[#allocation5 + $0x50] sm:$0xff] %vm604, %v2516
      %2534 = vst.msk [vmem:[#allocation5 + $0x58] sm:$0xff] %vm604, %v2517
      %2535 = vst.msk [vmem:[#allocation5 + $0x60] sm:$0xff] %vm604, %v2518
      %2536 = vst.msk [vmem:[#allocation5 + $0x68] sm:$0xff] %vm604, %v2519
      %2537 = vst.msk [vmem:[#allocation5 + $0x70] sm:$0xff] %vm604, %v2520
      %2538 = vst.msk [vmem:[#allocation5 + $0x78] sm:$0xff] %vm604, %v2521
      %2539 = vst.msk [vmem:[#allocation5 + $0x80] sm:$0x3f] %vm621, %v2522
      %v2540 = vld [vmem:[#allocation3 + $0x9] sm:$0xff]
      %v2541 = vld [vmem:[#allocation3 + $0x11] sm:$0xff]
      %v2542 = vld [vmem:[#allocation3 + $0x19] sm:$0xff]
      %v2543 = vld [vmem:[#allocation3 + $0x21] sm:$0xff]
      %v2544 = vld [vmem:[#allocation3 + $0x29] sm:$0xff]
      %v2545 = vld [vmem:[#allocation3 + $0x31] sm:$0xff]
      %v2546 = vld [vmem:[#allocation3 + $0x39] sm:$0xff]
      %v2547 = vld [vmem:[#allocation3 + $0x41] sm:$0xff]
      %v2548 = vld [vmem:[#allocation3 + $0x49] sm:$0xff]
      %v2549 = vld [vmem:[#allocation3 + $0x51] sm:$0xff]
      %v2550 = vld [vmem:[#allocation3 + $0x59] sm:$0xff]
      %v2551 = vld [vmem:[#allocation3 + $0x61] sm:$0xff]
      %v2552 = vld [vmem:[#allocation3 + $0x69] sm:$0xff]
      %v2553 = vld [vmem:[#allocation3 + $0x71] sm:$0xff]
      %v2554 = vld [vmem:[#allocation3 + $0x79] sm:$0xff]
      %v2555 = vld [vmem:[#allocation3 + $0x81] sm:$0xff]
      %v2556 = vld [vmem:[#allocation3 + $0x89] sm:$0x3f]
      %v2557 = vpack.c.bf16 %v2541, %v2540
      %v2558 = vpack.c.bf16 %v2543, %v2542
      %v2559 = vpack.c.bf16 %v2545, %v2544
      %v2560 = vpack.c.bf16 %v2547, %v2546
      %v2561 = vpack.c.bf16 %v2549, %v2548
      %v2562 = vpack.c.bf16 %v2551, %v2550
      %v2563 = vpack.c.bf16 %v2553, %v2552
      %v2564 = vpack.c.bf16 %v2555, %v2554
      %v2565 = vpack.c.bf16 %v2556, %v2556
      %v2566 = vld [vmem:[%s5] sm:$0x3]
      %v2568 = vsel %vm358, %v2557, 0
      %v2571 = vsel %vm358, %v2558, 0
      %v2574 = vsel %vm358, %v2559, 0
      %v2577 = vsel %vm358, %v2560, 0
      %v2580 = vsel %vm358, %v2561, 0
      %v2583 = vsel %vm358, %v2562, 0
      %v2586 = vsel %vm358, %v2563, 0
      %v2589 = vsel %vm358, %v2564, 0
      %v2592 = vsel %vm358, %v2565, 0
      %v2595 = vsel %vm694, %v2566, 0
      %2597 = vmatprep.subr.bf16.mxu0 0
      %2598 = vmatpush1.bf16.msra.mxu0 %v2595
      %2599 = vmatprep.subr.bf16.mxu0 0
      %2600 = vmatpush1.bf16.msra.mxu0 0
      %2601 = vmatprep.subr.bf16.mxu0 0
      %2602 = vmatpush1.bf16.msra.mxu0 0
      %2603 = vmatprep.subr.bf16.mxu0 0
      %2604 = vmatpush1.bf16.msra.mxu0 0
      %2605 = vmatprep.subr.bf16.mxu0 0
      %2606 = vmatpush1.bf16.msra.mxu0 0
      %2607 = vmatprep.subr.bf16.mxu0 0
      %2608 = vmatpush1.bf16.msra.mxu0 0
      %2609 = vmatprep.subr.bf16.mxu0 0
      %2610 = vmatpush1.bf16.msra.mxu0 0
      %2611 = vmatprep.subr.bf16.mxu0 0
      %2612 = vmatpush1.bf16.msra.mxu0 0
      %2613 = vmatprep.subr.bf16.mxu0 0
      %2614 = vmatpush1.bf16.msra.mxu0 0
      %2615 = vmatprep.subr.bf16.mxu0 0
      %2616 = vmatpush1.bf16.msra.mxu0 0
      %2617 = vmatprep.subr.bf16.mxu0 0
      %2618 = vmatpush1.bf16.msra.mxu0 0
      %2619 = vmatprep.subr.bf16.mxu0 0
      %2620 = vmatpush1.bf16.msra.mxu0 0
      %2621 = vmatprep.subr.bf16.mxu0 0
      %2622 = vmatpush1.bf16.msra.mxu0 0
      %2623 = vmatprep.subr.bf16.mxu0 0
      %2624 = vmatpush1.bf16.msra.mxu0 0
      %2625 = vmatprep.subr.bf16.mxu0 0
      %2626 = vmatpush1.bf16.msra.mxu0 0
      %2627 = vmatprep.subr.bf16.mxu0 0
      %2628 = vmatpush1.bf16.msra.mxu0 0
      %2629 = vmatprep.mubr.bf16.mxu0 0
      %2630 = vmatmul.mubr.bf16.gmra.mrb[0].mxu0 %v2568
      %v2631 = vpop.f32.mrb[0].mxu0
      %v2632 = vadd.f32 0.0, %v2631
      %v2633 = vpop.f32.mrb[0].mxu0
      %v2634 = vpop.f32.mrb[0].mxu0
      %v2635 = vadd.f32 0.0, %v2634
      %v2636 = vpop.f32.mrb[0].mxu0
      %2637 = vmatprep.mubr.bf16.mxu0 0
      %2638 = vmatmul.mubr.bf16.gmra.mrb[0].mxu0 %v2571
      %v2639 = vpop.f32.mrb[0].mxu0
      %v2640 = vadd.f32 0.0, %v2639
      %v2641 = vpop.f32.mrb[0].mxu0
      %v2642 = vpop.f32.mrb[0].mxu0
      %v2643 = vadd.f32 0.0, %v2642
      %v2644 = vpop.f32.mrb[0].mxu0
      %2645 = vmatprep.mubr.bf16.mxu0 0
      %2646 = vmatmul.mubr.bf16.gmra.mrb[0].mxu0 %v2574
      %v2647 = vpop.f32.mrb[0].mxu0
      %v2648 = vadd.f32 0.0, %v2647
      %v2649 = vpop.f32.mrb[0].mxu0
      %v2650 = vpop.f32.mrb[0].mxu0
      %v2651 = vadd.f32 0.0, %v2650
      %v2652 = vpop.f32.mrb[0].mxu0
      %2653 = vmatprep.mubr.bf16.mxu0 0
      %2654 = vmatmul.mubr.bf16.gmra.mrb[0].mxu0 %v2577
      %v2655 = vpop.f32.mrb[0].mxu0
      %v2656 = vadd.f32 0.0, %v2655
      %v2657 = vpop.f32.mrb[0].mxu0
      %v2658 = vpop.f32.mrb[0].mxu0
      %v2659 = vadd.f32 0.0, %v2658
      %v2660 = vpop.f32.mrb[0].mxu0
      %2661 = vmatprep.mubr.bf16.mxu0 0
      %2662 = vmatmul.mubr.bf16.gmra.mrb[0].mxu0 %v2580
      %v2663 = vpop.f32.mrb[0].mxu0
      %v2664 = vadd.f32 0.0, %v2663
      %v2665 = vpop.f32.mrb[0].mxu0
      %v2666 = vpop.f32.mrb[0].mxu0
      %v2667 = vadd.f32 0.0, %v2666
      %v2668 = vpop.f32.mrb[0].mxu0
      %2669 = vmatprep.mubr.bf16.mxu0 0
      %2670 = vmatmul.mubr.bf16.gmra.mrb[0].mxu0 %v2583
      %v2671 = vpop.f32.mrb[0].mxu0
      %v2672 = vadd.f32 0.0, %v2671
      %v2673 = vpop.f32.mrb[0].mxu0
      %v2674 = vpop.f32.mrb[0].mxu0
      %v2675 = vadd.f32 0.0, %v2674
      %v2676 = vpop.f32.mrb[0].mxu0
      %2677 = vmatprep.mubr.bf16.mxu0 0
      %2678 = vmatmul.mubr.bf16.gmra.mrb[0].mxu0 %v2586
      %v2679 = vpop.f32.mrb[0].mxu0
      %v2680 = vadd.f32 0.0, %v2679
      %v2681 = vpop.f32.mrb[0].mxu0
      %v2682 = vpop.f32.mrb[0].mxu0
      %v2683 = vadd.f32 0.0, %v2682
      %v2684 = vpop.f32.mrb[0].mxu0
      %2685 = vmatprep.mubr.bf16.mxu0 0
      %2686 = vmatmul.mubr.bf16.gmra.mrb[0].mxu0 %v2589
      %v2687 = vpop.f32.mrb[0].mxu0
      %v2688 = vadd.f32 0.0, %v2687
      %v2689 = vpop.f32.mrb[0].mxu0
      %v2690 = vpop.f32.mrb[0].mxu0
      %v2691 = vadd.f32 0.0, %v2690
      %v2692 = vpop.f32.mrb[0].mxu0
      %2693 = vmatprep.mubr.bf16.mxu0 0
      %2694 = vmatmul.mubr.bf16.gmra.mrb[0].mxu0 %v2592
      %v2695 = vpop.f32.mrb[0].mxu0
      %v2696 = vadd.f32 0.0, %v2695
      %v2697 = vpop.f32.mrb[0].mxu0
      %v2698 = vpop.f32.mrb[0].mxu0
      %v2699 = vpop.f32.mrb[0].mxu0
      %2700 = vdwg.mxu0
      %2701 = vst.msk [vmem:[#allocation7] sm:$0xff] %vm604, %v2632
      %2702 = vst.msk [vmem:[#allocation7 + $0x8] sm:$0xff] %vm604, %v2635
      %2703 = vst.msk [vmem:[#allocation7 + $0x10] sm:$0xff] %vm604, %v2640
      %2704 = vst.msk [vmem:[#allocation7 + $0x18] sm:$0xff] %vm604, %v2643
      %2705 = vst.msk [vmem:[#allocation7 + $0x20] sm:$0xff] %vm604, %v2648
      %2706 = vst.msk [vmem:[#allocation7 + $0x28] sm:$0xff] %vm604, %v2651
      %2707 = vst.msk [vmem:[#allocation7 + $0x30] sm:$0xff] %vm604, %v2656
      %2708 = vst.msk [vmem:[#allocation7 + $0x38] sm:$0xff] %vm604, %v2659
      %2709 = vst.msk [vmem:[#allocation7 + $0x40] sm:$0xff] %vm604, %v2664
      %2710 = vst.msk [vmem:[#allocation7 + $0x48] sm:$0xff] %vm604, %v2667
      %2711 = vst.msk [vmem:[#allocation7 + $0x50] sm:$0xff] %vm604, %v2672
      %2712 = vst.msk [vmem:[#allocation7 + $0x58] sm:$0xff] %vm604, %v2675
      %2713 = vst.msk [vmem:[#allocation7 + $0x60] sm:$0xff] %vm604, %v2680
      %2714 = vst.msk [vmem:[#allocation7 + $0x68] sm:$0xff] %vm604, %v2683
      %2715 = vst.msk [vmem:[#allocation7 + $0x70] sm:$0xff] %vm604, %v2688
      %2716 = vst.msk [vmem:[#allocation7 + $0x78] sm:$0xff] %vm604, %v2691
      %2717 = vst.msk [vmem:[#allocation7 + $0x80] sm:$0x3f] %vm621, %v2696
      %2718 = vst.msk [vmem:[#allocation4] sm:$0xff] %vm604, 0.0
      %2719 = vst.msk [vmem:[#allocation4 + $0x8] sm:$0xff] %vm604, 0.0
      %2720 = vst.msk [vmem:[#allocation4 + $0x10] sm:$0xff] %vm604, 0.0
      %2721 = vst.msk [vmem:[#allocation4 + $0x18] sm:$0xff] %vm604, 0.0
      %2722 = vst.msk [vmem:[#allocation4 + $0x20] sm:$0xff] %vm604, 0.0
      %2723 = vst.msk [vmem:[#allocation4 + $0x28] sm:$0xff] %vm604, 0.0
      %2724 = vst.msk [vmem:[#allocation4 + $0x30] sm:$0xff] %vm604, 0.0
      %2725 = vst.msk [vmem:[#allocation4 + $0x38] sm:$0xff] %vm604, 0.0
      %2726 = vst.msk [vmem:[#allocation4 + $0x40] sm:$0xff] %vm604, 0.0
      %2727 = vst.msk [vmem:[#allocation4 + $0x48] sm:$0xff] %vm604, 0.0
      %2728 = vst.msk [vmem:[#allocation4 + $0x50] sm:$0xff] %vm604, 0.0
      %2729 = vst.msk [vmem:[#allocation4 + $0x58] sm:$0xff] %vm604, 0.0
      %vm2730 = vcmask 60416
      %2731 = vst.msk [vmem:[#allocation4 + $0x60] sm:$0xf] %vm2730, 0.0
      %v2732 = vld [vmem:[#allocation5] sm:$0xff]
      %v2734 = vlaneseq
      %v2735 = vshrl.u32 %v2734, 7
      %v2736 = vsub.s32 0, %v2735
      %v2737 = vrot.slane %v356, %v2736
      %v2739 = vmul.f32 %v2732, %v2737
      %v2741 = vlaneseq
      %v2742 = vshrl.u32 %v2741, 7
      %v2743 = vsub.s32 0, %v2742
      %v2744 = vrot.slane %v357, %v2743
      %v2746 = vadd.f32 %v2739, %v2744
      %v2747 = vmax.f32 %v2746, 0.0
      %2748 = vst.msk [vmem:[#allocation4 + $0xb] sm:$0xff] %vm604, %v2747
      %v2749 = vld [vmem:[#allocation5 + $0x12] sm:$0xff]
      %v2750 = vmul.f32 %v2749, %v2737
      %v2751 = vadd.f32 %v2750, %v2744
      %v2752 = vmax.f32 %v2751, 0.0
      %2753 = vst.msk [vmem:[#allocation4 + $0x15] sm:$0xff] %vm604, %v2752
      %v2754 = vld [vmem:[#allocation5 + $0x24] sm:$0xff]
      %v2755 = vmul.f32 %v2754, %v2737
      %v2756 = vadd.f32 %v2755, %v2744
      %v2757 = vmax.f32 %v2756, 0.0
      %2758 = vst.msk [vmem:[#allocation4 + $0x1f] sm:$0xff] %vm604, %v2757
      %v2759 = vld [vmem:[#allocation5 + $0x36] sm:$0xff]
      %v2760 = vmul.f32 %v2759, %v2737
      %v2761 = vadd.f32 %v2760, %v2744
      %v2762 = vmax.f32 %v2761, 0.0
      %2763 = vst.msk [vmem:[#allocation4 + $0x29] sm:$0xff] %vm604, %v2762
      %v2764 = vld [vmem:[#allocation5 + $0x48] sm:$0xff]
      %v2765 = vmul.f32 %v2764, %v2737
      %v2766 = vadd.f32 %v2765, %v2744
      %v2767 = vmax.f32 %v2766, 0.0
      %2768 = vst.msk [vmem:[#allocation4 + $0x33] sm:$0xff] %vm604, %v2767
      %v2769 = vld [vmem:[#allocation5 + $0x5a] sm:$0xff]
      %v2770 = vmul.f32 %v2769, %v2737
      %v2771 = vadd.f32 %v2770, %v2744
      %v2772 = vmax.f32 %v2771, 0.0
      %2773 = vst.msk [vmem:[#allocation4 + $0x3d] sm:$0xff] %vm604, %v2772
      %v2774 = vld [vmem:[#allocation5 + $0x6c] sm:$0xff]
      %v2775 = vmul.f32 %v2774, %v2737
      %v2776 = vadd.f32 %v2775, %v2744
      %v2777 = vmax.f32 %v2776, 0.0
      %2778 = vst.msk [vmem:[#allocation4 + $0x47] sm:$0xff] %vm604, %v2777
      %v2779 = vld [vmem:[#allocation5 + $0x7e] sm:$0xff]
      %v2780 = vmul.f32 %v2779, %v2737
      %v2781 = vadd.f32 %v2780, %v2744
      %v2782 = vmax.f32 %v2781, 0.0
      %2783 = vst.msk [vmem:[#allocation4 + $0x51] sm:$0xff] %vm604, %v2782
      %2784 = vst.msk [vmem:[#allocation6] sm:$0xff] %vm604, 0.0
      %2785 = vst.msk [vmem:[#allocation6 + $0x8] sm:$0xff] %vm604, 0.0
      %2786 = vst.msk [vmem:[#allocation6 + $0x10] sm:$0xff] %vm604, 0.0
      %2787 = vst.msk [vmem:[#allocation6 + $0x18] sm:$0xff] %vm604, 0.0
      %2788 = vst.msk [vmem:[#allocation6 + $0x20] sm:$0xff] %vm604, 0.0
      %2789 = vst.msk [vmem:[#allocation6 + $0x28] sm:$0xff] %vm604, 0.0
      %2790 = vst.msk [vmem:[#allocation6 + $0x30] sm:$0xff] %vm604, 0.0
      %2791 = vst.msk [vmem:[#allocation6 + $0x38] sm:$0xff] %vm604, 0.0
      %2792 = vst.msk [vmem:[#allocation6 + $0x40] sm:$0xff] %vm604, 0.0
      %2793 = vst.msk [vmem:[#allocation6 + $0x48] sm:$0x3f] %vm621, 0.0
      %v2794 = vld [vmem:[#allocation4] sm:$0xff]
      %v2795 = vld [vmem:[#allocation4 + $0x8] sm:$0xff]
      %v2796 = vld [vmem:[#allocation4 + $0x10] sm:$0xff]
      %v2797 = vld [vmem:[#allocation4 + $0x18] sm:$0xff]
      %v2798 = vld [vmem:[#allocation4 + $0x20] sm:$0xff]
      %v2799 = vld [vmem:[#allocation4 + $0x28] sm:$0xff]
      %v2800 = vld [vmem:[#allocation4 + $0x30] sm:$0xff]
      %v2801 = vld [vmem:[#allocation4 + $0x38] sm:$0xff]
      %v2802 = vld [vmem:[#allocation4 + $0x40] sm:$0xff]
      %v2803 = vld [vmem:[#allocation4 + $0x48] sm:$0x3f]
      %v2804 = vpack.c.bf16 %v2795, %v2794
      %v2805 = vpack.c.bf16 %v2797, %v2796
      %v2806 = vpack.c.bf16 %v2799, %v2798
      %v2807 = vpack.c.bf16 %v2801, %v2800
      %v2808 = vpack.c.bf16 %v2803, %v2802
      %v2809 = vld [vmem:[#allocation6] sm:$0xff]
      %v2810 = vld [vmem:[#allocation6 + $0x8] sm:$0xff]
      %v2811 = vld [vmem:[#allocation6 + $0x10] sm:$0xff]
      %v2812 = vld [vmem:[#allocation6 + $0x18] sm:$0xff]
      %v2813 = vld [vmem:[#allocation6 + $0x20] sm:$0xff]
      %v2814 = vld [vmem:[#allocation6 + $0x28] sm:$0xff]
      %v2815 = vld [vmem:[#allocation6 + $0x30] sm:$0xff]
      %v2816 = vld [vmem:[#allocation6 + $0x38] sm:$0xff]
      %v2817 = vld [vmem:[#allocation6 + $0x40] sm:$0xff]
      %v2818 = vld [vmem:[#allocation6 + $0x48] sm:$0x3f]
      %v2819 = vld [vmem:[%s8] sm:$0xf]
      %v2821 = vsel %vm604, %v2804, 0
      %v2824 = vsel %vm604, %v2805, 0
      %v2827 = vsel %vm604, %v2806, 0
      %v2830 = vsel %vm604, %v2807, 0
      %v2833 = vsel %vm604, %v2808, 0
      %vm2835 = vcmask 1043456
      %v2837 = vsel %vm2835, %v2819, 0
      %2839 = vmatprep.subr.bf16.mxu0 0
      %2840 = vmatpush1.bf16.msra.mxu0 %v2837
      %2841 = vmatprep.subr.bf16.mxu0 0
      %2842 = vmatpush1.bf16.msra.mxu0 0
      %2843 = vmatprep.subr.bf16.mxu0 0
      %2844 = vmatpush1.bf16.msra.mxu0 0
      %2845 = vmatprep.subr.bf16.mxu0 0
      %2846 = vmatpush1.bf16.msra.mxu0 0
      %2847 = vmatprep.subr.bf16.mxu0 0
      %2848 = vmatpush1.bf16.msra.mxu0 0
      %2849 = vmatprep.subr.bf16.mxu0 0
      %2850 = vmatpush1.bf16.msra.mxu0 0
      %2851 = vmatprep.subr.bf16.mxu0 0
      %2852 = vmatpush1.bf16.msra.mxu0 0
      %2853 = vmatprep.subr.bf16.mxu0 0
      %2854 = vmatpush1.bf16.msra.mxu0 0
      %2855 = vmatprep.subr.bf16.mxu0 0
      %2856 = vmatpush1.bf16.msra.mxu0 0
      %2857 = vmatprep.subr.bf16.mxu0 0
      %2858 = vmatpush1.bf16.msra.mxu0 0
      %2859 = vmatprep.subr.bf16.mxu0 0
      %2860 = vmatpush1.bf16.msra.mxu0 0
      %2861 = vmatprep.subr.bf16.mxu0 0
      %2862 = vmatpush1.bf16.msra.mxu0 0
      %2863 = vmatprep.subr.bf16.mxu0 0
      %2864 = vmatpush1.bf16.msra.mxu0 0
      %2865 = vmatprep.subr.bf16.mxu0 0
      %2866 = vmatpush1.bf16.msra.mxu0 0
      %2867 = vmatprep.subr.bf16.mxu0 0
      %2868 = vmatpush1.bf16.msra.mxu0 0
      %2869 = vmatprep.subr.bf16.mxu0 0
      %2870 = vmatpush1.bf16.msra.mxu0 0
      %2871 = vmatprep.mubr.bf16.mxu0 0
      %2872 = vmatmul.mubr.bf16.gmra.mrb[0].mxu0 %v2821
      %v2873 = vpop.f32.mrb[0].mxu0
      %v2874 = vadd.f32 0.0, %v2873
      %v2875 = vpop.f32.mrb[0].mxu0
      %v2876 = vpop.f32.mrb[0].mxu0
      %v2877 = vadd.f32 0.0, %v2876
      %v2878 = vpop.f32.mrb[0].mxu0
      %2879 = vmatprep.mubr.bf16.mxu0 0
      %2880 = vmatmul.mubr.bf16.gmra.mrb[0].mxu0 %v2824
      %v2881 = vpop.f32.mrb[0].mxu0
      %v2882 = vadd.f32 0.0, %v2881
      %v2883 = vpop.f32.mrb[0].mxu0
      %v2884 = vpop.f32.mrb[0].mxu0
      %v2885 = vadd.f32 0.0, %v2884
      %v2886 = vpop.f32.mrb[0].mxu0
      %2887 = vmatprep.mubr.bf16.mxu0 0
      %2888 = vmatmul.mubr.bf16.gmra.mrb[0].mxu0 %v2827
      %v2889 = vpop.f32.mrb[0].mxu0
      %v2890 = vadd.f32 0.0, %v2889
      %v2891 = vpop.f32.mrb[0].mxu0
      %v2892 = vpop.f32.mrb[0].mxu0
      %v2893 = vadd.f32 0.0, %v2892
      %v2894 = vpop.f32.mrb[0].mxu0
      %2895 = vmatprep.mubr.bf16.mxu0 0
      %2896 = vmatmul.mubr.bf16.gmra.mrb[0].mxu0 %v2830
      %v2897 = vpop.f32.mrb[0].mxu0
      %v2898 = vadd.f32 0.0, %v2897
      %v2899 = vpop.f32.mrb[0].mxu0
      %v2900 = vpop.f32.mrb[0].mxu0
      %v2901 = vadd.f32 0.0, %v2900
      %v2902 = vpop.f32.mrb[0].mxu0
      %2903 = vmatprep.mubr.bf16.mxu0 0
      %2904 = vmatmul.mubr.bf16.gmra.mrb[0].mxu0 %v2833
      %v2905 = vpop.f32.mrb[0].mxu0
      %v2906 = vadd.f32 0.0, %v2905
      %v2907 = vpop.f32.mrb[0].mxu0
      %v2908 = vpop.f32.mrb[0].mxu0
      %v2909 = vadd.f32 0.0, %v2908
      %v2910 = vpop.f32.mrb[0].mxu0
      %2911 = vdwg.mxu0
      %v2912 = vadd.f32 %v2809, %v2874
      %v2913 = vadd.f32 %v2810, %v2877
      %v2914 = vadd.f32 %v2811, %v2882
      %v2915 = vadd.f32 %v2812, %v2885
      %v2916 = vadd.f32 %v2813, %v2890
      %v2917 = vadd.f32 %v2814, %v2893
      %v2918 = vadd.f32 %v2815, %v2898
      %v2919 = vadd.f32 %v2816, %v2901
      %v2920 = vadd.f32 %v2817, %v2906
      %v2921 = vadd.f32 %v2818, %v2909
      %2922 = vst.msk [vmem:[#allocation6] sm:$0xff] %vm604, %v2912
      %2923 = vst.msk [vmem:[#allocation6 + $0x8] sm:$0xff] %vm604, %v2913
      %2924 = vst.msk [vmem:[#allocation6 + $0x10] sm:$0xff] %vm604, %v2914
      %2925 = vst.msk [vmem:[#allocation6 + $0x18] sm:$0xff] %vm604, %v2915
      %2926 = vst.msk [vmem:[#allocation6 + $0x20] sm:$0xff] %vm604, %v2916
      %2927 = vst.msk [vmem:[#allocation6 + $0x28] sm:$0xff] %vm604, %v2917
      %2928 = vst.msk [vmem:[#allocation6 + $0x30] sm:$0xff] %vm604, %v2918
      %2929 = vst.msk [vmem:[#allocation6 + $0x38] sm:$0xff] %vm604, %v2919
      %2930 = vst.msk [vmem:[#allocation6 + $0x40] sm:$0xff] %vm604, %v2920
      %2931 = vst.msk [vmem:[#allocation6 + $0x48] sm:$0x3f] %vm621, %v2921
      %v2932 = vld [vmem:[#allocation4 + $0x1] sm:$0xff]
      %v2933 = vld [vmem:[#allocation4 + $0x9] sm:$0xff]
      %v2934 = vld [vmem:[#allocation4 + $0x11] sm:$0xff]
      %v2935 = vld [vmem:[#allocation4 + $0x19] sm:$0xff]
      %v2936 = vld [vmem:[#allocation4 + $0x21] sm:$0xff]
      %v2937 = vld [vmem:[#allocation4 + $0x29] sm:$0xff]
      %v2938 = vld [vmem:[#allocation4 + $0x31] sm:$0xff]
      %v2939 = vld [vmem:[#allocation4 + $0x39] sm:$0xff]
      %v2940 = vld [vmem:[#allocation4 + $0x41] sm:$0xff]
      %v2941 = vld [vmem:[#allocation4 + $0x49] sm:$0x3f]
      %v2942 = vpack.c.bf16 %v2933, %v2932
      %v2943 = vpack.c.bf16 %v2935, %v2934
      %v2944 = vpack.c.bf16 %v2937, %v2936
      %v2945 = vpack.c.bf16 %v2939, %v2938
      %v2946 = vpack.c.bf16 %v2941, %v2940
      %v2947 = vld [vmem:[#allocation6] sm:$0xff]
      %v2948 = vld [vmem:[#allocation6 + $0x8] sm:$0xff]
      %v2949 = vld [vmem:[#allocation6 + $0x10] sm:$0xff]
      %v2950 = vld [vmem:[#allocation6 + $0x18] sm:$0xff]
      %v2951 = vld [vmem:[#allocation6 + $0x20] sm:$0xff]
      %v2952 = vld [vmem:[#allocation6 + $0x28] sm:$0xff]
      %v2953 = vld [vmem:[#allocation6 + $0x30] sm:$0xff]
      %v2954 = vld [vmem:[#allocation6 + $0x38] sm:$0xff]
      %v2955 = vld [vmem:[#allocation6 + $0x40] sm:$0xff]
      %v2956 = vld [vmem:[#allocation6 + $0x48] sm:$0x3f]
      %s2957 = scalar_lea.vmem %s8, 4
      %v2958 = vld [vmem:[%s2957] sm:$0xf]
      %v2960 = vsel %vm604, %v2942, 0
      %v2963 = vsel %vm604, %v2943, 0
      %v2966 = vsel %vm604, %v2944, 0
      %v2969 = vsel %vm604, %v2945, 0
      %v2972 = vsel %vm604, %v2946, 0
      %v2975 = vsel %vm2835, %v2958, 0
      %2977 = vmatprep.subr.bf16.mxu0 0
      %2978 = vmatpush1.bf16.msra.mxu0 %v2975
      %2979 = vmatprep.subr.bf16.mxu0 0
      %2980 = vmatpush1.bf16.msra.mxu0 0
      %2981 = vmatprep.subr.bf16.mxu0 0
      %2982 = vmatpush1.bf16.msra.mxu0 0
      %2983 = vmatprep.subr.bf16.mxu0 0
      %2984 = vmatpush1.bf16.msra.mxu0 0
      %2985 = vmatprep.subr.bf16.mxu0 0
      %2986 = vmatpush1.bf16.msra.mxu0 0
      %2987 = vmatprep.subr.bf16.mxu0 0
      %2988 = vmatpush1.bf16.msra.mxu0 0
      %2989 = vmatprep.subr.bf16.mxu0 0
      %2990 = vmatpush1.bf16.msra.mxu0 0
      %2991 = vmatprep.subr.bf16.mxu0 0
      %2992 = vmatpush1.bf16.msra.mxu0 0
      %2993 = vmatprep.subr.bf16.mxu0 0
      %2994 = vmatpush1.bf16.msra.mxu0 0
      %2995 = vmatprep.subr.bf16.mxu0 0
      %2996 = vmatpush1.bf16.msra.mxu0 0
      %2997 = vmatprep.subr.bf16.mxu0 0
      %2998 = vmatpush1.bf16.msra.mxu0 0
      %2999 = vmatprep.subr.bf16.mxu0 0
      %3000 = vmatpush1.bf16.msra.mxu0 0
      %3001 = vmatprep.subr.bf16.mxu0 0
      %3002 = vmatpush1.bf16.msra.mxu0 0
      %3003 = vmatprep.subr.bf16.mxu0 0
      %3004 = vmatpush1.bf16.msra.mxu0 0
      %3005 = vmatprep.subr.bf16.mxu0 0
      %3006 = vmatpush1.bf16.msra.mxu0 0
      %3007 = vmatprep.subr.bf16.mxu0 0
      %3008 = vmatpush1.bf16.msra.mxu0 0
      %3009 = vmatprep.mubr.bf16.mxu0 0
      %3010 = vmatmul.mubr.bf16.gmra.mrb[0].mxu0 %v2960
      %v3011 = vpop.f32.mrb[0].mxu0
      %v3012 = vadd.f32 0.0, %v3011
      %v3013 = vpop.f32.mrb[0].mxu0
      %v3014 = vpop.f32.mrb[0].mxu0
      %v3015 = vadd.f32 0.0, %v3014
      %v3016 = vpop.f32.mrb[0].mxu0
      %3017 = vmatprep.mubr.bf16.mxu0 0
      %3018 = vmatmul.mubr.bf16.gmra.mrb[0].mxu0 %v2963
      %v3019 = vpop.f32.mrb[0].mxu0
      %v3020 = vadd.f32 0.0, %v3019
      %v3021 = vpop.f32.mrb[0].mxu0
      %v3022 = vpop.f32.mrb[0].mxu0
      %v3023 = vadd.f32 0.0, %v3022
      %v3024 = vpop.f32.mrb[0].mxu0
      %3025 = vmatprep.mubr.bf16.mxu0 0
      %3026 = vmatmul.mubr.bf16.gmra.mrb[0].mxu0 %v2966
      %v3027 = vpop.f32.mrb[0].mxu0
      %v3028 = vadd.f32 0.0, %v3027
      %v3029 = vpop.f32.mrb[0].mxu0
      %v3030 = vpop.f32.mrb[0].mxu0
      %v3031 = vadd.f32 0.0, %v3030
      %v3032 = vpop.f32.mrb[0].mxu0
      %3033 = vmatprep.mubr.bf16.mxu0 0
      %3034 = vmatmul.mubr.bf16.gmra.mrb[0].mxu0 %v2969
      %v3035 = vpop.f32.mrb[0].mxu0
      %v3036 = vadd.f32 0.0, %v3035
      %v3037 = vpop.f32.mrb[0].mxu0
      %v3038 = vpop.f32.mrb[0].mxu0
      %v3039 = vadd.f32 0.0, %v3038
      %v3040 = vpop.f32.mrb[0].mxu0
      %3041 = vmatprep.mubr.bf16.mxu0 0
      %3042 = vmatmul.mubr.bf16.gmra.mrb[0].mxu0 %v2972
      %v3043 = vpop.f32.mrb[0].mxu0
      %v3044 = vadd.f32 0.0, %v3043
      %v3045 = vpop.f32.mrb[0].mxu0
      %v3046 = vpop.f32.mrb[0].mxu0
      %v3047 = vadd.f32 0.0, %v3046
      %v3048 = vpop.f32.mrb[0].mxu0
      %3049 = vdwg.mxu0
      %v3050 = vadd.f32 %v2947, %v3012
      %v3051 = vadd.f32 %v2948, %v3015
      %v3052 = vadd.f32 %v2949, %v3020
      %v3053 = vadd.f32 %v2950, %v3023
      %v3054 = vadd.f32 %v2951, %v3028
      %v3055 = vadd.f32 %v2952, %v3031
      %v3056 = vadd.f32 %v2953, %v3036
      %v3057 = vadd.f32 %v2954, %v3039
      %v3058 = vadd.f32 %v2955, %v3044
      %v3059 = vadd.f32 %v2956, %v3047
      %3060 = vst.msk [vmem:[#allocation6] sm:$0xff] %vm604, %v3050
      %3061 = vst.msk [vmem:[#allocation6 + $0x8] sm:$0xff] %vm604, %v3051
      %3062 = vst.msk [vmem:[#allocation6 + $0x10] sm:$0xff] %vm604, %v3052
      %3063 = vst.msk [vmem:[#allocation6 + $0x18] sm:$0xff] %vm604, %v3053
      %3064 = vst.msk [vmem:[#allocation6 + $0x20] sm:$0xff] %vm604, %v3054
      %3065 = vst.msk [vmem:[#allocation6 + $0x28] sm:$0xff] %vm604, %v3055
      %3066 = vst.msk [vmem:[#allocation6 + $0x30] sm:$0xff] %vm604, %v3056
      %3067 = vst.msk [vmem:[#allocation6 + $0x38] sm:$0xff] %vm604, %v3057
      %3068 = vst.msk [vmem:[#allocation6 + $0x40] sm:$0xff] %vm604, %v3058
      %3069 = vst.msk [vmem:[#allocation6 + $0x48] sm:$0x3f] %vm621, %v3059
      %v3070 = vld [vmem:[#allocation4 + $0x2] sm:$0xff]
      %v3071 = vld [vmem:[#allocation4 + $0xa] sm:$0xff]
      %v3072 = vld [vmem:[#allocation4 + $0x12] sm:$0xff]
      %v3073 = vld [vmem:[#allocation4 + $0x1a] sm:$0xff]
      %v3074 = vld [vmem:[#allocation4 + $0x22] sm:$0xff]
      %v3075 = vld [vmem:[#allocation4 + $0x2a] sm:$0xff]
      %v3076 = vld [vmem:[#allocation4 + $0x32] sm:$0xff]
      %v3077 = vld [vmem:[#allocation4 + $0x3a] sm:$0xff]
      %v3078 = vld [vmem:[#allocation4 + $0x42] sm:$0xff]
      %v3079 = vld [vmem:[#allocation4 + $0x4a] sm:$0x3f]
      %v3080 = vpack.c.bf16 %v3071, %v3070
      %v3081 = vpack.c.bf16 %v3073, %v3072
      %v3082 = vpack.c.bf16 %v3075, %v3074
      %v3083 = vpack.c.bf16 %v3077, %v3076
      %v3084 = vpack.c.bf16 %v3079, %v3078
      %v3085 = vld [vmem:[#allocation6] sm:$0xff]
      %v3086 = vld [vmem:[#allocation6 + $0x8] sm:$0xff]
      %v3087 = vld [vmem:[#allocation6 + $0x10] sm:$0xff]
      %v3088 = vld [vmem:[#allocation6 + $0x18] sm:$0xff]
      %v3089 = vld [vmem:[#allocation6 + $0x20] sm:$0xff]
      %v3090 = vld [vmem:[#allocation6 + $0x28] sm:$0xff]
      %v3091 = vld [vmem:[#allocation6 + $0x30] sm:$0xff]
      %v3092 = vld [vmem:[#allocation6 + $0x38] sm:$0xff]
      %v3093 = vld [vmem:[#allocation6 + $0x40] sm:$0xff]
      %v3094 = vld [vmem:[#allocation6 + $0x48] sm:$0x3f]
      %s3095 = scalar_lea.vmem %s8, 8
      %v3096 = vld [vmem:[%s3095] sm:$0xf]
      %v3098 = vsel %vm604, %v3080, 0
      %v3101 = vsel %vm604, %v3081, 0
      %v3104 = vsel %vm604, %v3082, 0
      %v3107 = vsel %vm604, %v3083, 0
      %v3110 = vsel %vm604, %v3084, 0
      %v3113 = vsel %vm2835, %v3096, 0
      %3115 = vmatprep.subr.bf16.mxu0 0
      %3116 = vmatpush1.bf16.msra.mxu0 %v3113
      %3117 = vmatprep.subr.bf16.mxu0 0
      %3118 = vmatpush1.bf16.msra.mxu0 0
      %3119 = vmatprep.subr.bf16.mxu0 0
      %3120 = vmatpush1.bf16.msra.mxu0 0
      %3121 = vmatprep.subr.bf16.mxu0 0
      %3122 = vmatpush1.bf16.msra.mxu0 0
      %3123 = vmatprep.subr.bf16.mxu0 0
      %3124 = vmatpush1.bf16.msra.mxu0 0
      %3125 = vmatprep.subr.bf16.mxu0 0
      %3126 = vmatpush1.bf16.msra.mxu0 0
      %3127 = vmatprep.subr.bf16.mxu0 0
      %3128 = vmatpush1.bf16.msra.mxu0 0
      %3129 = vmatprep.subr.bf16.mxu0 0
      %3130 = vmatpush1.bf16.msra.mxu0 0
      %3131 = vmatprep.subr.bf16.mxu0 0
      %3132 = vmatpush1.bf16.msra.mxu0 0
      %3133 = vmatprep.subr.bf16.mxu0 0
      %3134 = vmatpush1.bf16.msra.mxu0 0
      %3135 = vmatprep.subr.bf16.mxu0 0
      %3136 = vmatpush1.bf16.msra.mxu0 0
      %3137 = vmatprep.subr.bf16.mxu0 0
      %3138 = vmatpush1.bf16.msra.mxu0 0
      %3139 = vmatprep.subr.bf16.mxu0 0
      %3140 = vmatpush1.bf16.msra.mxu0 0
      %3141 = vmatprep.subr.bf16.mxu0 0
      %3142 = vmatpush1.bf16.msra.mxu0 0
      %3143 = vmatprep.subr.bf16.mxu0 0
      %3144 = vmatpush1.bf16.msra.mxu0 0
      %3145 = vmatprep.subr.bf16.mxu0 0
      %3146 = vmatpush1.bf16.msra.mxu0 0
      %3147 = vmatprep.mubr.bf16.mxu0 0
      %3148 = vmatmul.mubr.bf16.gmra.mrb[0].mxu0 %v3098
      %v3149 = vpop.f32.mrb[0].mxu0
      %v3150 = vadd.f32 0.0, %v3149
      %v3151 = vpop.f32.mrb[0].mxu0
      %v3152 = vpop.f32.mrb[0].mxu0
      %v3153 = vadd.f32 0.0, %v3152
      %v3154 = vpop.f32.mrb[0].mxu0
      %3155 = vmatprep.mubr.bf16.mxu0 0
      %3156 = vmatmul.mubr.bf16.gmra.mrb[0].mxu0 %v3101
      %v3157 = vpop.f32.mrb[0].mxu0
      %v3158 = vadd.f32 0.0, %v3157
      %v3159 = vpop.f32.mrb[0].mxu0
      %v3160 = vpop.f32.mrb[0].mxu0
      %v3161 = vadd.f32 0.0, %v3160
      %v3162 = vpop.f32.mrb[0].mxu0
      %3163 = vmatprep.mubr.bf16.mxu0 0
      %3164 = vmatmul.mubr.bf16.gmra.mrb[0].mxu0 %v3104
      %v3165 = vpop.f32.mrb[0].mxu0
      %v3166 = vadd.f32 0.0, %v3165
      %v3167 = vpop.f32.mrb[0].mxu0
      %v3168 = vpop.f32.mrb[0].mxu0
      %v3169 = vadd.f32 0.0, %v3168
      %v3170 = vpop.f32.mrb[0].mxu0
      %3171 = vmatprep.mubr.bf16.mxu0 0
      %3172 = vmatmul.mubr.bf16.gmra.mrb[0].mxu0 %v3107
      %v3173 = vpop.f32.mrb[0].mxu0
      %v3174 = vadd.f32 0.0, %v3173
      %v3175 = vpop.f32.mrb[0].mxu0
      %v3176 = vpop.f32.mrb[0].mxu0
      %v3177 = vadd.f32 0.0, %v3176
      %v3178 = vpop.f32.mrb[0].mxu0
      %3179 = vmatprep.mubr.bf16.mxu0 0
      %3180 = vmatmul.mubr.bf16.gmra.mrb[0].mxu0 %v3110
      %v3181 = vpop.f32.mrb[0].mxu0
      %v3182 = vadd.f32 0.0, %v3181
      %v3183 = vpop.f32.mrb[0].mxu0
      %v3184 = vpop.f32.mrb[0].mxu0
      %v3185 = vadd.f32 0.0, %v3184
      %v3186 = vpop.f32.mrb[0].mxu0
      %3187 = vdwg.mxu0
      %v3188 = vadd.f32 %v3085, %v3150
      %v3189 = vadd.f32 %v3086, %v3153
      %v3190 = vadd.f32 %v3087, %v3158
      %v3191 = vadd.f32 %v3088, %v3161
      %v3192 = vadd.f32 %v3089, %v3166
      %v3193 = vadd.f32 %v3090, %v3169
      %v3194 = vadd.f32 %v3091, %v3174
      %v3195 = vadd.f32 %v3092, %v3177
      %v3196 = vadd.f32 %v3093, %v3182
      %v3197 = vadd.f32 %v3094, %v3185
      %3198 = vst.msk [vmem:[#allocation6] sm:$0xff] %vm604, %v3188
      %3199 = vst.msk [vmem:[#allocation6 + $0x8] sm:$0xff] %vm604, %v3189
      %3200 = vst.msk [vmem:[#allocation6 + $0x10] sm:$0xff] %vm604, %v3190
      %3201 = vst.msk [vmem:[#allocation6 + $0x18] sm:$0xff] %vm604, %v3191
      %3202 = vst.msk [vmem:[#allocation6 + $0x20] sm:$0xff] %vm604, %v3192
      %3203 = vst.msk [vmem:[#allocation6 + $0x28] sm:$0xff] %vm604, %v3193
      %3204 = vst.msk [vmem:[#allocation6 + $0x30] sm:$0xff] %vm604, %v3194
      %3205 = vst.msk [vmem:[#allocation6 + $0x38] sm:$0xff] %vm604, %v3195
      %3206 = vst.msk [vmem:[#allocation6 + $0x40] sm:$0xff] %vm604, %v3196
      %3207 = vst.msk [vmem:[#allocation6 + $0x48] sm:$0x3f] %vm621, %v3197
      %v3208 = vld [vmem:[#allocation4 + $0xa] sm:$0xff]
      %v3209 = vld [vmem:[#allocation4 + $0x12] sm:$0xff]
      %v3210 = vld [vmem:[#allocation4 + $0x1a] sm:$0xff]
      %v3211 = vld [vmem:[#allocation4 + $0x22] sm:$0xff]
      %v3212 = vld [vmem:[#allocation4 + $0x2a] sm:$0xff]
      %v3213 = vld [vmem:[#allocation4 + $0x32] sm:$0xff]
      %v3214 = vld [vmem:[#allocation4 + $0x3a] sm:$0xff]
      %v3215 = vld [vmem:[#allocation4 + $0x42] sm:$0xff]
      %v3216 = vld [vmem:[#allocation4 + $0x4a] sm:$0xff]
      %v3217 = vld [vmem:[#allocation4 + $0x52] sm:$0x3f]
      %v3218 = vpack.c.bf16 %v3209, %v3208
      %v3219 = vpack.c.bf16 %v3211, %v3210
      %v3220 = vpack.c.bf16 %v3213, %v3212
      %v3221 = vpack.c.bf16 %v3215, %v3214
      %v3222 = vpack.c.bf16 %v3217, %v3216
      %v3223 = vld [vmem:[#allocation6] sm:$0xff]
      %v3224 = vld [vmem:[#allocation6 + $0x8] sm:$0xff]
      %v3225 = vld [vmem:[#allocation6 + $0x10] sm:$0xff]
      %v3226 = vld [vmem:[#allocation6 + $0x18] sm:$0xff]
      %v3227 = vld [vmem:[#allocation6 + $0x20] sm:$0xff]
      %v3228 = vld [vmem:[#allocation6 + $0x28] sm:$0xff]
      %v3229 = vld [vmem:[#allocation6 + $0x30] sm:$0xff]
      %v3230 = vld [vmem:[#allocation6 + $0x38] sm:$0xff]
      %v3231 = vld [vmem:[#allocation6 + $0x40] sm:$0xff]
      %v3232 = vld [vmem:[#allocation6 + $0x48] sm:$0x3f]
      %s3233 = scalar_lea.vmem %s8, 12
      %v3234 = vld [vmem:[%s3233] sm:$0xf]
      %v3236 = vsel %vm604, %v3218, 0
      %v3239 = vsel %vm604, %v3219, 0
      %v3242 = vsel %vm604, %v3220, 0
      %v3245 = vsel %vm604, %v3221, 0
      %v3248 = vsel %vm604, %v3222, 0
      %v3251 = vsel %vm2835, %v3234, 0
      %3253 = vmatprep.subr.bf16.mxu0 0
      %3254 = vmatpush1.bf16.msra.mxu0 %v3251
      %3255 = vmatprep.subr.bf16.mxu0 0
      %3256 = vmatpush1.bf16.msra.mxu0 0
      %3257 = vmatprep.subr.bf16.mxu0 0
      %3258 = vmatpush1.bf16.msra.mxu0 0
      %3259 = vmatprep.subr.bf16.mxu0 0
      %3260 = vmatpush1.bf16.msra.mxu0 0
      %3261 = vmatprep.subr.bf16.mxu0 0
      %3262 = vmatpush1.bf16.msra.mxu0 0
      %3263 = vmatprep.subr.bf16.mxu0 0
      %3264 = vmatpush1.bf16.msra.mxu0 0
      %3265 = vmatprep.subr.bf16.mxu0 0
      %3266 = vmatpush1.bf16.msra.mxu0 0
      %3267 = vmatprep.subr.bf16.mxu0 0
      %3268 = vmatpush1.bf16.msra.mxu0 0
      %3269 = vmatprep.subr.bf16.mxu0 0
      %3270 = vmatpush1.bf16.msra.mxu0 0
      %3271 = vmatprep.subr.bf16.mxu0 0
      %3272 = vmatpush1.bf16.msra.mxu0 0
      %3273 = vmatprep.subr.bf16.mxu0 0
      %3274 = vmatpush1.bf16.msra.mxu0 0
      %3275 = vmatprep.subr.bf16.mxu0 0
      %3276 = vmatpush1.bf16.msra.mxu0 0
      %3277 = vmatprep.subr.bf16.mxu0 0
      %3278 = vmatpush1.bf16.msra.mxu0 0
      %3279 = vmatprep.subr.bf16.mxu0 0
      %3280 = vmatpush1.bf16.msra.mxu0 0
      %3281 = vmatprep.subr.bf16.mxu0 0
      %3282 = vmatpush1.bf16.msra.mxu0 0
      %3283 = vmatprep.subr.bf16.mxu0 0
      %3284 = vmatpush1.bf16.msra.mxu0 0
      %3285 = vmatprep.mubr.bf16.mxu0 0
      %3286 = vmatmul.mubr.bf16.gmra.mrb[0].mxu0 %v3236
      %v3287 = vpop.f32.mrb[0].mxu0
      %v3288 = vadd.f32 0.0, %v3287
      %v3289 = vpop.f32.mrb[0].mxu0
      %v3290 = vpop.f32.mrb[0].mxu0
      %v3291 = vadd.f32 0.0, %v3290
      %v3292 = vpop.f32.mrb[0].mxu0
      %3293 = vmatprep.mubr.bf16.mxu0 0
      %3294 = vmatmul.mubr.bf16.gmra.mrb[0].mxu0 %v3239
      %v3295 = vpop.f32.mrb[0].mxu0
      %v3296 = vadd.f32 0.0, %v3295
      %v3297 = vpop.f32.mrb[0].mxu0
      %v3298 = vpop.f32.mrb[0].mxu0
      %v3299 = vadd.f32 0.0, %v3298
      %v3300 = vpop.f32.mrb[0].mxu0
      %3301 = vmatprep.mubr.bf16.mxu0 0
      %3302 = vmatmul.mubr.bf16.gmra.mrb[0].mxu0 %v3242
      %v3303 = vpop.f32.mrb[0].mxu0
      %v3304 = vadd.f32 0.0, %v3303
      %v3305 = vpop.f32.mrb[0].mxu0
      %v3306 = vpop.f32.mrb[0].mxu0
      %v3307 = vadd.f32 0.0, %v3306
      %v3308 = vpop.f32.mrb[0].mxu0
      %3309 = vmatprep.mubr.bf16.mxu0 0
      %3310 = vmatmul.mubr.bf16.gmra.mrb[0].mxu0 %v3245
      %v3311 = vpop.f32.mrb[0].mxu0
      %v3312 = vadd.f32 0.0, %v3311
      %v3313 = vpop.f32.mrb[0].mxu0
      %v3314 = vpop.f32.mrb[0].mxu0
      %v3315 = vadd.f32 0.0, %v3314
      %v3316 = vpop.f32.mrb[0].mxu0
      %3317 = vmatprep.mubr.bf16.mxu0 0
      %3318 = vmatmul.mubr.bf16.gmra.mrb[0].mxu0 %v3248
      %v3319 = vpop.f32.mrb[0].mxu0
      %v3320 = vadd.f32 0.0, %v3319
      %v3321 = vpop.f32.mrb[0].mxu0
      %v3322 = vpop.f32.mrb[0].mxu0
      %v3323 = vadd.f32 0.0, %v3322
      %v3324 = vpop.f32.mrb[0].mxu0
      %3325 = vdwg.mxu0
      %v3326 = vadd.f32 %v3223, %v3288
      %v3327 = vadd.f32 %v3224, %v3291
      %v3328 = vadd.f32 %v3225, %v3296
      %v3329 = vadd.f32 %v3226, %v3299
      %v3330 = vadd.f32 %v3227, %v3304
      %v3331 = vadd.f32 %v3228, %v3307
      %v3332 = vadd.f32 %v3229, %v3312
      %v3333 = vadd.f32 %v3230, %v3315
      %v3334 = vadd.f32 %v3231, %v3320
      %v3335 = vadd.f32 %v3232, %v3323
      %3336 = vst.msk [vmem:[#allocation6] sm:$0xff] %vm604, %v3326
      %3337 = vst.msk [vmem:[#allocation6 + $0x8] sm:$0xff] %vm604, %v3327
      %3338 = vst.msk [vmem:[#allocation6 + $0x10] sm:$0xff] %vm604, %v3328
      %3339 = vst.msk [vmem:[#allocation6 + $0x18] sm:$0xff] %vm604, %v3329
      %3340 = vst.msk [vmem:[#allocation6 + $0x20] sm:$0xff] %vm604, %v3330
      %3341 = vst.msk [vmem:[#allocation6 + $0x28] sm:$0xff] %vm604, %v3331
      %3342 = vst.msk [vmem:[#allocation6 + $0x30] sm:$0xff] %vm604, %v3332
      %3343 = vst.msk [vmem:[#allocation6 + $0x38] sm:$0xff] %vm604, %v3333
      %3344 = vst.msk [vmem:[#allocation6 + $0x40] sm:$0xff] %vm604, %v3334
      %3345 = vst.msk [vmem:[#allocation6 + $0x48] sm:$0x3f] %vm621, %v3335
      %v3346 = vld [vmem:[#allocation4 + $0xb] sm:$0xff]
      %v3347 = vld [vmem:[#allocation4 + $0x13] sm:$0xff]
      %v3348 = vld [vmem:[#allocation4 + $0x1b] sm:$0xff]
      %v3349 = vld [vmem:[#allocation4 + $0x23] sm:$0xff]
      %v3350 = vld [vmem:[#allocation4 + $0x2b] sm:$0xff]
      %v3351 = vld [vmem:[#allocation4 + $0x33] sm:$0xff]
      %v3352 = vld [vmem:[#allocation4 + $0x3b] sm:$0xff]
      %v3353 = vld [vmem:[#allocation4 + $0x43] sm:$0xff]
      %v3354 = vld [vmem:[#allocation4 + $0x4b] sm:$0xff]
      %v3355 = vld [vmem:[#allocation4 + $0x53] sm:$0x3f]
      %v3356 = vpack.c.bf16 %v3347, %v3346
      %v3357 = vpack.c.bf16 %v3349, %v3348
      %v3358 = vpack.c.bf16 %v3351, %v3350
      %v3359 = vpack.c.bf16 %v3353, %v3352
      %v3360 = vpack.c.bf16 %v3355, %v3354
      %v3361 = vld [vmem:[#allocation6] sm:$0xff]
      %v3362 = vld [vmem:[#allocation6 + $0x8] sm:$0xff]
      %v3363 = vld [vmem:[#allocation6 + $0x10] sm:$0xff]
      %v3364 = vld [vmem:[#allocation6 + $0x18] sm:$0xff]
      %v3365 = vld [vmem:[#allocation6 + $0x20] sm:$0xff]
      %v3366 = vld [vmem:[#allocation6 + $0x28] sm:$0xff]
      %v3367 = vld [vmem:[#allocation6 + $0x30] sm:$0xff]
      %v3368 = vld [vmem:[#allocation6 + $0x38] sm:$0xff]
      %v3369 = vld [vmem:[#allocation6 + $0x40] sm:$0xff]
      %v3370 = vld [vmem:[#allocation6 + $0x48] sm:$0x3f]
      %s3371 = scalar_lea.vmem %s8, 16
      %v3372 = vld [vmem:[%s3371] sm:$0xf]
      %v3374 = vsel %vm604, %v3356, 0
      %v3377 = vsel %vm604, %v3357, 0
      %v3380 = vsel %vm604, %v3358, 0
      %v3383 = vsel %vm604, %v3359, 0
      %v3386 = vsel %vm604, %v3360, 0
      %v3389 = vsel %vm2835, %v3372, 0
      %3391 = vmatprep.subr.bf16.mxu0 0
      %3392 = vmatpush1.bf16.msra.mxu0 %v3389
      %3393 = vmatprep.subr.bf16.mxu0 0
      %3394 = vmatpush1.bf16.msra.mxu0 0
      %3395 = vmatprep.subr.bf16.mxu0 0
      %3396 = vmatpush1.bf16.msra.mxu0 0
      %3397 = vmatprep.subr.bf16.mxu0 0
      %3398 = vmatpush1.bf16.msra.mxu0 0
      %3399 = vmatprep.subr.bf16.mxu0 0
      %3400 = vmatpush1.bf16.msra.mxu0 0
      %3401 = vmatprep.subr.bf16.mxu0 0
      %3402 = vmatpush1.bf16.msra.mxu0 0
      %3403 = vmatprep.subr.bf16.mxu0 0
      %3404 = vmatpush1.bf16.msra.mxu0 0
      %3405 = vmatprep.subr.bf16.mxu0 0
      %3406 = vmatpush1.bf16.msra.mxu0 0
      %3407 = vmatprep.subr.bf16.mxu0 0
      %3408 = vmatpush1.bf16.msra.mxu0 0
      %3409 = vmatprep.subr.bf16.mxu0 0
      %3410 = vmatpush1.bf16.msra.mxu0 0
      %3411 = vmatprep.subr.bf16.mxu0 0
      %3412 = vmatpush1.bf16.msra.mxu0 0
      %3413 = vmatprep.subr.bf16.mxu0 0
      %3414 = vmatpush1.bf16.msra.mxu0 0
      %3415 = vmatprep.subr.bf16.mxu0 0
      %3416 = vmatpush1.bf16.msra.mxu0 0
      %3417 = vmatprep.subr.bf16.mxu0 0
      %3418 = vmatpush1.bf16.msra.mxu0 0
      %3419 = vmatprep.subr.bf16.mxu0 0
      %3420 = vmatpush1.bf16.msra.mxu0 0
      %3421 = vmatprep.subr.bf16.mxu0 0
      %3422 = vmatpush1.bf16.msra.mxu0 0
      %3423 = vmatprep.mubr.bf16.mxu0 0
      %3424 = vmatmul.mubr.bf16.gmra.mrb[0].mxu0 %v3374
      %v3425 = vpop.f32.mrb[0].mxu0
      %v3426 = vadd.f32 0.0, %v3425
      %v3427 = vpop.f32.mrb[0].mxu0
      %v3428 = vpop.f32.mrb[0].mxu0
      %v3429 = vadd.f32 0.0, %v3428
      %v3430 = vpop.f32.mrb[0].mxu0
      %3431 = vmatprep.mubr.bf16.mxu0 0
      %3432 = vmatmul.mubr.bf16.gmra.mrb[0].mxu0 %v3377
      %v3433 = vpop.f32.mrb[0].mxu0
      %v3434 = vadd.f32 0.0, %v3433
      %v3435 = vpop.f32.mrb[0].mxu0
      %v3436 = vpop.f32.mrb[0].mxu0
      %v3437 = vadd.f32 0.0, %v3436
      %v3438 = vpop.f32.mrb[0].mxu0
      %3439 = vmatprep.mubr.bf16.mxu0 0
      %3440 = vmatmul.mubr.bf16.gmra.mrb[0].mxu0 %v3380
      %v3441 = vpop.f32.mrb[0].mxu0
      %v3442 = vadd.f32 0.0, %v3441
      %v3443 = vpop.f32.mrb[0].mxu0
      %v3444 = vpop.f32.mrb[0].mxu0
      %v3445 = vadd.f32 0.0, %v3444
      %v3446 = vpop.f32.mrb[0].mxu0
      %3447 = vmatprep.mubr.bf16.mxu0 0
      %3448 = vmatmul.mubr.bf16.gmra.mrb[0].mxu0 %v3383
      %v3449 = vpop.f32.mrb[0].mxu0
      %v3450 = vadd.f32 0.0, %v3449
      %v3451 = vpop.f32.mrb[0].mxu0
      %v3452 = vpop.f32.mrb[0].mxu0
      %v3453 = vadd.f32 0.0, %v3452
      %v3454 = vpop.f32.mrb[0].mxu0
      %3455 = vmatprep.mubr.bf16.mxu0 0
      %3456 = vmatmul.mubr.bf16.gmra.mrb[0].mxu0 %v3386
      %v3457 = vpop.f32.mrb[0].mxu0
      %v3458 = vadd.f32 0.0, %v3457
      %v3459 = vpop.f32.mrb[0].mxu0
      %v3460 = vpop.f32.mrb[0].mxu0
      %v3461 = vadd.f32 0.0, %v3460
      %v3462 = vpop.f32.mrb[0].mxu0
      %3463 = vdwg.mxu0
      %v3464 = vadd.f32 %v3361, %v3426
      %v3465 = vadd.f32 %v3362, %v3429
      %v3466 = vadd.f32 %v3363, %v3434
      %v3467 = vadd.f32 %v3364, %v3437
      %v3468 = vadd.f32 %v3365, %v3442
      %v3469 = vadd.f32 %v3366, %v3445
      %v3470 = vadd.f32 %v3367, %v3450
      %v3471 = vadd.f32 %v3368, %v3453
      %v3472 = vadd.f32 %v3369, %v3458
      %v3473 = vadd.f32 %v3370, %v3461
      %3474 = vst.msk [vmem:[#allocation6] sm:$0xff] %vm604, %v3464
      %3475 = vst.msk [vmem:[#allocation6 + $0x8] sm:$0xff] %vm604, %v3465
      %3476 = vst.msk [vmem:[#allocation6 + $0x10] sm:$0xff] %vm604, %v3466
      %3477 = vst.msk [vmem:[#allocation6 + $0x18] sm:$0xff] %vm604, %v3467
      %3478 = vst.msk [vmem:[#allocation6 + $0x20] sm:$0xff] %vm604, %v3468
      %3479 = vst.msk [vmem:[#allocation6 + $0x28] sm:$0xff] %vm604, %v3469
      %3480 = vst.msk [vmem:[#allocation6 + $0x30] sm:$0xff] %vm604, %v3470
      %3481 = vst.msk [vmem:[#allocation6 + $0x38] sm:$0xff] %vm604, %v3471
      %3482 = vst.msk [vmem:[#allocation6 + $0x40] sm:$0xff] %vm604, %v3472
      %3483 = vst.msk [vmem:[#allocation6 + $0x48] sm:$0x3f] %vm621, %v3473
      %v3484 = vld [vmem:[#allocation4 + $0xc] sm:$0xff]
      %v3485 = vld [vmem:[#allocation4 + $0x14] sm:$0xff]
      %v3486 = vld [vmem:[#allocation4 + $0x1c] sm:$0xff]
      %v3487 = vld [vmem:[#allocation4 + $0x24] sm:$0xff]
      %v3488 = vld [vmem:[#allocation4 + $0x2c] sm:$0xff]
      %v3489 = vld [vmem:[#allocation4 + $0x34] sm:$0xff]
      %v3490 = vld [vmem:[#allocation4 + $0x3c] sm:$0xff]
      %v3491 = vld [vmem:[#allocation4 + $0x44] sm:$0xff]
      %v3492 = vld [vmem:[#allocation4 + $0x4c] sm:$0xff]
      %v3493 = vld [vmem:[#allocation4 + $0x54] sm:$0x3f]
      %v3494 = vpack.c.bf16 %v3485, %v3484
      %v3495 = vpack.c.bf16 %v3487, %v3486
      %v3496 = vpack.c.bf16 %v3489, %v3488
      %v3497 = vpack.c.bf16 %v3491, %v3490
      %v3498 = vpack.c.bf16 %v3493, %v3492
      %v3499 = vld [vmem:[#allocation6] sm:$0xff]
      %v3500 = vld [vmem:[#allocation6 + $0x8] sm:$0xff]
      %v3501 = vld [vmem:[#allocation6 + $0x10] sm:$0xff]
      %v3502 = vld [vmem:[#allocation6 + $0x18] sm:$0xff]
      %v3503 = vld [vmem:[#allocation6 + $0x20] sm:$0xff]
      %v3504 = vld [vmem:[#allocation6 + $0x28] sm:$0xff]
      %v3505 = vld [vmem:[#allocation6 + $0x30] sm:$0xff]
      %v3506 = vld [vmem:[#allocation6 + $0x38] sm:$0xff]
      %v3507 = vld [vmem:[#allocation6 + $0x40] sm:$0xff]
      %v3508 = vld [vmem:[#allocation6 + $0x48] sm:$0x3f]
      %s3509 = scalar_lea.vmem %s8, 20
      %v3510 = vld [vmem:[%s3509] sm:$0xf]
      %v3512 = vsel %vm604, %v3494, 0
      %v3515 = vsel %vm604, %v3495, 0
      %v3518 = vsel %vm604, %v3496, 0
      %v3521 = vsel %vm604, %v3497, 0
      %v3524 = vsel %vm604, %v3498, 0
      %v3527 = vsel %vm2835, %v3510, 0
      %3529 = vmatprep.subr.bf16.mxu0 0
      %3530 = vmatpush1.bf16.msra.mxu0 %v3527
      %3531 = vmatprep.subr.bf16.mxu0 0
      %3532 = vmatpush1.bf16.msra.mxu0 0
      %3533 = vmatprep.subr.bf16.mxu0 0
      %3534 = vmatpush1.bf16.msra.mxu0 0
      %3535 = vmatprep.subr.bf16.mxu0 0
      %3536 = vmatpush1.bf16.msra.mxu0 0
      %3537 = vmatprep.subr.bf16.mxu0 0
      %3538 = vmatpush1.bf16.msra.mxu0 0
      %3539 = vmatprep.subr.bf16.mxu0 0
      %3540 = vmatpush1.bf16.msra.mxu0 0
      %3541 = vmatprep.subr.bf16.mxu0 0
      %3542 = vmatpush1.bf16.msra.mxu0 0
      %3543 = vmatprep.subr.bf16.mxu0 0
      %3544 = vmatpush1.bf16.msra.mxu0 0
      %3545 = vmatprep.subr.bf16.mxu0 0
      %3546 = vmatpush1.bf16.msra.mxu0 0
      %3547 = vmatprep.subr.bf16.mxu0 0
      %3548 = vmatpush1.bf16.msra.mxu0 0
      %3549 = vmatprep.subr.bf16.mxu0 0
      %3550 = vmatpush1.bf16.msra.mxu0 0
      %3551 = vmatprep.subr.bf16.mxu0 0
      %3552 = vmatpush1.bf16.msra.mxu0 0
      %3553 = vmatprep.subr.bf16.mxu0 0
      %3554 = vmatpush1.bf16.msra.mxu0 0
      %3555 = vmatprep.subr.bf16.mxu0 0
      %3556 = vmatpush1.bf16.msra.mxu0 0
      %3557 = vmatprep.subr.bf16.mxu0 0
      %3558 = vmatpush1.bf16.msra.mxu0 0
      %3559 = vmatprep.subr.bf16.mxu0 0
      %3560 = vmatpush1.bf16.msra.mxu0 0
      %3561 = vmatprep.mubr.bf16.mxu0 0
      %3562 = vmatmul.mubr.bf16.gmra.mrb[0].mxu0 %v3512
      %v3563 = vpop.f32.mrb[0].mxu0
      %v3564 = vadd.f32 0.0, %v3563
      %v3565 = vpop.f32.mrb[0].mxu0
      %v3566 = vpop.f32.mrb[0].mxu0
      %v3567 = vadd.f32 0.0, %v3566
      %v3568 = vpop.f32.mrb[0].mxu0
      %3569 = vmatprep.mubr.bf16.mxu0 0
      %3570 = vmatmul.mubr.bf16.gmra.mrb[0].mxu0 %v3515
      %v3571 = vpop.f32.mrb[0].mxu0
      %v3572 = vadd.f32 0.0, %v3571
      %v3573 = vpop.f32.mrb[0].mxu0
      %v3574 = vpop.f32.mrb[0].mxu0
      %v3575 = vadd.f32 0.0, %v3574
      %v3576 = vpop.f32.mrb[0].mxu0
      %3577 = vmatprep.mubr.bf16.mxu0 0
      %3578 = vmatmul.mubr.bf16.gmra.mrb[0].mxu0 %v3518
      %v3579 = vpop.f32.mrb[0].mxu0
      %v3580 = vadd.f32 0.0, %v3579
      %v3581 = vpop.f32.mrb[0].mxu0
      %v3582 = vpop.f32.mrb[0].mxu0
      %v3583 = vadd.f32 0.0, %v3582
      %v3584 = vpop.f32.mrb[0].mxu0
      %3585 = vmatprep.mubr.bf16.mxu0 0
      %3586 = vmatmul.mubr.bf16.gmra.mrb[0].mxu0 %v3521
      %v3587 = vpop.f32.mrb[0].mxu0
      %v3588 = vadd.f32 0.0, %v3587
      %v3589 = vpop.f32.mrb[0].mxu0
      %v3590 = vpop.f32.mrb[0].mxu0
      %v3591 = vadd.f32 0.0, %v3590
      %v3592 = vpop.f32.mrb[0].mxu0
      %3593 = vmatprep.mubr.bf16.mxu0 0
      %3594 = vmatmul.mubr.bf16.gmra.mrb[0].mxu0 %v3524
      %v3595 = vpop.f32.mrb[0].mxu0
      %v3596 = vadd.f32 0.0, %v3595
      %v3597 = vpop.f32.mrb[0].mxu0
      %v3598 = vpop.f32.mrb[0].mxu0
      %v3599 = vadd.f32 0.0, %v3598
      %v3600 = vpop.f32.mrb[0].mxu0
      %3601 = vdwg.mxu0
      %v3602 = vadd.f32 %v3499, %v3564
      %v3603 = vadd.f32 %v3500, %v3567
      %v3604 = vadd.f32 %v3501, %v3572
      %v3605 = vadd.f32 %v3502, %v3575
      %v3606 = vadd.f32 %v3503, %v3580
      %v3607 = vadd.f32 %v3504, %v3583
      %v3608 = vadd.f32 %v3505, %v3588
      %v3609 = vadd.f32 %v3506, %v3591
      %v3610 = vadd.f32 %v3507, %v3596
      %v3611 = vadd.f32 %v3508, %v3599
      %3612 = vst.msk [vmem:[#allocation6] sm:$0xff] %vm604, %v3602
      %3613 = vst.msk [vmem:[#allocation6 + $0x8] sm:$0xff] %vm604, %v3603
      %3614 = vst.msk [vmem:[#allocation6 + $0x10] sm:$0xff] %vm604, %v3604
      %3615 = vst.msk [vmem:[#allocation6 + $0x18] sm:$0xff] %vm604, %v3605
      %3616 = vst.msk [vmem:[#allocation6 + $0x20] sm:$0xff] %vm604, %v3606
      %3617 = vst.msk [vmem:[#allocation6 + $0x28] sm:$0xff] %vm604, %v3607
      %3618 = vst.msk [vmem:[#allocation6 + $0x30] sm:$0xff] %vm604, %v3608
      %3619 = vst.msk [vmem:[#allocation6 + $0x38] sm:$0xff] %vm604, %v3609
      %3620 = vst.msk [vmem:[#allocation6 + $0x40] sm:$0xff] %vm604, %v3610
      %3621 = vst.msk [vmem:[#allocation6 + $0x48] sm:$0x3f] %vm621, %v3611
      %v3622 = vld [vmem:[#allocation4 + $0x14] sm:$0xff]
      %v3623 = vld [vmem:[#allocation4 + $0x1c] sm:$0xff]
      %v3624 = vld [vmem:[#allocation4 + $0x24] sm:$0xff]
      %v3625 = vld [vmem:[#allocation4 + $0x2c] sm:$0xff]
      %v3626 = vld [vmem:[#allocation4 + $0x34] sm:$0xff]
      %v3627 = vld [vmem:[#allocation4 + $0x3c] sm:$0xff]
      %v3628 = vld [vmem:[#allocation4 + $0x44] sm:$0xff]
      %v3629 = vld [vmem:[#allocation4 + $0x4c] sm:$0xff]
      %v3630 = vld [vmem:[#allocation4 + $0x54] sm:$0xff]
      %v3631 = vld [vmem:[#allocation4 + $0x5c] sm:$0x3f]
      %v3632 = vpack.c.bf16 %v3623, %v3622
      %v3633 = vpack.c.bf16 %v3625, %v3624
      %v3634 = vpack.c.bf16 %v3627, %v3626
      %v3635 = vpack.c.bf16 %v3629, %v3628
      %v3636 = vpack.c.bf16 %v3631, %v3630
      %v3637 = vld [vmem:[#allocation6] sm:$0xff]
      %v3638 = vld [vmem:[#allocation6 + $0x8] sm:$0xff]
      %v3639 = vld [vmem:[#allocation6 + $0x10] sm:$0xff]
      %v3640 = vld [vmem:[#allocation6 + $0x18] sm:$0xff]
      %v3641 = vld [vmem:[#allocation6 + $0x20] sm:$0xff]
      %v3642 = vld [vmem:[#allocation6 + $0x28] sm:$0xff]
      %v3643 = vld [vmem:[#allocation6 + $0x30] sm:$0xff]
      %v3644 = vld [vmem:[#allocation6 + $0x38] sm:$0xff]
      %v3645 = vld [vmem:[#allocation6 + $0x40] sm:$0xff]
      %v3646 = vld [vmem:[#allocation6 + $0x48] sm:$0x3f]
      %s3647 = scalar_lea.vmem %s8, 24
      %v3648 = vld [vmem:[%s3647] sm:$0xf]
      %v3650 = vsel %vm604, %v3632, 0
      %v3653 = vsel %vm604, %v3633, 0
      %v3656 = vsel %vm604, %v3634, 0
      %v3659 = vsel %vm604, %v3635, 0
      %v3662 = vsel %vm604, %v3636, 0
      %v3665 = vsel %vm2835, %v3648, 0
      %3667 = vmatprep.subr.bf16.mxu0 0
      %3668 = vmatpush1.bf16.msra.mxu0 %v3665
      %3669 = vmatprep.subr.bf16.mxu0 0
      %3670 = vmatpush1.bf16.msra.mxu0 0
      %3671 = vmatprep.subr.bf16.mxu0 0
      %3672 = vmatpush1.bf16.msra.mxu0 0
      %3673 = vmatprep.subr.bf16.mxu0 0
      %3674 = vmatpush1.bf16.msra.mxu0 0
      %3675 = vmatprep.subr.bf16.mxu0 0
      %3676 = vmatpush1.bf16.msra.mxu0 0
      %3677 = vmatprep.subr.bf16.mxu0 0
      %3678 = vmatpush1.bf16.msra.mxu0 0
      %3679 = vmatprep.subr.bf16.mxu0 0
      %3680 = vmatpush1.bf16.msra.mxu0 0
      %3681 = vmatprep.subr.bf16.mxu0 0
      %3682 = vmatpush1.bf16.msra.mxu0 0
      %3683 = vmatprep.subr.bf16.mxu0 0
      %3684 = vmatpush1.bf16.msra.mxu0 0
      %3685 = vmatprep.subr.bf16.mxu0 0
      %3686 = vmatpush1.bf16.msra.mxu0 0
      %3687 = vmatprep.subr.bf16.mxu0 0
      %3688 = vmatpush1.bf16.msra.mxu0 0
      %3689 = vmatprep.subr.bf16.mxu0 0
      %3690 = vmatpush1.bf16.msra.mxu0 0
      %3691 = vmatprep.subr.bf16.mxu0 0
      %3692 = vmatpush1.bf16.msra.mxu0 0
      %3693 = vmatprep.subr.bf16.mxu0 0
      %3694 = vmatpush1.bf16.msra.mxu0 0
      %3695 = vmatprep.subr.bf16.mxu0 0
      %3696 = vmatpush1.bf16.msra.mxu0 0
      %3697 = vmatprep.subr.bf16.mxu0 0
      %3698 = vmatpush1.bf16.msra.mxu0 0
      %3699 = vmatprep.mubr.bf16.mxu0 0
      %3700 = vmatmul.mubr.bf16.gmra.mrb[0].mxu0 %v3650
      %v3701 = vpop.f32.mrb[0].mxu0
      %v3702 = vadd.f32 0.0, %v3701
      %v3703 = vpop.f32.mrb[0].mxu0
      %v3704 = vpop.f32.mrb[0].mxu0
      %v3705 = vadd.f32 0.0, %v3704
      %v3706 = vpop.f32.mrb[0].mxu0
      %3707 = vmatprep.mubr.bf16.mxu0 0
      %3708 = vmatmul.mubr.bf16.gmra.mrb[0].mxu0 %v3653
      %v3709 = vpop.f32.mrb[0].mxu0
      %v3710 = vadd.f32 0.0, %v3709
      %v3711 = vpop.f32.mrb[0].mxu0
      %v3712 = vpop.f32.mrb[0].mxu0
      %v3713 = vadd.f32 0.0, %v3712
      %v3714 = vpop.f32.mrb[0].mxu0
      %3715 = vmatprep.mubr.bf16.mxu0 0
      %3716 = vmatmul.mubr.bf16.gmra.mrb[0].mxu0 %v3656
      %v3717 = vpop.f32.mrb[0].mxu0
      %v3718 = vadd.f32 0.0, %v3717
      %v3719 = vpop.f32.mrb[0].mxu0
      %v3720 = vpop.f32.mrb[0].mxu0
      %v3721 = vadd.f32 0.0, %v3720
      %v3722 = vpop.f32.mrb[0].mxu0
      %3723 = vmatprep.mubr.bf16.mxu0 0
      %3724 = vmatmul.mubr.bf16.gmra.mrb[0].mxu0 %v3659
      %v3725 = vpop.f32.mrb[0].mxu0
      %v3726 = vadd.f32 0.0, %v3725
      %v3727 = vpop.f32.mrb[0].mxu0
      %v3728 = vpop.f32.mrb[0].mxu0
      %v3729 = vadd.f32 0.0, %v3728
      %v3730 = vpop.f32.mrb[0].mxu0
      %3731 = vmatprep.mubr.bf16.mxu0 0
      %3732 = vmatmul.mubr.bf16.gmra.mrb[0].mxu0 %v3662
      %v3733 = vpop.f32.mrb[0].mxu0
      %v3734 = vadd.f32 0.0, %v3733
      %v3735 = vpop.f32.mrb[0].mxu0
      %v3736 = vpop.f32.mrb[0].mxu0
      %v3737 = vadd.f32 0.0, %v3736
      %v3738 = vpop.f32.mrb[0].mxu0
      %3739 = vdwg.mxu0
      %v3740 = vadd.f32 %v3637, %v3702
      %v3741 = vadd.f32 %v3638, %v3705
      %v3742 = vadd.f32 %v3639, %v3710
      %v3743 = vadd.f32 %v3640, %v3713
      %v3744 = vadd.f32 %v3641, %v3718
      %v3745 = vadd.f32 %v3642, %v3721
      %v3746 = vadd.f32 %v3643, %v3726
      %v3747 = vadd.f32 %v3644, %v3729
      %v3748 = vadd.f32 %v3645, %v3734
      %v3749 = vadd.f32 %v3646, %v3737
      %3750 = vst.msk [vmem:[#allocation6] sm:$0xff] %vm604, %v3740
      %3751 = vst.msk [vmem:[#allocation6 + $0x8] sm:$0xff] %vm604, %v3741
      %3752 = vst.msk [vmem:[#allocation6 + $0x10] sm:$0xff] %vm604, %v3742
      %3753 = vst.msk [vmem:[#allocation6 + $0x18] sm:$0xff] %vm604, %v3743
      %3754 = vst.msk [vmem:[#allocation6 + $0x20] sm:$0xff] %vm604, %v3744
      %3755 = vst.msk [vmem:[#allocation6 + $0x28] sm:$0xff] %vm604, %v3745
      %3756 = vst.msk [vmem:[#allocation6 + $0x30] sm:$0xff] %vm604, %v3746
      %3757 = vst.msk [vmem:[#allocation6 + $0x38] sm:$0xff] %vm604, %v3747
      %3758 = vst.msk [vmem:[#allocation6 + $0x40] sm:$0xff] %vm604, %v3748
      %3759 = vst.msk [vmem:[#allocation6 + $0x48] sm:$0x3f] %vm621, %v3749
      %v3760 = vld [vmem:[#allocation4 + $0x15] sm:$0xff]
      %v3761 = vld [vmem:[#allocation4 + $0x1d] sm:$0xff]
      %v3762 = vld [vmem:[#allocation4 + $0x25] sm:$0xff]
      %v3763 = vld [vmem:[#allocation4 + $0x2d] sm:$0xff]
      %v3764 = vld [vmem:[#allocation4 + $0x35] sm:$0xff]
      %v3765 = vld [vmem:[#allocation4 + $0x3d] sm:$0xff]
      %v3766 = vld [vmem:[#allocation4 + $0x45] sm:$0xff]
      %v3767 = vld [vmem:[#allocation4 + $0x4d] sm:$0xff]
      %v3768 = vld [vmem:[#allocation4 + $0x55] sm:$0xff]
      %v3769 = vld [vmem:[#allocation4 + $0x5d] sm:$0x3f]
      %v3770 = vpack.c.bf16 %v3761, %v3760
      %v3771 = vpack.c.bf16 %v3763, %v3762
      %v3772 = vpack.c.bf16 %v3765, %v3764
      %v3773 = vpack.c.bf16 %v3767, %v3766
      %v3774 = vpack.c.bf16 %v3769, %v3768
      %v3775 = vld [vmem:[#allocation6] sm:$0xff]
      %v3776 = vld [vmem:[#allocation6 + $0x8] sm:$0xff]
      %v3777 = vld [vmem:[#allocation6 + $0x10] sm:$0xff]
      %v3778 = vld [vmem:[#allocation6 + $0x18] sm:$0xff]
      %v3779 = vld [vmem:[#allocation6 + $0x20] sm:$0xff]
      %v3780 = vld [vmem:[#allocation6 + $0x28] sm:$0xff]
      %v3781 = vld [vmem:[#allocation6 + $0x30] sm:$0xff]
      %v3782 = vld [vmem:[#allocation6 + $0x38] sm:$0xff]
      %v3783 = vld [vmem:[#allocation6 + $0x40] sm:$0xff]
      %v3784 = vld [vmem:[#allocation6 + $0x48] sm:$0x3f]
      %s3785 = scalar_lea.vmem %s8, 28
      %v3786 = vld [vmem:[%s3785] sm:$0xf]
      %v3788 = vsel %vm604, %v3770, 0
      %v3791 = vsel %vm604, %v3771, 0
      %v3794 = vsel %vm604, %v3772, 0
      %v3797 = vsel %vm604, %v3773, 0
      %v3800 = vsel %vm604, %v3774, 0
      %v3803 = vsel %vm2835, %v3786, 0
      %3805 = vmatprep.subr.bf16.mxu0 0
      %3806 = vmatpush1.bf16.msra.mxu0 %v3803
      %3807 = vmatprep.subr.bf16.mxu0 0
      %3808 = vmatpush1.bf16.msra.mxu0 0
      %3809 = vmatprep.subr.bf16.mxu0 0
      %3810 = vmatpush1.bf16.msra.mxu0 0
      %3811 = vmatprep.subr.bf16.mxu0 0
      %3812 = vmatpush1.bf16.msra.mxu0 0
      %3813 = vmatprep.subr.bf16.mxu0 0
      %3814 = vmatpush1.bf16.msra.mxu0 0
      %3815 = vmatprep.subr.bf16.mxu0 0
      %3816 = vmatpush1.bf16.msra.mxu0 0
      %3817 = vmatprep.subr.bf16.mxu0 0
      %3818 = vmatpush1.bf16.msra.mxu0 0
      %3819 = vmatprep.subr.bf16.mxu0 0
      %3820 = vmatpush1.bf16.msra.mxu0 0
      %3821 = vmatprep.subr.bf16.mxu0 0
      %3822 = vmatpush1.bf16.msra.mxu0 0
      %3823 = vmatprep.subr.bf16.mxu0 0
      %3824 = vmatpush1.bf16.msra.mxu0 0
      %3825 = vmatprep.subr.bf16.mxu0 0
      %3826 = vmatpush1.bf16.msra.mxu0 0
      %3827 = vmatprep.subr.bf16.mxu0 0
      %3828 = vmatpush1.bf16.msra.mxu0 0
      %3829 = vmatprep.subr.bf16.mxu0 0
      %3830 = vmatpush1.bf16.msra.mxu0 0
      %3831 = vmatprep.subr.bf16.mxu0 0
      %3832 = vmatpush1.bf16.msra.mxu0 0
      %3833 = vmatprep.subr.bf16.mxu0 0
      %3834 = vmatpush1.bf16.msra.mxu0 0
      %3835 = vmatprep.subr.bf16.mxu0 0
      %3836 = vmatpush1.bf16.msra.mxu0 0
      %3837 = vmatprep.mubr.bf16.mxu0 0
      %3838 = vmatmul.mubr.bf16.gmra.mrb[0].mxu0 %v3788
      %v3839 = vpop.f32.mrb[0].mxu0
      %v3840 = vadd.f32 0.0, %v3839
      %v3841 = vpop.f32.mrb[0].mxu0
      %v3842 = vpop.f32.mrb[0].mxu0
      %v3843 = vadd.f32 0.0, %v3842
      %v3844 = vpop.f32.mrb[0].mxu0
      %3845 = vmatprep.mubr.bf16.mxu0 0
      %3846 = vmatmul.mubr.bf16.gmra.mrb[0].mxu0 %v3791
      %v3847 = vpop.f32.mrb[0].mxu0
      %v3848 = vadd.f32 0.0, %v3847
      %v3849 = vpop.f32.mrb[0].mxu0
      %v3850 = vpop.f32.mrb[0].mxu0
      %v3851 = vadd.f32 0.0, %v3850
      %v3852 = vpop.f32.mrb[0].mxu0
      %3853 = vmatprep.mubr.bf16.mxu0 0
      %3854 = vmatmul.mubr.bf16.gmra.mrb[0].mxu0 %v3794
      %v3855 = vpop.f32.mrb[0].mxu0
      %v3856 = vadd.f32 0.0, %v3855
      %v3857 = vpop.f32.mrb[0].mxu0
      %v3858 = vpop.f32.mrb[0].mxu0
      %v3859 = vadd.f32 0.0, %v3858
      %v3860 = vpop.f32.mrb[0].mxu0
      %3861 = vmatprep.mubr.bf16.mxu0 0
      %3862 = vmatmul.mubr.bf16.gmra.mrb[0].mxu0 %v3797
      %v3863 = vpop.f32.mrb[0].mxu0
      %v3864 = vadd.f32 0.0, %v3863
      %v3865 = vpop.f32.mrb[0].mxu0
      %v3866 = vpop.f32.mrb[0].mxu0
      %v3867 = vadd.f32 0.0, %v3866
      %v3868 = vpop.f32.mrb[0].mxu0
      %3869 = vmatprep.mubr.bf16.mxu0 0
      %3870 = vmatmul.mubr.bf16.gmra.mrb[0].mxu0 %v3800
      %v3871 = vpop.f32.mrb[0].mxu0
      %v3872 = vadd.f32 0.0, %v3871
      %v3873 = vpop.f32.mrb[0].mxu0
      %v3874 = vpop.f32.mrb[0].mxu0
      %v3875 = vadd.f32 0.0, %v3874
      %v3876 = vpop.f32.mrb[0].mxu0
      %3877 = vdwg.mxu0
      %v3878 = vadd.f32 %v3775, %v3840
      %v3879 = vadd.f32 %v3776, %v3843
      %v3880 = vadd.f32 %v3777, %v3848
      %v3881 = vadd.f32 %v3778, %v3851
      %v3882 = vadd.f32 %v3779, %v3856
      %v3883 = vadd.f32 %v3780, %v3859
      %v3884 = vadd.f32 %v3781, %v3864
      %v3885 = vadd.f32 %v3782, %v3867
      %v3886 = vadd.f32 %v3783, %v3872
      %v3887 = vadd.f32 %v3784, %v3875
      %3888 = vst.msk [vmem:[#allocation6] sm:$0xff] %vm604, %v3878
      %3889 = vst.msk [vmem:[#allocation6 + $0x8] sm:$0xff] %vm604, %v3879
      %3890 = vst.msk [vmem:[#allocation6 + $0x10] sm:$0xff] %vm604, %v3880
      %3891 = vst.msk [vmem:[#allocation6 + $0x18] sm:$0xff] %vm604, %v3881
      %3892 = vst.msk [vmem:[#allocation6 + $0x20] sm:$0xff] %vm604, %v3882
      %3893 = vst.msk [vmem:[#allocation6 + $0x28] sm:$0xff] %vm604, %v3883
      %3894 = vst.msk [vmem:[#allocation6 + $0x30] sm:$0xff] %vm604, %v3884
      %3895 = vst.msk [vmem:[#allocation6 + $0x38] sm:$0xff] %vm604, %v3885
      %3896 = vst.msk [vmem:[#allocation6 + $0x40] sm:$0xff] %vm604, %v3886
      %3897 = vst.msk [vmem:[#allocation6 + $0x48] sm:$0x3f] %vm621, %v3887
      %v3898 = vld [vmem:[#allocation4 + $0x16] sm:$0xff]
      %v3899 = vld [vmem:[#allocation4 + $0x1e] sm:$0xff]
      %v3900 = vld [vmem:[#allocation4 + $0x26] sm:$0xff]
      %v3901 = vld [vmem:[#allocation4 + $0x2e] sm:$0xff]
      %v3902 = vld [vmem:[#allocation4 + $0x36] sm:$0xff]
      %v3903 = vld [vmem:[#allocation4 + $0x3e] sm:$0xff]
      %v3904 = vld [vmem:[#allocation4 + $0x46] sm:$0xff]
      %v3905 = vld [vmem:[#allocation4 + $0x4e] sm:$0xff]
      %v3906 = vld [vmem:[#allocation4 + $0x56] sm:$0xff]
      %v3907 = vld [vmem:[#allocation4 + $0x5e] sm:$0x3f]
      %v3908 = vpack.c.bf16 %v3899, %v3898
      %v3909 = vpack.c.bf16 %v3901, %v3900
      %v3910 = vpack.c.bf16 %v3903, %v3902
      %v3911 = vpack.c.bf16 %v3905, %v3904
      %v3912 = vpack.c.bf16 %v3907, %v3906
      %v3913 = vld [vmem:[#allocation6] sm:$0xff]
      %v3914 = vld [vmem:[#allocation6 + $0x8] sm:$0xff]
      %v3915 = vld [vmem:[#allocation6 + $0x10] sm:$0xff]
      %v3916 = vld [vmem:[#allocation6 + $0x18] sm:$0xff]
      %v3917 = vld [vmem:[#allocation6 + $0x20] sm:$0xff]
      %v3918 = vld [vmem:[#allocation6 + $0x28] sm:$0xff]
      %v3919 = vld [vmem:[#allocation6 + $0x30] sm:$0xff]
      %v3920 = vld [vmem:[#allocation6 + $0x38] sm:$0xff]
      %v3921 = vld [vmem:[#allocation6 + $0x40] sm:$0xff]
      %v3922 = vld [vmem:[#allocation6 + $0x48] sm:$0x3f]
      %s3923 = scalar_lea.vmem %s8, 32
      %v3924 = vld [vmem:[%s3923] sm:$0xf]
      %v3926 = vsel %vm604, %v3908, 0
      %v3929 = vsel %vm604, %v3909, 0
      %v3932 = vsel %vm604, %v3910, 0
      %v3935 = vsel %vm604, %v3911, 0
      %v3938 = vsel %vm604, %v3912, 0
      %v3941 = vsel %vm2835, %v3924, 0
      %3943 = vmatprep.subr.bf16.mxu0 0
      %3944 = vmatpush1.bf16.msra.mxu0 %v3941
      %3945 = vmatprep.subr.bf16.mxu0 0
      %3946 = vmatpush1.bf16.msra.mxu0 0
      %3947 = vmatprep.subr.bf16.mxu0 0
      %3948 = vmatpush1.bf16.msra.mxu0 0
      %3949 = vmatprep.subr.bf16.mxu0 0
      %3950 = vmatpush1.bf16.msra.mxu0 0
      %3951 = vmatprep.subr.bf16.mxu0 0
      %3952 = vmatpush1.bf16.msra.mxu0 0
      %3953 = vmatprep.subr.bf16.mxu0 0
      %3954 = vmatpush1.bf16.msra.mxu0 0
      %3955 = vmatprep.subr.bf16.mxu0 0
      %3956 = vmatpush1.bf16.msra.mxu0 0
      %3957 = vmatprep.subr.bf16.mxu0 0
      %3958 = vmatpush1.bf16.msra.mxu0 0
      %3959 = vmatprep.subr.bf16.mxu0 0
      %3960 = vmatpush1.bf16.msra.mxu0 0
      %3961 = vmatprep.subr.bf16.mxu0 0
      %3962 = vmatpush1.bf16.msra.mxu0 0
      %3963 = vmatprep.subr.bf16.mxu0 0
      %3964 = vmatpush1.bf16.msra.mxu0 0
      %3965 = vmatprep.subr.bf16.mxu0 0
      %3966 = vmatpush1.bf16.msra.mxu0 0
      %3967 = vmatprep.subr.bf16.mxu0 0
      %3968 = vmatpush1.bf16.msra.mxu0 0
      %3969 = vmatprep.subr.bf16.mxu0 0
      %3970 = vmatpush1.bf16.msra.mxu0 0
      %3971 = vmatprep.subr.bf16.mxu0 0
      %3972 = vmatpush1.bf16.msra.mxu0 0
      %3973 = vmatprep.subr.bf16.mxu0 0
      %3974 = vmatpush1.bf16.msra.mxu0 0
      %3975 = vmatprep.mubr.bf16.mxu0 0
      %3976 = vmatmul.mubr.bf16.gmra.mrb[0].mxu0 %v3926
      %v3977 = vpop.f32.mrb[0].mxu0
      %v3978 = vadd.f32 0.0, %v3977
      %v3979 = vpop.f32.mrb[0].mxu0
      %v3980 = vpop.f32.mrb[0].mxu0
      %v3981 = vadd.f32 0.0, %v3980
      %v3982 = vpop.f32.mrb[0].mxu0
      %3983 = vmatprep.mubr.bf16.mxu0 0
      %3984 = vmatmul.mubr.bf16.gmra.mrb[0].mxu0 %v3929
      %v3985 = vpop.f32.mrb[0].mxu0
      %v3986 = vadd.f32 0.0, %v3985
      %v3987 = vpop.f32.mrb[0].mxu0
      %v3988 = vpop.f32.mrb[0].mxu0
      %v3989 = vadd.f32 0.0, %v3988
      %v3990 = vpop.f32.mrb[0].mxu0
      %3991 = vmatprep.mubr.bf16.mxu0 0
      %3992 = vmatmul.mubr.bf16.gmra.mrb[0].mxu0 %v3932
      %v3993 = vpop.f32.mrb[0].mxu0
      %v3994 = vadd.f32 0.0, %v3993
      %v3995 = vpop.f32.mrb[0].mxu0
      %v3996 = vpop.f32.mrb[0].mxu0
      %v3997 = vadd.f32 0.0, %v3996
      %v3998 = vpop.f32.mrb[0].mxu0
      %3999 = vmatprep.mubr.bf16.mxu0 0
      %4000 = vmatmul.mubr.bf16.gmra.mrb[0].mxu0 %v3935
      %v4001 = vpop.f32.mrb[0].mxu0
      %v4002 = vadd.f32 0.0, %v4001
      %v4003 = vpop.f32.mrb[0].mxu0
      %v4004 = vpop.f32.mrb[0].mxu0
      %v4005 = vadd.f32 0.0, %v4004
      %v4006 = vpop.f32.mrb[0].mxu0
      %4007 = vmatprep.mubr.bf16.mxu0 0
      %4008 = vmatmul.mubr.bf16.gmra.mrb[0].mxu0 %v3938
      %v4009 = vpop.f32.mrb[0].mxu0
      %v4010 = vadd.f32 0.0, %v4009
      %v4011 = vpop.f32.mrb[0].mxu0
      %v4012 = vpop.f32.mrb[0].mxu0
      %v4013 = vadd.f32 0.0, %v4012
      %v4014 = vpop.f32.mrb[0].mxu0
      %4015 = vdwg.mxu0
      %v4016 = vadd.f32 %v3913, %v3978
      %v4017 = vadd.f32 %v3914, %v3981
      %v4018 = vadd.f32 %v3915, %v3986
      %v4019 = vadd.f32 %v3916, %v3989
      %v4020 = vadd.f32 %v3917, %v3994
      %v4021 = vadd.f32 %v3918, %v3997
      %v4022 = vadd.f32 %v3919, %v4002
      %v4023 = vadd.f32 %v3920, %v4005
      %v4024 = vadd.f32 %v3921, %v4010
      %v4025 = vadd.f32 %v3922, %v4013
      %4026 = vst.msk [vmem:[#allocation6] sm:$0xff] %vm604, %v4016
      %4027 = vst.msk [vmem:[#allocation6 + $0x8] sm:$0xff] %vm604, %v4017
      %4028 = vst.msk [vmem:[#allocation6 + $0x10] sm:$0xff] %vm604, %v4018
      %4029 = vst.msk [vmem:[#allocation6 + $0x18] sm:$0xff] %vm604, %v4019
      %4030 = vst.msk [vmem:[#allocation6 + $0x20] sm:$0xff] %vm604, %v4020
      %4031 = vst.msk [vmem:[#allocation6 + $0x28] sm:$0xff] %vm604, %v4021
      %4032 = vst.msk [vmem:[#allocation6 + $0x30] sm:$0xff] %vm604, %v4022
      %4033 = vst.msk [vmem:[#allocation6 + $0x38] sm:$0xff] %vm604, %v4023
      %4034 = vst.msk [vmem:[#allocation6 + $0x40] sm:$0xff] %vm604, %v4024
      %4035 = vst.msk [vmem:[#allocation6 + $0x48] sm:$0x3f] %vm621, %v4025
      %v4036 = vld [vmem:[#allocation6] sm:$0xff]
      %v4037 = vld [vmem:[#allocation7] sm:$0xff]
      %v4038 = vadd.f32 %v4036, %v4037
      %4039 = vst.msk [vmem:[%s352] sm:$0xff] %vm604, %v4038
      %v4040 = vld [vmem:[#allocation6 + $0xa] sm:$0xff]
      %v4041 = vld [vmem:[#allocation7 + $0x12] sm:$0xff]
      %v4042 = vadd.f32 %v4040, %v4041
      %s4043 = scalar_lea.vmem %s352, 8
      %4044 = vst.msk [vmem:[%s4043] sm:$0xff] %vm604, %v4042
      %v4045 = vld [vmem:[#allocation6 + $0x14] sm:$0xff]
      %v4046 = vld [vmem:[#allocation7 + $0x24] sm:$0xff]
      %v4047 = vadd.f32 %v4045, %v4046
      %s4048 = scalar_lea.vmem %s352, 16
      %4049 = vst.msk [vmem:[%s4048] sm:$0xff] %vm604, %v4047
      %v4050 = vld [vmem:[#allocation6 + $0x1e] sm:$0xff]
      %v4051 = vld [vmem:[#allocation7 + $0x36] sm:$0xff]
      %v4052 = vadd.f32 %v4050, %v4051
      %s4053 = scalar_lea.vmem %s352, 24
      %4054 = vst.msk [vmem:[%s4053] sm:$0xff] %vm604, %v4052
      %v4055 = vld [vmem:[#allocation6 + $0x28] sm:$0xff]
      %v4056 = vld [vmem:[#allocation7 + $0x48] sm:$0xff]
      %v4057 = vadd.f32 %v4055, %v4056
      %s4058 = scalar_lea.vmem %s352, 32
      %4059 = vst.msk [vmem:[%s4058] sm:$0xff] %vm604, %v4057
      %v4060 = vld [vmem:[#allocation6 + $0x32] sm:$0xff]
      %v4061 = vld [vmem:[#allocation7 + $0x5a] sm:$0xff]
      %v4062 = vadd.f32 %v4060, %v4061
      %s4063 = scalar_lea.vmem %s352, 40
      %4064 = vst.msk [vmem:[%s4063] sm:$0xff] %vm604, %v4062
      %v4065 = vld [vmem:[#allocation6 + $0x3c] sm:$0xff]
      %v4066 = vld [vmem:[#allocation7 + $0x6c] sm:$0xff]
      %v4067 = vadd.f32 %v4065, %v4066
      %s4068 = scalar_lea.vmem %s352, 48
      %4069 = vst.msk [vmem:[%s4068] sm:$0xff] %vm604, %v4067
      %v4070 = vld [vmem:[#allocation6 + $0x46] sm:$0xff]
      %v4071 = vld [vmem:[#allocation7 + $0x7e] sm:$0xff]
      %v4072 = vadd.f32 %v4070, %v4071
      %s4073 = scalar_lea.vmem %s352, 56
      %4074 = vst.msk [vmem:[%s4073] sm:$0xff] %vm604, %v4072
      %p4075 = scmp.lt.s32.totalorder %s20, 1
      %s4076 = scalar_select %p4075, %s20, 1
      %s4077 = smul.addr %s4076, 8
      %s4078 = smul.addr %s4077, 8
      %s4079 = scalar_lea.vmem %s9, %s4078
      // Predicated region
      $region57: #{preact_block_forward.1} parent=55 // pred_check
        %p4080 = pneg %p237
      $region58: #{preact_block_forward.1} parent=55 // pred_check_branch
        %4082 = sbr.rel (%p4080) target = $region60
      $region59: #{preact_block_forward.1} parent=55 // pred_region
        _
      $region60: #{preact_block_forward.1} parent=55 // pred_fallthru
        _
    $region56: #{preact_block_forward.1} parent=5 // pred_fallthru
      _
    %p4083 = scmp.le.s32.totalorder 2, %s15
    // Predicated region
    $region61: #{preact_block_forward.1} parent=5 // pred_check
      %p4084 = pneg %p4083
    $region62: #{preact_block_forward.1} parent=5 // pred_check_branch
      %4086 = sbr.rel (%p4084) target = $region64
    $region63: #{preact_block_forward.1} parent=5 // pred_region
      %s4087 = ssub.s32 %s15, 2
      // Predicated region
      $region65: #{preact_block_forward.1} parent=63 // pred_check
        %p4088 = pneg %p243
      $region66: #{preact_block_forward.1} parent=63 // pred_check_branch
        %4090 = sbr.rel (%p4088) target = $region68
      $region67: #{preact_block_forward.1} parent=63 // pred_region
        %p4091 = scmp.lt.s32.totalorder %s21, 1
        %s4092 = scalar_select %p4091, %s21, 1
        %s4093 = smul.addr %s4092, 8
        %s4094 = smul.addr %s4093, 8
        %s4095 = scalar_lea.vmem %s9, %s4094
      $region68: #{preact_block_forward.1} parent=63 // pred_fallthru
        _
    $region64: #{preact_block_forward.1} parent=5 // pred_fallthru
      _
  $region6: #{preact_block_forward.1} parent=0 // loop_footer
    %s19 = sadd.s32 1, %s15
  $region7: #{preact_block_forward.1} parent=0 // loop_footer_branch
    %14 = sbr.rel target = $region3
  $region8: #{preact_block_forward.1} parent=0 // loop_exit
    _

</llo_original>
